<compile_context>
chip_gen: v7x
topology: tpu7x:2x2x1
jax: 0.10.0
libtpu: 0.0.40
codegen_flags: <defaults>
</compile_context>

<pallas_src>
import functools

import jax
import jax.numpy as jnp
from jax import lax
from jax.experimental import pallas as pl
from jax.experimental.pallas import tpu as pltpu


def _round_up(x, m):
    return (x + m - 1) // m * m


def _pick_block_batch(batch, max_block=8):
    """Largest divisor of `batch` that is <= max_block (images per grid step)."""
    bb = min(batch, max_block)
    while batch % bb:
        bb -= 1
    return bb


# ----------------------------- in-kernel helpers -----------------------------

def _layernorm(x, w, b, eps=1e-5):
    mu = jnp.mean(x, axis=-1, keepdims=True)
    xc = x - mu
    var = jnp.mean(xc * xc, axis=-1, keepdims=True)
    return xc * lax.rsqrt(var + eps) * w + b


def _softmax(x):
    m = jnp.max(x, axis=-1, keepdims=True)
    e = jnp.exp(x - m)
    return e * pl.reciprocal(jnp.sum(e, axis=-1, keepdims=True), approx=True)


def _erf(x):
    # float32-accurate erf (Abramowitz & Stegun 7.1.26, |err| < 1.5e-7); lax.erf
    # has no Mosaic lowering.  Matches nn.GELU() (exact erf) to f32 precision.
    a1, a2, a3, a4, a5 = (0.254829592, -0.284496736, 1.421413741,
                          -1.453152027, 1.061405429)
    p = 0.3275911
    ax = jnp.abs(x)
    t = 1.0 / (1.0 + p * ax)
    poly = ((((a5 * t + a4) * t + a3) * t + a2) * t + a1) * t
    y = 1.0 - poly * jnp.exp(-ax * ax)
    return jnp.where(x >= 0, y, -y)


def _gelu(x):
    return 0.5 * x * (1.0 + _erf(x * 0.7071067811865476))


# ------------------------- fused ViT forward kernel ---------------------------

def _vit_kernel(patches_ref, pe_w_ref, pe_b_ref, cls_ref, pos_ref,
                ln1w_ref, ln1b_ref, wqkv_ref, wpo_ref, bpo_ref,
                ln2w_ref, ln2b_ref, w1_ref, b1_ref, w2_ref, b2_ref,
                hlnw_ref, hlnb_ref, hw_ref, hb_ref,
                embed_ref, logits_ref, tok_ref, *, num_heads, n_tok):
    l = pl.program_id(1)
    n_layers = pl.num_programs(1)

    bb, n_pad, dim = tok_ref.shape            # images/block, padded tokens, hidden
    hd = dim // num_heads
    bn = bb * n_pad
    scale = float(hd) ** -0.5

    # ---- l == 0: patch embedding + [CLS] + positional embedding --------------
    @pl.when(l == 0)
    def _embed():
        n_patch = patches_ref.shape[1]
        dp = patches_ref.shape[2]                          # lane-padded patch dim
        p16 = patches_ref[...].astype(jnp.bfloat16).reshape(bb * n_patch, dp)
        emb = jnp.dot(p16, pe_w_ref[...],
                      preferred_element_type=jnp.float32) + pe_b_ref[...]
        emb = emb.reshape(bb, n_patch, dim)                # [Bb, P, D]
        pos = pos_ref[0]                                   # [N_pad, D]
        tok_ref[:, 0:1, :] = jnp.broadcast_to(
            (cls_ref[0] + pos[0:1, :])[None], (bb, 1, dim))
        tok_ref[:, 1:n_tok, :] = emb + pos[1:n_tok, :][None]
        if n_pad > n_tok:                                  # static
            tok_ref[:, n_tok:, :] = jnp.zeros((bb, n_pad - n_tok, dim),
                                              jnp.float32)

    # ---- transformer encoder layer l (matches the PyTorch module exactly:
    #      x = norm1(x); x = attention(x) + x; x = norm2(x); x = fnn(x) + x) ---
    x = tok_ref[...].reshape(bn, dim)                      # f32 [Bb*N_pad, D]
    xn = _layernorm(x, ln1w_ref[0], ln1b_ref[0])
    xn16 = xn.astype(jnp.bfloat16)

    # fused QKV projection: one K=D matmul, lane-dense 3D-wide output
    qkv = jnp.dot(xn16, wqkv_ref[0],
                  preferred_element_type=jnp.float32)      # [Bb*N_pad, 3D]
    qkv = qkv.reshape(bb, n_pad, 3 * dim)

    def split_heads(which):
        # -> [H*Bb, N_pad, hd]; batch index = h*Bb + b (lane slices + major concat)
        return jnp.concatenate(
            [qkv[:, :, which * dim + h * hd: which * dim + (h + 1) * hd]
             for h in range(num_heads)], axis=0)

    q = split_heads(0).astype(jnp.bfloat16)
    k = split_heads(1).astype(jnp.bfloat16)
    v = split_heads(2).astype(jnp.bfloat16)

    s = jnp.einsum("bqd,bkd->bqk", q, k,
                   preferred_element_type=jnp.float32) * scale   # [H*Bb, N, N] f32
    key_id = lax.broadcasted_iota(jnp.int32, (1, 1, n_pad), 2)
    s = jnp.where(key_id < n_tok, s, -1e30)                # mask padded keys (f32)
    a = _softmax(s).astype(jnp.bfloat16)
    o = jnp.einsum("bqk,bkd->bqd", a, v,
                   preferred_element_type=jnp.float32)     # [H*Bb, N_pad, hd]

    # merge heads back to torch's flatten(2) layout: [Bb*N_pad, H*hd]
    o = jnp.concatenate([o[h * bb:(h + 1) * bb] for h in range(num_heads)],
                        axis=-1)                           # [Bb, N_pad, D]
    o = o.reshape(bn, dim).astype(jnp.bfloat16)
    att = jnp.dot(o, wpo_ref[0],
                  preferred_element_type=jnp.float32) + bpo_ref[0]   # K=128 matmul
    x = att + xn

    # FNN block
    xn2 = _layernorm(x, ln2w_ref[0], ln2b_ref[0])
    f = jnp.dot(xn2.astype(jnp.bfloat16), w1_ref[0],
                preferred_element_type=jnp.float32) + b1_ref[0]
    f = _gelu(f)
    f = jnp.dot(f.astype(jnp.bfloat16), w2_ref[0],
                preferred_element_type=jnp.float32) + b2_ref[0]
    x = f + xn2
    tok_ref[...] = x.reshape(bb, n_pad, dim)

    # ---- l == L-1: classification head on the class tokens -------------------
    @pl.when(l == n_layers - 1)
    def _head():
        cls = x.reshape(bb, n_pad, dim)[:, 0, :]           # [Bb, D]
        cls = _layernorm(cls, hlnw_ref[...], hlnb_ref[...])
        embed_ref[...] = cls.reshape(bb, 1, dim).astype(embed_ref.dtype)
        logits = jnp.dot(cls.astype(jnp.bfloat16), hw_ref[...],
                         preferred_element_type=jnp.float32) + hb_ref[...]
        logits_ref[...] = logits.reshape(bb, 1, -1).astype(logits_ref.dtype)


def _vit_pallas(patches, kp, *, num_heads, block_batch=None):
    B, P, DPp = patches.shape
    L, _, D = kp["ln1_w"].shape
    N_pad = kp["pos"].shape[1]
    C_pad = kp["head_w"].shape[1]
    F = kp["w1"].shape[2]

    Bb = _pick_block_batch(B) if block_batch is None else block_batch
    assert B % Bb == 0

    in_specs = [
        pl.BlockSpec((Bb, P, DPp), lambda b, l: (b, 0, 0)),               # patches
        pl.BlockSpec((DPp, D), lambda b, l: (0, 0)),                      # pe_w
        pl.BlockSpec((1, D), lambda b, l: (0, 0)),                        # pe_b
        pl.BlockSpec((1, 1, D), lambda b, l: (0, 0, 0)),                  # cls token
        pl.BlockSpec((1, N_pad, D), lambda b, l: (0, 0, 0)),              # pos embed
        pl.BlockSpec((1, 1, D), lambda b, l: (l, 0, 0)),                  # ln1_w
        pl.BlockSpec((1, 1, D), lambda b, l: (l, 0, 0)),                  # ln1_b
        pl.BlockSpec((1, D, 3 * D), lambda b, l: (l, 0, 0)),              # wqkv (fused)
        pl.BlockSpec((1, D, D), lambda b, l: (l, 0, 0)),                  # wpo (unsplit)
        pl.BlockSpec((1, 1, D), lambda b, l: (l, 0, 0)),                  # bpo
        pl.BlockSpec((1, 1, D), lambda b, l: (l, 0, 0)),                  # ln2_w
        pl.BlockSpec((1, 1, D), lambda b, l: (l, 0, 0)),                  # ln2_b
        pl.BlockSpec((1, D, F), lambda b, l: (l, 0, 0)),                  # w1
        pl.BlockSpec((1, 1, F), lambda b, l: (l, 0, 0)),                  # b1
        pl.BlockSpec((1, F, D), lambda b, l: (l, 0, 0)),                  # w2
        pl.BlockSpec((1, 1, D), lambda b, l: (l, 0, 0)),                  # b2
        pl.BlockSpec((1, D), lambda b, l: (0, 0)),                        # head ln_w
        pl.BlockSpec((1, D), lambda b, l: (0, 0)),                        # head ln_b
        pl.BlockSpec((D, C_pad), lambda b, l: (0, 0)),                    # head W
        pl.BlockSpec((1, C_pad), lambda b, l: (0, 0)),                    # head b
    ]
    out_specs = (
        pl.BlockSpec((Bb, 1, D), lambda b, l: (b, 0, 0)),                 # embed
        pl.BlockSpec((Bb, 1, C_pad), lambda b, l: (b, 0, 0)),             # logits (padded)
    )
    embed, logits = pl.pallas_call(
        functools.partial(_vit_kernel, num_heads=num_heads, n_tok=P + 1),
        out_shape=(jax.ShapeDtypeStruct((B, 1, D), jnp.float32),
                   jax.ShapeDtypeStruct((B, 1, C_pad), jnp.float32)),
        grid=(B // Bb, L),
        in_specs=in_specs,
        out_specs=out_specs,
        scratch_shapes=[pltpu.VMEM((Bb, N_pad, D), jnp.float32)],          # resident tokens
        compiler_params=pltpu.CompilerParams(
            dimension_semantics=("parallel", "arbitrary"),
            vmem_limit_bytes=32 * 1024 * 1024),
    )(patches, kp["pe_w"], kp["pe_b"], kp["cls"], kp["pos"],
      kp["ln1_w"], kp["ln1_b"], kp["wqkv"], kp["wpo"], kp["bpo"],
      kp["ln2_w"], kp["ln2_b"], kp["w1"], kp["b1"], kp["w2"], kp["b2"],
      kp["hln_w"], kp["hln_b"], kp["head_w"], kp["head_b"])
    return embed[:, 0], logits[:, 0]


@functools.partial(jax.jit,
                   static_argnames=("patch_size", "num_heads", "num_classes",
                                    "return_embed", "block_batch"))
def vit_forward(x, kernel_params, *, patch_size, num_heads, num_classes,
                return_embed=False, block_batch=None):
    B, C, H, W = x.shape
    hp, wp = H // patch_size, W // patch_size
    # Patchify — identical to torch's view / permute(0,2,4,1,3,5) / reshape.
    patches = x.reshape(B, C, hp, patch_size, wp, patch_size)
    patches = patches.transpose(0, 2, 4, 1, 3, 5)
    patches = patches.reshape(B, hp * wp, C * patch_size * patch_size)
    # zero-pad the patch feature dim to the lane-padded width of pe_w
    dp = patches.shape[-1]
    dp_pad = kernel_params["pe_w"].shape[0]
    if dp_pad > dp:
        patches = jnp.pad(patches, ((0, 0), (0, 0), (0, dp_pad - dp)))
    embed, logits = _vit_pallas(patches, kernel_params, num_heads=num_heads,
                                block_batch=block_batch)
    if return_embed:
        return embed
    return logits[:, :num_classes]


# ------------------------------ parameters -----------------------------------

def init_vit_params(key, *, num_classes, img_size, patch_size, dim_hidden,
                    num_heads, dim_feedforward, num_layers):
    assert img_size % patch_size == 0 and dim_hidden % num_heads == 0
    num_patches = (img_size // patch_size) ** 2
    dim_patch = 3 * patch_size ** 2
    keys = iter(jax.random.split(key, 8 + 8 * num_layers))

    def rnd(shape, scale=0.02):
        return scale * jax.random.normal(next(keys), shape, jnp.float32)

    params = {
        "patch_embed_w": rnd((dim_patch, dim_hidden)),
        "patch_embed_b": rnd((dim_hidden,)),
        # zeros, matching the PyTorch nn.Parameter(torch.zeros(...)) init
        "class_token": jnp.zeros((1, 1, dim_hidden), jnp.float32),
        "pos_embed": jnp.zeros((1, num_patches + 1, dim_hidden), jnp.float32),
        "norm_w": jnp.ones((dim_hidden,), jnp.float32),
        "norm_b": jnp.zeros((dim_hidden,), jnp.float32),
        "head_w": rnd((dim_hidden, num_classes)),
        "head_b": rnd((num_classes,)),
        "layers": [],
    }
    for _ in range(num_layers):
        params["layers"].append({
            "ln1_w": jnp.ones((dim_hidden,), jnp.float32),
            "ln1_b": jnp.zeros((dim_hidden,), jnp.float32),
            "qkv_w": rnd((dim_hidden, 3 * dim_hidden)),        # qkv_bias=False
            "proj_w": rnd((dim_hidden, dim_hidden)),
            "proj_b": rnd((dim_hidden,)),
            "ln2_w": jnp.ones((dim_hidden,), jnp.float32),
            "ln2_b": jnp.zeros((dim_hidden,), jnp.float32),
            "fc1_w": rnd((dim_hidden, dim_feedforward)),
            "fc1_b": rnd((dim_feedforward,)),
            "fc2_w": rnd((dim_feedforward, dim_hidden)),
            "fc2_b": rnd((dim_hidden,)),
        })
    return params


def prepare_kernel_params(params, *, num_heads):
    """Stack per-layer weights on a leading [L] axis, keep QKV/proj weights fused
    (Q/K/V each a contiguous 128-lane block, head-major within the block — the
    torch (3, heads, hd) column order), pad pos-embed rows to a multiple of 16,
    the patch dim to 128 lanes and logits to 128 lanes, and cast matmul weights
    to bf16 (biases / LN params stay f32)."""
    DP, D = params["patch_embed_w"].shape
    DP_pad = _round_up(DP, 128)
    N = params["pos_embed"].shape[1]
    N_pad = _round_up(N, 16)
    C = params["head_w"].shape[1]
    C_pad = _round_up(C, 128)
    F = params["layers"][0]["fc1_w"].shape[1]
    bf16 = jnp.bfloat16

    def stack(fn):
        return jnp.stack([fn(ly) for ly in params["layers"]], axis=0)

    return {
        "pe_w": jnp.pad(params["patch_embed_w"],
                        ((0, DP_pad - DP), (0, 0))).astype(bf16),
        "pe_b": params["patch_embed_b"].reshape(1, D),
        "cls": params["class_token"],
        "pos": jnp.pad(params["pos_embed"], ((0, 0), (0, N_pad - N), (0, 0))),
        "ln1_w": stack(lambda ly: ly["ln1_w"].reshape(1, D)),
        "ln1_b": stack(lambda ly: ly["ln1_b"].reshape(1, D)),
        "wqkv": stack(lambda ly: ly["qkv_w"]).astype(bf16),        # [L, D, 3D]
        "wpo": stack(lambda ly: ly["proj_w"]).astype(bf16),        # [L, D, D]
        "bpo": stack(lambda ly: ly["proj_b"].reshape(1, D)),
        "ln2_w": stack(lambda ly: ly["ln2_w"].reshape(1, D)),
        "ln2_b": stack(lambda ly: ly["ln2_b"].reshape(1, D)),
        "w1": stack(lambda ly: ly["fc1_w"]).astype(bf16),
        "b1": stack(lambda ly: ly["fc1_b"].reshape(1, F)),
        "w2": stack(lambda ly: ly["fc2_w"]).astype(bf16),
        "b2": stack(lambda ly: ly["fc2_b"].reshape(1, D)),
        "hln_w": params["norm_w"].reshape(1, D),
        "hln_b": params["norm_b"].reshape(1, D),
        "head_w": jnp.pad(params["head_w"], ((0, 0), (0, C_pad - C))).astype(bf16),
        "head_b": jnp.pad(params["head_b"].reshape(1, C), ((0, 0), (0, C_pad - C))),
    }


# ------------------------ pure-JAX reference (f32) ----------------------------

def _layernorm_ref(x, w, b, eps=1e-5):
    mu = jnp.mean(x, -1, keepdims=True)
    var = jnp.mean((x - mu) ** 2, -1, keepdims=True)
    return (x - mu) / jnp.sqrt(var + eps) * w + b


def vit_reference(x, params, *, patch_size, num_heads):
    B, C, H, W = x.shape
    hp, wp = H // patch_size, W // patch_size
    t = x.reshape(B, C, hp, patch_size, wp, patch_size).transpose(0, 2, 4, 1, 3, 5)
    t = t.reshape(B, hp * wp, C * patch_size * patch_size)
    t = t @ params["patch_embed_w"] + params["patch_embed_b"]
    D = t.shape[-1]
    hd = D // num_heads
    cls = jnp.broadcast_to(params["class_token"], (B, 1, D))
    t = jnp.concatenate([cls, t], axis=1) + params["pos_embed"]
    for ly in params["layers"]:
        t = _layernorm_ref(t, ly["ln1_w"], ly["ln1_b"])
        Bn, N, _ = t.shape
        qkv = (t @ ly["qkv_w"]).reshape(Bn, N, 3, num_heads, hd).transpose(2, 0, 3, 1, 4)
        q, k, v = qkv[0], qkv[1], qkv[2]
        attn = jax.nn.softmax(jnp.einsum("bhqd,bhkd->bhqk", q, k) * hd ** -0.5, axis=-1)
        o = jnp.einsum("bhqk,bhkd->bhqd", attn, v).transpose(0, 2, 1, 3).reshape(Bn, N, D)
        t = o @ ly["proj_w"] + ly["proj_b"] + t
        t = _layernorm_ref(t, ly["ln2_w"], ly["ln2_b"])
        f = jax.nn.gelu(t @ ly["fc1_w"] + ly["fc1_b"], approximate=False)
        t = f @ ly["fc2_w"] + ly["fc2_b"] + t
    c = _layernorm_ref(t[:, 0], params["norm_w"], params["norm_b"])
    return c, c @ params["head_w"] + params["head_b"]


# ------------------------------------ main ------------------------------------

if __name__ == "__main__":
    num_classes = 10
    img_size = 16
    patch_size = 4
    dim_hidden = 128       # multiple of 128 -> lane-dense hidden dim
    num_heads = 4
    dim_feedforward = 256
    num_layers = 2

    key = jax.random.PRNGKey(0)
    kparams, kx = jax.random.split(key)
    params = init_vit_params(kparams, num_classes=num_classes, img_size=img_size,
                             patch_size=patch_size, dim_hidden=dim_hidden,
                             num_heads=num_heads, dim_feedforward=dim_feedforward,
                             num_layers=num_layers)
    kernel_params = prepare_kernel_params(params, num_heads=num_heads)
    x = jax.random.normal(kx, (2, 3, img_size, img_size), jnp.float32)

    logits = vit_forward(x, kernel_params, patch_size=patch_size,
                         num_heads=num_heads, num_classes=num_classes)
    logits = jax.block_until_ready(logits)
    assert logits.shape == (2, num_classes)
    assert bool(jnp.all(jnp.isfinite(logits)))

    embed = vit_forward(x, kernel_params, patch_size=patch_size,
                        num_heads=num_heads, num_classes=num_classes,
                        return_embed=True)
    embed = jax.block_until_ready(embed)
    assert embed.shape == (2, dim_hidden)

    # correctness vs. pure-JAX f32 reference (bf16 matmuls + approx reciprocal
    # in softmax introduce only small numerical differences — intentional)
    ref_embed, ref_logits = vit_reference(x, params, patch_size=patch_size,
                                          num_heads=num_heads)
    err_l = float(jnp.max(jnp.abs(logits - ref_logits)))
    err_e = float(jnp.max(jnp.abs(embed - ref_embed)))
    assert err_l < 5e-2 and err_e < 5e-2, (err_l, err_e)

    print("KERNEL_OK")
</pallas_src>

<mosaic_0001>
module attributes {stable_mosaic.version = 11 : i64} {
  func.func @_vit_kernel(%arg0: i32, %arg1: i32, %arg2: memref<2x16x128xf32, #tpu.memory_space<vmem>>, %arg3: memref<128x128xbf16, #tpu.memory_space<vmem>>, %arg4: memref<1x128xf32, #tpu.memory_space<vmem>>, %arg5: memref<1x1x128xf32, #tpu.memory_space<vmem>>, %arg6: memref<1x32x128xf32, #tpu.memory_space<vmem>>, %arg7: memref<1x1x128xf32, #tpu.memory_space<vmem>>, %arg8: memref<1x1x128xf32, #tpu.memory_space<vmem>>, %arg9: memref<1x128x384xbf16, #tpu.memory_space<vmem>>, %arg10: memref<1x128x128xbf16, #tpu.memory_space<vmem>>, %arg11: memref<1x1x128xf32, #tpu.memory_space<vmem>>, %arg12: memref<1x1x128xf32, #tpu.memory_space<vmem>>, %arg13: memref<1x1x128xf32, #tpu.memory_space<vmem>>, %arg14: memref<1x128x256xbf16, #tpu.memory_space<vmem>>, %arg15: memref<1x1x256xf32, #tpu.memory_space<vmem>>, %arg16: memref<1x256x128xbf16, #tpu.memory_space<vmem>>, %arg17: memref<1x1x128xf32, #tpu.memory_space<vmem>>, %arg18: memref<1x128xf32, #tpu.memory_space<vmem>>, %arg19: memref<1x128xf32, #tpu.memory_space<vmem>>, %arg20: memref<128x128xbf16, #tpu.memory_space<vmem>>, %arg21: memref<1x128xf32, #tpu.memory_space<vmem>>, %arg22: memref<2x1x128xf32, #tpu.memory_space<vmem>>, %arg23: memref<2x1x128xf32, #tpu.memory_space<vmem>>, %arg24: memref<2x32x128xf32, #tpu.memory_space<vmem>>) attributes {dimension_semantics = [#tpu.dimension_semantics<parallel>, #tpu.dimension_semantics<arbitrary>], iteration_bounds = array<i64: 1, 2>, scalar_prefetch = 0 : i64, scratch_operands = 1 : i64, tpu.core_type = #tpu.core_type<tc>, window_params = [{transform_indices = @transform_0, window_bounds = array<i64: 2, 16, 128>}, {pipeline_mode = #tpu.pipeline_mode<synchronous>, transform_indices = @transform_1, window_bounds = array<i64: 128, 128>}, {pipeline_mode = #tpu.pipeline_mode<synchronous>, transform_indices = @transform_2, window_bounds = array<i64: 1, 128>}, {pipeline_mode = #tpu.pipeline_mode<synchronous>, transform_indices = @transform_3, window_bounds = array<i64: 1, 1, 128>}, {pipeline_mode = #tpu.pipeline_mode<synchronous>, transform_indices = @transform_4, window_bounds = array<i64: 1, 32, 128>}, {transform_indices = @transform_5, window_bounds = array<i64: 1, 1, 128>}, {transform_indices = @transform_6, window_bounds = array<i64: 1, 1, 128>}, {transform_indices = @transform_7, window_bounds = array<i64: 1, 128, 384>}, {transform_indices = @transform_8, window_bounds = array<i64: 1, 128, 128>}, {transform_indices = @transform_9, window_bounds = array<i64: 1, 1, 128>}, {transform_indices = @transform_10, window_bounds = array<i64: 1, 1, 128>}, {transform_indices = @transform_11, window_bounds = array<i64: 1, 1, 128>}, {transform_indices = @transform_12, window_bounds = array<i64: 1, 128, 256>}, {transform_indices = @transform_13, window_bounds = array<i64: 1, 1, 256>}, {transform_indices = @transform_14, window_bounds = array<i64: 1, 256, 128>}, {transform_indices = @transform_15, window_bounds = array<i64: 1, 1, 128>}, {pipeline_mode = #tpu.pipeline_mode<synchronous>, transform_indices = @transform_16, window_bounds = array<i64: 1, 128>}, {pipeline_mode = #tpu.pipeline_mode<synchronous>, transform_indices = @transform_17, window_bounds = array<i64: 1, 128>}, {pipeline_mode = #tpu.pipeline_mode<synchronous>, transform_indices = @transform_18, window_bounds = array<i64: 128, 128>}, {pipeline_mode = #tpu.pipeline_mode<synchronous>, transform_indices = @transform_19, window_bounds = array<i64: 1, 128>}, {transform_indices = @transform_20, window_bounds = array<i64: 2, 1, 128>}, {transform_indices = @transform_21, window_bounds = array<i64: 2, 1, 128>}]} {
    %c0_i32 = arith.constant 0 : i32
    %0 = arith.cmpi eq, %arg1, %c0_i32 : i32
    %1 = arith.extui %0 : i1 to i32
    %c0_i32_0 = arith.constant 0 : i32
    %2 = arith.cmpi ne, %1, %c0_i32_0 : i32
    scf.if %2 {
      %c0_74 = arith.constant 0 : index
      %c0_75 = arith.constant 0 : index
      %c0_76 = arith.constant 0 : index
      %175 = vector.load %arg2[%c0_74, %c0_75, %c0_76] : memref<2x16x128xf32, #tpu.memory_space<vmem>>, vector<2x16x128xf32>
      %176 = arith.truncf %175 : vector<2x16x128xf32> to vector<2x16x128xbf16>
      %177 = vector.shape_cast %176 : vector<2x16x128xbf16> to vector<32x128xbf16>
      %c0_77 = arith.constant 0 : index
      %c0_78 = arith.constant 0 : index
      %178 = vector.load %arg3[%c0_77, %c0_78] : memref<128x128xbf16, #tpu.memory_space<vmem>>, vector<128x128xbf16>
      %cst_79 = arith.constant dense<0.000000e+00> : vector<32x128xf32>
      %179 = tpu.matmul %177, %178, %cst_79 {dimension_numbers = #tpu.dot_dimension_numbers<[1], [0], [0], [1], [0, 0, 1, 1], [], []>} : vector<32x128xbf16>, vector<128x128xbf16>, vector<32x128xf32> -> vector<32x128xf32>
      %c0_80 = arith.constant 0 : index
      %c0_81 = arith.constant 0 : index
      %180 = vector.load %arg4[%c0_80, %c0_81] : memref<1x128xf32, #tpu.memory_space<vmem>>, vector<1x128xf32>
      %181 = vector.broadcast %180 : vector<1x128xf32> to vector<32x128xf32>
      %182 = arith.addf %179, %181 : vector<32x128xf32>
      %183 = vector.shape_cast %182 : vector<32x128xf32> to vector<2x16x128xf32>
      %c0_82 = arith.constant 0 : index
      %c0_83 = arith.constant 0 : index
      %c0_84 = arith.constant 0 : index
      %184 = vector.load %arg6[%c0_82, %c0_83, %c0_84] : memref<1x32x128xf32, #tpu.memory_space<vmem>>, vector<1x32x128xf32>
      %185 = vector.shape_cast %184 : vector<1x32x128xf32> to vector<32x128xf32>
      %c0_85 = arith.constant 0 : index
      %c0_86 = arith.constant 0 : index
      %c0_87 = arith.constant 0 : index
      %186 = vector.load %arg5[%c0_85, %c0_86, %c0_87] : memref<1x1x128xf32, #tpu.memory_space<vmem>>, vector<1x1x128xf32>
      %187 = vector.shape_cast %186 : vector<1x1x128xf32> to vector<1x128xf32>
      %188 = vector.extract_strided_slice %185 {offsets = [0, 0], sizes = [1, 128], strides = [1, 1]} : vector<32x128xf32> to vector<1x128xf32>
      %189 = arith.addf %187, %188 : vector<1x128xf32>
      %190 = vector.shape_cast %189 : vector<1x128xf32> to vector<1x1x128xf32>
      %191 = vector.shape_cast %190 : vector<1x1x128xf32> to vector<1x1x128xf32>
      %192 = vector.broadcast %191 : vector<1x1x128xf32> to vector<2x1x128xf32>
      %c0_88 = arith.constant 0 : index
      %c0_89 = arith.constant 0 : index
      %c0_90 = arith.constant 0 : index
      %193 = vector.load %arg24[%c0_88, %c0_89, %c0_90] : memref<2x32x128xf32, #tpu.memory_space<vmem>>, vector<2x1x128xf32>
      tpu.vector_store %arg24[%c0_88, %c0_89, %c0_90], %192 {strides = array<i32>} : memref<2x32x128xf32, #tpu.memory_space<vmem>>, vector<2x1x128xf32>,
      %194 = vector.extract_strided_slice %185 {offsets = [1, 0], sizes = [16, 128], strides = [1, 1]} : vector<32x128xf32> to vector<16x128xf32>
      %195 = vector.shape_cast %194 : vector<16x128xf32> to vector<1x16x128xf32>
      %196 = vector.broadcast %195 : vector<1x16x128xf32> to vector<2x16x128xf32>
      %197 = arith.addf %183, %196 : vector<2x16x128xf32>
      %c0_91 = arith.constant 0 : index
      %c1 = arith.constant 1 : index
      %c0_92 = arith.constant 0 : index
      %198 = vector.load %arg24[%c0_91, %c1, %c0_92] : memref<2x32x128xf32, #tpu.memory_space<vmem>>, vector<2x16x128xf32>
      tpu.vector_store %arg24[%c0_91, %c1, %c0_92], %197 {strides = array<i32>} : memref<2x32x128xf32, #tpu.memory_space<vmem>>, vector<2x16x128xf32>,
      %cst_93 = arith.constant 0.000000e+00 : f32
      %199 = vector.broadcast %cst_93 : f32 to vector<2x15x128xf32>
      %c0_94 = arith.constant 0 : index
      %c17 = arith.constant 17 : index
      %c0_95 = arith.constant 0 : index
      %200 = vector.load %arg24[%c0_94, %c17, %c0_95] : memref<2x32x128xf32, #tpu.memory_space<vmem>>, vector<2x15x128xf32>
      tpu.vector_store %arg24[%c0_94, %c17, %c0_95], %199 {strides = array<i32>} : memref<2x32x128xf32, #tpu.memory_space<vmem>>, vector<2x15x128xf32>,
    } else {
    }
    %c0 = arith.constant 0 : index
    %c0_1 = arith.constant 0 : index
    %c0_2 = arith.constant 0 : index
    %3 = vector.load %arg24[%c0, %c0_1, %c0_2] : memref<2x32x128xf32, #tpu.memory_space<vmem>>, vector<2x32x128xf32>
    %4 = vector.shape_cast %3 : vector<2x32x128xf32> to vector<64x128xf32>
    %c0_3 = arith.constant 0 : index
    %c0_4 = arith.constant 0 : index
    %c0_5 = arith.constant 0 : index
    %5 = vector.load %arg7[%c0_3, %c0_4, %c0_5] : memref<1x1x128xf32, #tpu.memory_space<vmem>>, vector<1x1x128xf32>
    %6 = vector.shape_cast %5 : vector<1x1x128xf32> to vector<1x128xf32>
    %c0_6 = arith.constant 0 : index
    %c0_7 = arith.constant 0 : index
    %c0_8 = arith.constant 0 : index
    %7 = vector.load %arg8[%c0_6, %c0_7, %c0_8] : memref<1x1x128xf32, #tpu.memory_space<vmem>>, vector<1x1x128xf32>
    %8 = vector.shape_cast %7 : vector<1x1x128xf32> to vector<1x128xf32>
    %cst = arith.constant dense<0.000000e+00> : vector<64xf32>
    %9 = vector.multi_reduction <add>, %4, %cst [1] : vector<64x128xf32> to vector<64xf32>
    %10 = vector.shape_cast %9 : vector<64xf32> to vector<64x1xf32>
    %cst_9 = arith.constant 1.280000e+02 : f32
    %11 = vector.broadcast %cst_9 : f32 to vector<64x1xf32>
    %12 = arith.divf %10, %11 : vector<64x1xf32>
    %13 = vector.broadcast %12 : vector<64x1xf32> to vector<64x128xf32>
    %14 = arith.subf %4, %13 : vector<64x128xf32>
    %15 = arith.mulf %14, %14 : vector<64x128xf32>
    %cst_10 = arith.constant dense<0.000000e+00> : vector<64xf32>
    %16 = vector.multi_reduction <add>, %15, %cst_10 [1] : vector<64x128xf32> to vector<64xf32>
    %17 = vector.shape_cast %16 : vector<64xf32> to vector<64x1xf32>
    %cst_11 = arith.constant 1.280000e+02 : f32
    %18 = vector.broadcast %cst_11 : f32 to vector<64x1xf32>
    %19 = arith.divf %17, %18 : vector<64x1xf32>
    %cst_12 = arith.constant 9.99999974E-6 : f32
    %20 = vector.broadcast %cst_12 : f32 to vector<64x1xf32>
    %21 = arith.addf %19, %20 : vector<64x1xf32>
    %22 = math.rsqrt %21 : vector<64x1xf32>
    %23 = vector.broadcast %22 : vector<64x1xf32> to vector<64x128xf32>
    %24 = arith.mulf %14, %23 : vector<64x128xf32>
    %25 = vector.broadcast %6 : vector<1x128xf32> to vector<64x128xf32>
    %26 = arith.mulf %24, %25 : vector<64x128xf32>
    %27 = vector.broadcast %8 : vector<1x128xf32> to vector<64x128xf32>
    %28 = arith.addf %26, %27 : vector<64x128xf32>
    %29 = arith.truncf %28 : vector<64x128xf32> to vector<64x128xbf16>
    %c0_13 = arith.constant 0 : index
    %c0_14 = arith.constant 0 : index
    %c0_15 = arith.constant 0 : index
    %30 = vector.load %arg9[%c0_13, %c0_14, %c0_15] : memref<1x128x384xbf16, #tpu.memory_space<vmem>>, vector<1x128x384xbf16>
    %31 = vector.shape_cast %30 : vector<1x128x384xbf16> to vector<128x384xbf16>
    %cst_16 = arith.constant dense<0.000000e+00> : vector<64x384xf32>
    %32 = tpu.matmul %29, %31, %cst_16 {dimension_numbers = #tpu.dot_dimension_numbers<[1], [0], [0], [1], [0, 0, 1, 1], [], []>} : vector<64x128xbf16>, vector<128x384xbf16>, vector<64x384xf32> -> vector<64x384xf32>
    %33 = vector.shape_cast %32 : vector<64x384xf32> to vector<2x32x384xf32>
    %34 = vector.extract_strided_slice %33 {offsets = [0, 0, 0], sizes = [2, 32, 32], strides = [1, 1, 1]} : vector<2x32x384xf32> to vector<2x32x32xf32>
    %35 = vector.extract_strided_slice %33 {offsets = [0, 0, 32], sizes = [2, 32, 32], strides = [1, 1, 1]} : vector<2x32x384xf32> to vector<2x32x32xf32>
    %36 = vector.extract_strided_slice %33 {offsets = [0, 0, 64], sizes = [2, 32, 32], strides = [1, 1, 1]} : vector<2x32x384xf32> to vector<2x32x32xf32>
    %37 = vector.extract_strided_slice %33 {offsets = [0, 0, 96], sizes = [2, 32, 32], strides = [1, 1, 1]} : vector<2x32x384xf32> to vector<2x32x32xf32>
    %38 = tpu.concatenate %34, %35, %36, %37 in 0 : vector<2x32x32xf32>, vector<2x32x32xf32>, vector<2x32x32xf32>, vector<2x32x32xf32> -> vector<8x32x32xf32>
    %39 = arith.truncf %38 : vector<8x32x32xf32> to vector<8x32x32xbf16>
    %40 = vector.extract_strided_slice %33 {offsets = [0, 0, 128], sizes = [2, 32, 32], strides = [1, 1, 1]} : vector<2x32x384xf32> to vector<2x32x32xf32>
    %41 = vector.extract_strided_slice %33 {offsets = [0, 0, 160], sizes = [2, 32, 32], strides = [1, 1, 1]} : vector<2x32x384xf32> to vector<2x32x32xf32>
    %42 = vector.extract_strided_slice %33 {offsets = [0, 0, 192], sizes = [2, 32, 32], strides = [1, 1, 1]} : vector<2x32x384xf32> to vector<2x32x32xf32>
    %43 = vector.extract_strided_slice %33 {offsets = [0, 0, 224], sizes = [2, 32, 32], strides = [1, 1, 1]} : vector<2x32x384xf32> to vector<2x32x32xf32>
    %44 = tpu.concatenate %40, %41, %42, %43 in 0 : vector<2x32x32xf32>, vector<2x32x32xf32>, vector<2x32x32xf32>, vector<2x32x32xf32> -> vector<8x32x32xf32>
    %45 = arith.truncf %44 : vector<8x32x32xf32> to vector<8x32x32xbf16>
    %46 = vector.extract_strided_slice %33 {offsets = [0, 0, 256], sizes = [2, 32, 32], strides = [1, 1, 1]} : vector<2x32x384xf32> to vector<2x32x32xf32>
    %47 = vector.extract_strided_slice %33 {offsets = [0, 0, 288], sizes = [2, 32, 32], strides = [1, 1, 1]} : vector<2x32x384xf32> to vector<2x32x32xf32>
    %48 = vector.extract_strided_slice %33 {offsets = [0, 0, 320], sizes = [2, 32, 32], strides = [1, 1, 1]} : vector<2x32x384xf32> to vector<2x32x32xf32>
    %49 = vector.extract_strided_slice %33 {offsets = [0, 0, 352], sizes = [2, 32, 32], strides = [1, 1, 1]} : vector<2x32x384xf32> to vector<2x32x32xf32>
    %50 = tpu.concatenate %46, %47, %48, %49 in 0 : vector<2x32x32xf32>, vector<2x32x32xf32>, vector<2x32x32xf32>, vector<2x32x32xf32> -> vector<8x32x32xf32>
    %51 = arith.truncf %50 : vector<8x32x32xf32> to vector<8x32x32xbf16>
    "tpu.trace_start"() <{level = 10 : i32, message = "bqd,bkd->bqk"}> : () -> ()
    %cst_17 = arith.constant dense<0.000000e+00> : vector<8x32x32xf32>
    %52 = tpu.matmul %39, %45, %cst_17 {dimension_numbers = #tpu.dot_dimension_numbers<[2], [2], [1], [1], [0, 0, 0, 1, 1, 1], [0], [0]>} : vector<8x32x32xbf16>, vector<8x32x32xbf16>, vector<8x32x32xf32> -> vector<8x32x32xf32>
    "tpu.trace_stop"() : () -> ()
    %cst_18 = arith.constant 0.176776692 : f32
    %53 = vector.broadcast %cst_18 : f32 to vector<8x32x32xf32>
    %54 = arith.mulf %52, %53 : vector<8x32x32xf32>
    %55 = tpu.iota {dimensions = array<i32: 2>} : vector<1x1x32xi32>
    %c17_i32 = arith.constant 17 : i32
    %56 = vector.broadcast %c17_i32 : i32 to vector<1x1x32xi32>
    %57 = arith.cmpi slt, %55, %56 : vector<1x1x32xi32>
    %cst_19 = arith.constant -1.000000e+30 : f32
    %58 = vector.shape_cast %57 : vector<1x1x32xi1> to vector<1x1x32xi1>
    %59 = vector.broadcast %58 : vector<1x1x32xi1> to vector<8x32x32xi1>
    %60 = vector.broadcast %cst_19 : f32 to vector<8x32x32xf32>
    %61 = arith.select %59, %54, %60 : vector<8x32x32xi1>, vector<8x32x32xf32>
    %cst_20 = arith.constant dense<0xFF800000> : vector<8x32xf32>
    %62 = vector.multi_reduction <maximumf>, %61, %cst_20 [2] : vector<8x32x32xf32> to vector<8x32xf32>
    %63 = vector.shape_cast %62 : vector<8x32xf32> to vector<8x32x1xf32>
    %64 = vector.broadcast %63 : vector<8x32x1xf32> to vector<8x32x32xf32>
    %65 = arith.subf %61, %64 : vector<8x32x32xf32>
    %66 = math.exp %65 : vector<8x32x32xf32>
    %cst_21 = arith.constant dense<0.000000e+00> : vector<8x32xf32>
    %67 = vector.multi_reduction <add>, %66, %cst_21 [2] : vector<8x32x32xf32> to vector<8x32xf32>
    %68 = vector.shape_cast %67 : vector<8x32xf32> to vector<8x32x1xf32>
    %69 = tpu.reciprocal %68 {approx = true} : vector<8x32x1xf32> -> vector<8x32x1xf32>
    %70 = vector.broadcast %69 : vector<8x32x1xf32> to vector<8x32x32xf32>
    %71 = arith.mulf %66, %70 : vector<8x32x32xf32>
    %72 = arith.truncf %71 : vector<8x32x32xf32> to vector<8x32x32xbf16>
    "tpu.trace_start"() <{level = 10 : i32, message = "bqk,bkd->bqd"}> : () -> ()
    %cst_22 = arith.constant dense<0.000000e+00> : vector<8x32x32xf32>
    %73 = tpu.matmul %72, %51, %cst_22 {dimension_numbers = #tpu.dot_dimension_numbers<[2], [1], [1], [2], [0, 0, 0, 1, 1, 2], [0], [0]>} : vector<8x32x32xbf16>, vector<8x32x32xbf16>, vector<8x32x32xf32> -> vector<8x32x32xf32>
    "tpu.trace_stop"() : () -> ()
    %74 = vector.extract_strided_slice %73 {offsets = [0, 0, 0], sizes = [2, 32, 32], strides = [1, 1, 1]} : vector<8x32x32xf32> to vector<2x32x32xf32>
    %75 = vector.extract_strided_slice %73 {offsets = [2, 0, 0], sizes = [2, 32, 32], strides = [1, 1, 1]} : vector<8x32x32xf32> to vector<2x32x32xf32>
    %76 = vector.extract_strided_slice %73 {offsets = [4, 0, 0], sizes = [2, 32, 32], strides = [1, 1, 1]} : vector<8x32x32xf32> to vector<2x32x32xf32>
    %77 = vector.extract_strided_slice %73 {offsets = [6, 0, 0], sizes = [2, 32, 32], strides = [1, 1, 1]} : vector<8x32x32xf32> to vector<2x32x32xf32>
    %78 = tpu.concatenate %74, %75, %76, %77 in 2 : vector<2x32x32xf32>, vector<2x32x32xf32>, vector<2x32x32xf32>, vector<2x32x32xf32> -> vector<2x32x128xf32>
    %79 = vector.shape_cast %78 : vector<2x32x128xf32> to vector<64x128xf32>
    %80 = arith.truncf %79 : vector<64x128xf32> to vector<64x128xbf16>
    %c0_23 = arith.constant 0 : index
    %c0_24 = arith.constant 0 : index
    %c0_25 = arith.constant 0 : index
    %81 = vector.load %arg10[%c0_23, %c0_24, %c0_25] : memref<1x128x128xbf16, #tpu.memory_space<vmem>>, vector<1x128x128xbf16>
    %82 = vector.shape_cast %81 : vector<1x128x128xbf16> to vector<128x128xbf16>
    %cst_26 = arith.constant dense<0.000000e+00> : vector<64x128xf32>
    %83 = tpu.matmul %80, %82, %cst_26 {dimension_numbers = #tpu.dot_dimension_numbers<[1], [0], [0], [1], [0, 0, 1, 1], [], []>} : vector<64x128xbf16>, vector<128x128xbf16>, vector<64x128xf32> -> vector<64x128xf32>
    %c0_27 = arith.constant 0 : index
    %c0_28 = arith.constant 0 : index
    %c0_29 = arith.constant 0 : index
    %84 = vector.load %arg11[%c0_27, %c0_28, %c0_29] : memref<1x1x128xf32, #tpu.memory_space<vmem>>, vector<1x1x128xf32>
    %85 = vector.shape_cast %84 : vector<1x1x128xf32> to vector<1x128xf32>
    %86 = vector.broadcast %85 : vector<1x128xf32> to vector<64x128xf32>
    %87 = arith.addf %83, %86 : vector<64x128xf32>
    %88 = arith.addf %87, %28 : vector<64x128xf32>
    %c0_30 = arith.constant 0 : index
    %c0_31 = arith.constant 0 : index
    %c0_32 = arith.constant 0 : index
    %89 = vector.load %arg12[%c0_30, %c0_31, %c0_32] : memref<1x1x128xf32, #tpu.memory_space<vmem>>, vector<1x1x128xf32>
    %90 = vector.shape_cast %89 : vector<1x1x128xf32> to vector<1x128xf32>
    %c0_33 = arith.constant 0 : index
    %c0_34 = arith.constant 0 : index
    %c0_35 = arith.constant 0 : index
    %91 = vector.load %arg13[%c0_33, %c0_34, %c0_35] : memref<1x1x128xf32, #tpu.memory_space<vmem>>, vector<1x1x128xf32>
    %92 = vector.shape_cast %91 : vector<1x1x128xf32> to vector<1x128xf32>
    %cst_36 = arith.constant dense<0.000000e+00> : vector<64xf32>
    %93 = vector.multi_reduction <add>, %88, %cst_36 [1] : vector<64x128xf32> to vector<64xf32>
    %94 = vector.shape_cast %93 : vector<64xf32> to vector<64x1xf32>
    %cst_37 = arith.constant 1.280000e+02 : f32
    %95 = vector.broadcast %cst_37 : f32 to vector<64x1xf32>
    %96 = arith.divf %94, %95 : vector<64x1xf32>
    %97 = vector.broadcast %96 : vector<64x1xf32> to vector<64x128xf32>
    %98 = arith.subf %88, %97 : vector<64x128xf32>
    %99 = arith.mulf %98, %98 : vector<64x128xf32>
    %cst_38 = arith.constant dense<0.000000e+00> : vector<64xf32>
    %100 = vector.multi_reduction <add>, %99, %cst_38 [1] : vector<64x128xf32> to vector<64xf32>
    %101 = vector.shape_cast %100 : vector<64xf32> to vector<64x1xf32>
    %cst_39 = arith.constant 1.280000e+02 : f32
    %102 = vector.broadcast %cst_39 : f32 to vector<64x1xf32>
    %103 = arith.divf %101, %102 : vector<64x1xf32>
    %cst_40 = arith.constant 9.99999974E-6 : f32
    %104 = vector.broadcast %cst_40 : f32 to vector<64x1xf32>
    %105 = arith.addf %103, %104 : vector<64x1xf32>
    %106 = math.rsqrt %105 : vector<64x1xf32>
    %107 = vector.broadcast %106 : vector<64x1xf32> to vector<64x128xf32>
    %108 = arith.mulf %98, %107 : vector<64x128xf32>
    %109 = vector.broadcast %90 : vector<1x128xf32> to vector<64x128xf32>
    %110 = arith.mulf %108, %109 : vector<64x128xf32>
    %111 = vector.broadcast %92 : vector<1x128xf32> to vector<64x128xf32>
    %112 = arith.addf %110, %111 : vector<64x128xf32>
    %113 = arith.truncf %112 : vector<64x128xf32> to vector<64x128xbf16>
    %c0_41 = arith.constant 0 : index
    %c0_42 = arith.constant 0 : index
    %c0_43 = arith.constant 0 : index
    %114 = vector.load %arg14[%c0_41, %c0_42, %c0_43] : memref<1x128x256xbf16, #tpu.memory_space<vmem>>, vector<1x128x256xbf16>
    %115 = vector.shape_cast %114 : vector<1x128x256xbf16> to vector<128x256xbf16>
    %cst_44 = arith.constant dense<0.000000e+00> : vector<64x256xf32>
    %116 = tpu.matmul %113, %115, %cst_44 {dimension_numbers = #tpu.dot_dimension_numbers<[1], [0], [0], [1], [0, 0, 1, 1], [], []>} : vector<64x128xbf16>, vector<128x256xbf16>, vector<64x256xf32> -> vector<64x256xf32>
    %c0_45 = arith.constant 0 : index
    %c0_46 = arith.constant 0 : index
    %c0_47 = arith.constant 0 : index
    %117 = vector.load %arg15[%c0_45, %c0_46, %c0_47] : memref<1x1x256xf32, #tpu.memory_space<vmem>>, vector<1x1x256xf32>
    %118 = vector.shape_cast %117 : vector<1x1x256xf32> to vector<1x256xf32>
    %119 = vector.broadcast %118 : vector<1x256xf32> to vector<64x256xf32>
    %120 = arith.addf %116, %119 : vector<64x256xf32>
    %cst_48 = arith.constant 5.000000e-01 : f32
    %121 = vector.broadcast %cst_48 : f32 to vector<64x256xf32>
    %122 = arith.mulf %121, %120 : vector<64x256xf32>
    %cst_49 = arith.constant 0.707106769 : f32
    %123 = vector.broadcast %cst_49 : f32 to vector<64x256xf32>
    %124 = arith.mulf %120, %123 : vector<64x256xf32>
    %125 = math.absf %124 : vector<64x256xf32>
    %cst_50 = arith.constant 0.327591091 : f32
    %126 = vector.broadcast %cst_50 : f32 to vector<64x256xf32>
    %127 = arith.mulf %126, %125 : vector<64x256xf32>
    %cst_51 = arith.constant 1.000000e+00 : f32
    %128 = vector.broadcast %cst_51 : f32 to vector<64x256xf32>
    %129 = arith.addf %128, %127 : vector<64x256xf32>
    %cst_52 = arith.constant 1.000000e+00 : f32
    %130 = vector.broadcast %cst_52 : f32 to vector<64x256xf32>
    %131 = arith.divf %130, %129 : vector<64x256xf32>
    %cst_53 = arith.constant 1.06140542 : f32
    %132 = vector.broadcast %cst_53 : f32 to vector<64x256xf32>
    %133 = arith.mulf %132, %131 : vector<64x256xf32>
    %cst_54 = arith.constant -1.45315206 : f32
    %134 = vector.broadcast %cst_54 : f32 to vector<64x256xf32>
    %135 = arith.addf %133, %134 : vector<64x256xf32>
    %136 = arith.mulf %135, %131 : vector<64x256xf32>
    %cst_55 = arith.constant 1.42141378 : f32
    %137 = vector.broadcast %cst_55 : f32 to vector<64x256xf32>
    %138 = arith.addf %136, %137 : vector<64x256xf32>
    %139 = arith.mulf %138, %131 : vector<64x256xf32>
    %cst_56 = arith.constant -0.284496725 : f32
    %140 = vector.broadcast %cst_56 : f32 to vector<64x256xf32>
    %141 = arith.addf %139, %140 : vector<64x256xf32>
    %142 = arith.mulf %141, %131 : vector<64x256xf32>
    %cst_57 = arith.constant 0.254829586 : f32
    %143 = vector.broadcast %cst_57 : f32 to vector<64x256xf32>
    %144 = arith.addf %142, %143 : vector<64x256xf32>
    %145 = arith.mulf %144, %131 : vector<64x256xf32>
    %cst_58 = arith.constant 0.000000e+00 : f32
    %146 = vector.broadcast %cst_58 : f32 to vector<64x256xf32>
    %147 = arith.subf %146, %125 : vector<64x256xf32>
    %148 = arith.mulf %147, %125 : vector<64x256xf32>
    %149 = math.exp %148 : vector<64x256xf32>
    %150 = arith.mulf %145, %149 : vector<64x256xf32>
    %cst_59 = arith.constant 1.000000e+00 : f32
    %151 = vector.broadcast %cst_59 : f32 to vector<64x256xf32>
    %152 = arith.subf %151, %150 : vector<64x256xf32>
    %cst_60 = arith.constant 0.000000e+00 : f32
    %153 = vector.broadcast %cst_60 : f32 to vector<64x256xf32>
    %154 = arith.cmpf oge, %124, %153 : vector<64x256xf32>
    %cst_61 = arith.constant 0.000000e+00 : f32
    %155 = vector.broadcast %cst_61 : f32 to vector<64x256xf32>
    %156 = arith.subf %155, %152 : vector<64x256xf32>
    %157 = arith.select %154, %152, %156 : vector<64x256xi1>, vector<64x256xf32>
    %cst_62 = arith.constant 1.000000e+00 : f32
    %158 = vector.broadcast %cst_62 : f32 to vector<64x256xf32>
    %159 = arith.addf %158, %157 : vector<64x256xf32>
    %160 = arith.mulf %122, %159 : vector<64x256xf32>
    %161 = arith.truncf %160 : vector<64x256xf32> to vector<64x256xbf16>
    %c0_63 = arith.constant 0 : index
    %c0_64 = arith.constant 0 : index
    %c0_65 = arith.constant 0 : index
    %162 = vector.load %arg16[%c0_63, %c0_64, %c0_65] : memref<1x256x128xbf16, #tpu.memory_space<vmem>>, vector<1x256x128xbf16>
    %163 = vector.shape_cast %162 : vector<1x256x128xbf16> to vector<256x128xbf16>
    %cst_66 = arith.constant dense<0.000000e+00> : vector<64x128xf32>
    %164 = tpu.matmul %161, %163, %cst_66 {dimension_numbers = #tpu.dot_dimension_numbers<[1], [0], [0], [1], [0, 0, 1, 1], [], []>} : vector<64x256xbf16>, vector<256x128xbf16>, vector<64x128xf32> -> vector<64x128xf32>
    %c0_67 = arith.constant 0 : index
    %c0_68 = arith.constant 0 : index
    %c0_69 = arith.constant 0 : index
    %165 = vector.load %arg17[%c0_67, %c0_68, %c0_69] : memref<1x1x128xf32, #tpu.memory_space<vmem>>, vector<1x1x128xf32>
    %166 = vector.shape_cast %165 : vector<1x1x128xf32> to vector<1x128xf32>
    %167 = vector.broadcast %166 : vector<1x128xf32> to vector<64x128xf32>
    %168 = arith.addf %164, %167 : vector<64x128xf32>
    %169 = arith.addf %168, %112 : vector<64x128xf32>
    %170 = vector.shape_cast %169 : vector<64x128xf32> to vector<2x32x128xf32>
    %c0_70 = arith.constant 0 : index
    %c0_71 = arith.constant 0 : index
    %c0_72 = arith.constant 0 : index
    %171 = vector.load %arg24[%c0_70, %c0_71, %c0_72] : memref<2x32x128xf32, #tpu.memory_space<vmem>>, vector<2x32x128xf32>
    tpu.vector_store %arg24[%c0_70, %c0_71, %c0_72], %170 {strides = array<i32>} : memref<2x32x128xf32, #tpu.memory_space<vmem>>, vector<2x32x128xf32>,
    %c1_i32 = arith.constant 1 : i32
    %172 = arith.cmpi eq, %arg1, %c1_i32 : i32
    %173 = arith.extui %172 : i1 to i32
    %c0_i32_73 = arith.constant 0 : i32
    %174 = arith.cmpi ne, %173, %c0_i32_73 : i32
    scf.if %174 {
      %175 = vector.shape_cast %169 : vector<64x128xf32> to vector<2x32x128xf32>
      %176 = vector.extract_strided_slice %175 {offsets = [0, 0, 0], sizes = [2, 1, 128], strides = [1, 1, 1]} : vector<2x32x128xf32> to vector<2x1x128xf32>
      %177 = vector.shape_cast %176 : vector<2x1x128xf32> to vector<2x128xf32>
      %c0_74 = arith.constant 0 : index
      %c0_75 = arith.constant 0 : index
      %178 = vector.load %arg18[%c0_74, %c0_75] : memref<1x128xf32, #tpu.memory_space<vmem>>, vector<1x128xf32>
      %c0_76 = arith.constant 0 : index
      %c0_77 = arith.constant 0 : index
      %179 = vector.load %arg19[%c0_76, %c0_77] : memref<1x128xf32, #tpu.memory_space<vmem>>, vector<1x128xf32>
      %cst_78 = arith.constant dense<0.000000e+00> : vector<2xf32>
      %180 = vector.multi_reduction <add>, %177, %cst_78 [1] : vector<2x128xf32> to vector<2xf32>
      %181 = vector.shape_cast %180 : vector<2xf32> to vector<2x1xf32>
      %cst_79 = arith.constant 1.280000e+02 : f32
      %182 = vector.broadcast %cst_79 : f32 to vector<2x1xf32>
      %183 = arith.divf %181, %182 : vector<2x1xf32>
      %184 = vector.broadcast %183 : vector<2x1xf32> to vector<2x128xf32>
      %185 = arith.subf %177, %184 : vector<2x128xf32>
      %186 = arith.mulf %185, %185 : vector<2x128xf32>
      %cst_80 = arith.constant dense<0.000000e+00> : vector<2xf32>
      %187 = vector.multi_reduction <add>, %186, %cst_80 [1] : vector<2x128xf32> to vector<2xf32>
      %188 = vector.shape_cast %187 : vector<2xf32> to vector<2x1xf32>
      %cst_81 = arith.constant 1.280000e+02 : f32
      %189 = vector.broadcast %cst_81 : f32 to vector<2x1xf32>
      %190 = arith.divf %188, %189 : vector<2x1xf32>
      %cst_82 = arith.constant 9.99999974E-6 : f32
      %191 = vector.broadcast %cst_82 : f32 to vector<2x1xf32>
      %192 = arith.addf %190, %191 : vector<2x1xf32>
      %193 = math.rsqrt %192 : vector<2x1xf32>
      %194 = vector.broadcast %193 : vector<2x1xf32> to vector<2x128xf32>
      %195 = arith.mulf %185, %194 : vector<2x128xf32>
      %196 = vector.broadcast %178 : vector<1x128xf32> to vector<2x128xf32>
      %197 = arith.mulf %195, %196 : vector<2x128xf32>
      %198 = vector.broadcast %179 : vector<1x128xf32> to vector<2x128xf32>
      %199 = arith.addf %197, %198 : vector<2x128xf32>
      %200 = vector.shape_cast %199 : vector<2x128xf32> to vector<2x1x128xf32>
      %c0_83 = arith.constant 0 : index
      %c0_84 = arith.constant 0 : index
      %c0_85 = arith.constant 0 : index
      %201 = vector.load %arg22[%c0_83, %c0_84, %c0_85] : memref<2x1x128xf32, #tpu.memory_space<vmem>>, vector<2x1x128xf32>
      tpu.vector_store %arg22[%c0_83, %c0_84, %c0_85], %200 {strides = array<i32>} : memref<2x1x128xf32, #tpu.memory_space<vmem>>, vector<2x1x128xf32>,
      %202 = arith.truncf %199 : vector<2x128xf32> to vector<2x128xbf16>
      %c0_86 = arith.constant 0 : index
      %c0_87 = arith.constant 0 : index
      %203 = vector.load %arg20[%c0_86, %c0_87] : memref<128x128xbf16, #tpu.memory_space<vmem>>, vector<128x128xbf16>
      %cst_88 = arith.constant dense<0.000000e+00> : vector<2x128xf32>
      %204 = tpu.matmul %202, %203, %cst_88 {dimension_numbers = #tpu.dot_dimension_numbers<[1], [0], [0], [1], [0, 0, 1, 1], [], []>} : vector<2x128xbf16>, vector<128x128xbf16>, vector<2x128xf32> -> vector<2x128xf32>
      %c0_89 = arith.constant 0 : index
      %c0_90 = arith.constant 0 : index
      %205 = vector.load %arg21[%c0_89, %c0_90] : memref<1x128xf32, #tpu.memory_space<vmem>>, vector<1x128xf32>
      %206 = vector.broadcast %205 : vector<1x128xf32> to vector<2x128xf32>
      %207 = arith.addf %204, %206 : vector<2x128xf32>
      %208 = vector.shape_cast %207 : vector<2x128xf32> to vector<2x1x128xf32>
      %c0_91 = arith.constant 0 : index
      %c0_92 = arith.constant 0 : index
      %c0_93 = arith.constant 0 : index
      %209 = vector.load %arg23[%c0_91, %c0_92, %c0_93] : memref<2x1x128xf32, #tpu.memory_space<vmem>>, vector<2x1x128xf32>
      tpu.vector_store %arg23[%c0_91, %c0_92, %c0_93], %208 {strides = array<i32>} : memref<2x1x128xf32, #tpu.memory_space<vmem>>, vector<2x1x128xf32>,
    } else {
    }
    return
  }
  func.func @transform_0(%arg0: i32, %arg1: i32) -> (i32, i32, i32) {
    %c0_i32 = arith.constant 0 : i32
    %c0_i32_0 = arith.constant 0 : i32
    %c0_i32_1 = arith.constant 0 : i32
    return %arg0, %c0_i32, %c0_i32_0 : i32, i32, i32
  }
  func.func @transform_1(%arg0: i32, %arg1: i32) -> (i32, i32) {
    %c0_i32 = arith.constant 0 : i32
    %c0_i32_0 = arith.constant 0 : i32
    %c0_i32_1 = arith.constant 0 : i32
    return %c0_i32, %c0_i32_0 : i32, i32
  }
  func.func @transform_2(%arg0: i32, %arg1: i32) -> (i32, i32) {
    %c0_i32 = arith.constant 0 : i32
    %c0_i32_0 = arith.constant 0 : i32
    %c0_i32_1 = arith.constant 0 : i32
    return %c0_i32, %c0_i32_0 : i32, i32
  }
  func.func @transform_3(%arg0: i32, %arg1: i32) -> (i32, i32, i32) {
    %c0_i32 = arith.constant 0 : i32
    %c0_i32_0 = arith.constant 0 : i32
    %c0_i32_1 = arith.constant 0 : i32
    %c0_i32_2 = arith.constant 0 : i32
    return %c0_i32, %c0_i32_0, %c0_i32_1 : i32, i32, i32
  }
  func.func @transform_4(%arg0: i32, %arg1: i32) -> (i32, i32, i32) {
    %c0_i32 = arith.constant 0 : i32
    %c0_i32_0 = arith.constant 0 : i32
    %c0_i32_1 = arith.constant 0 : i32
    %c0_i32_2 = arith.constant 0 : i32
    return %c0_i32, %c0_i32_0, %c0_i32_1 : i32, i32, i32
  }
  func.func @transform_5(%arg0: i32, %arg1: i32) -> (i32, i32, i32) {
    %c0_i32 = arith.constant 0 : i32
    %c0_i32_0 = arith.constant 0 : i32
    %c0_i32_1 = arith.constant 0 : i32
    return %arg1, %c0_i32, %c0_i32_0 : i32, i32, i32
  }
  func.func @transform_6(%arg0: i32, %arg1: i32) -> (i32, i32, i32) {
    %c0_i32 = arith.constant 0 : i32
    %c0_i32_0 = arith.constant 0 : i32
    %c0_i32_1 = arith.constant 0 : i32
    return %arg1, %c0_i32, %c0_i32_0 : i32, i32, i32
  }
  func.func @transform_7(%arg0: i32, %arg1: i32) -> (i32, i32, i32) {
    %c0_i32 = arith.constant 0 : i32
    %c0_i32_0 = arith.constant 0 : i32
    %c0_i32_1 = arith.constant 0 : i32
    return %arg1, %c0_i32, %c0_i32_0 : i32, i32, i32
  }
  func.func @transform_8(%arg0: i32, %arg1: i32) -> (i32, i32, i32) {
    %c0_i32 = arith.constant 0 : i32
    %c0_i32_0 = arith.constant 0 : i32
    %c0_i32_1 = arith.constant 0 : i32
    return %arg1, %c0_i32, %c0_i32_0 : i32, i32, i32
  }
  func.func @transform_9(%arg0: i32, %arg1: i32) -> (i32, i32, i32) {
    %c0_i32 = arith.constant 0 : i32
    %c0_i32_0 = arith.constant 0 : i32
    %c0_i32_1 = arith.constant 0 : i32
    return %arg1, %c0_i32, %c0_i32_0 : i32, i32, i32
  }
  func.func @transform_10(%arg0: i32, %arg1: i32) -> (i32, i32, i32) {
    %c0_i32 = arith.constant 0 : i32
    %c0_i32_0 = arith.constant 0 : i32
    %c0_i32_1 = arith.constant 0 : i32
    return %arg1, %c0_i32, %c0_i32_0 : i32, i32, i32
  }
  func.func @transform_11(%arg0: i32, %arg1: i32) -> (i32, i32, i32) {
    %c0_i32 = arith.constant 0 : i32
    %c0_i32_0 = arith.constant 0 : i32
    %c0_i32_1 = arith.constant 0 : i32
    return %arg1, %c0_i32, %c0_i32_0 : i32, i32, i32
  }
  func.func @transform_12(%arg0: i32, %arg1: i32) -> (i32, i32, i32) {
    %c0_i32 = arith.constant 0 : i32
    %c0_i32_0 = arith.constant 0 : i32
    %c0_i32_1 = arith.constant 0 : i32
    return %arg1, %c0_i32, %c0_i32_0 : i32, i32, i32
  }
  func.func @transform_13(%arg0: i32, %arg1: i32) -> (i32, i32, i32) {
    %c0_i32 = arith.constant 0 : i32
    %c0_i32_0 = arith.constant 0 : i32
    %c0_i32_1 = arith.constant 0 : i32
    return %arg1, %c0_i32, %c0_i32_0 : i32, i32, i32
  }
  func.func @transform_14(%arg0: i32, %arg1: i32) -> (i32, i32, i32) {
    %c0_i32 = arith.constant 0 : i32
    %c0_i32_0 = arith.constant 0 : i32
    %c0_i32_1 = arith.constant 0 : i32
    return %arg1, %c0_i32, %c0_i32_0 : i32, i32, i32
  }
  func.func @transform_15(%arg0: i32, %arg1: i32) -> (i32, i32, i32) {
    %c0_i32 = arith.constant 0 : i32
    %c0_i32_0 = arith.constant 0 : i32
    %c0_i32_1 = arith.constant 0 : i32
    return %arg1, %c0_i32, %c0_i32_0 : i32, i32, i32
  }
  func.func @transform_16(%arg0: i32, %arg1: i32) -> (i32, i32) {
    %c0_i32 = arith.constant 0 : i32
    %c0_i32_0 = arith.constant 0 : i32
    %c0_i32_1 = arith.constant 0 : i32
    return %c0_i32, %c0_i32_0 : i32, i32
  }
  func.func @transform_17(%arg0: i32, %arg1: i32) -> (i32, i32) {
    %c0_i32 = arith.constant 0 : i32
    %c0_i32_0 = arith.constant 0 : i32
    %c0_i32_1 = arith.constant 0 : i32
    return %c0_i32, %c0_i32_0 : i32, i32
  }
  func.func @transform_18(%arg0: i32, %arg1: i32) -> (i32, i32) {
    %c0_i32 = arith.constant 0 : i32
    %c0_i32_0 = arith.constant 0 : i32
    %c0_i32_1 = arith.constant 0 : i32
    return %c0_i32, %c0_i32_0 : i32, i32
  }
  func.func @transform_19(%arg0: i32, %arg1: i32) -> (i32, i32) {
    %c0_i32 = arith.constant 0 : i32
    %c0_i32_0 = arith.constant 0 : i32
    %c0_i32_1 = arith.constant 0 : i32
    return %c0_i32, %c0_i32_0 : i32, i32
  }
  func.func @transform_20(%arg0: i32, %arg1: i32) -> (i32, i32, i32) {
    %c0_i32 = arith.constant 0 : i32
    %c0_i32_0 = arith.constant 0 : i32
    %c0_i32_1 = arith.constant 0 : i32
    return %arg0, %c0_i32, %c0_i32_0 : i32, i32, i32
  }
  func.func @transform_21(%arg0: i32, %arg1: i32) -> (i32, i32, i32) {
    %c0_i32 = arith.constant 0 : i32
    %c0_i32_0 = arith.constant 0 : i32
    %c0_i32_1 = arith.constant 0 : i32
    return %arg0, %c0_i32, %c0_i32_0 : i32, i32, i32
  }
}

</mosaic_0001>

<llo_original>
// kernel: vit_forward.1
$region0: #{vit_forward.1}
  #allocation0 [shape = 'u32[]', space=smem, size = 0x4, offset = 0x4, fixed_abs, tag = 'smem constant byte address 0x4 - core index']
  #allocation1 [shape = 'u32[144,128]{1,0:T(1,128)}', space=vmem, size = 0x12000, scoped, tag = 'internal scratch']
  #allocation2 [shape = 'f32[2,32,128]{2,1,0:T(8,128)}', space=vmem, size = 0x8000, scoped, tag = 'scratch operand']
  %s0 = inlined_call_operand.vmem [shape: f32[2,16,128], index: 0, kind: input, shape index: {}]
  %s1 = inlined_call_operand.vmem [shape: bf16[128,128], index: 1, kind: input, shape index: {}]
  %s2 = inlined_call_operand.vmem [shape: f32[1,128], index: 2, kind: input, shape index: {}]
  %s3 = inlined_call_operand.vmem [shape: f32[1,1,128], index: 3, kind: input, shape index: {}]
  %s4 = inlined_call_operand.vmem [shape: f32[1,32,128], index: 4, kind: input, shape index: {}]
  %s5 = inlined_call_operand.vmem [shape: f32[2,1,128], index: 5, kind: input, shape index: {}]
  %s6 = inlined_call_operand.vmem [shape: f32[2,1,128], index: 6, kind: input, shape index: {}]
  %s7 = inlined_call_operand.vmem [shape: bf16[2,128,384], index: 7, kind: input, shape index: {}]
  %s8 = inlined_call_operand.vmem [shape: bf16[2,128,128], index: 8, kind: input, shape index: {}]
  %s9 = inlined_call_operand.vmem [shape: f32[2,1,128], index: 9, kind: input, shape index: {}]
  %s10 = inlined_call_operand.vmem [shape: f32[2,1,128], index: 10, kind: input, shape index: {}]
  %s11 = inlined_call_operand.vmem [shape: f32[2,1,128], index: 11, kind: input, shape index: {}]
  %s12 = inlined_call_operand.vmem [shape: bf16[2,128,256], index: 12, kind: input, shape index: {}]
  %s13 = inlined_call_operand.vmem [shape: f32[2,1,256], index: 13, kind: input, shape index: {}]
  %s14 = inlined_call_operand.vmem [shape: bf16[2,256,128], index: 14, kind: input, shape index: {}]
  %s15 = inlined_call_operand.vmem [shape: f32[2,1,128], index: 15, kind: input, shape index: {}]
  %s16 = inlined_call_operand.vmem [shape: f32[1,128], index: 16, kind: input, shape index: {}]
  %s17 = inlined_call_operand.vmem [shape: f32[1,128], index: 17, kind: input, shape index: {}]
  %s18 = inlined_call_operand.vmem [shape: bf16[128,128], index: 18, kind: input, shape index: {}]
  %s19 = inlined_call_operand.vmem [shape: f32[1,128], index: 19, kind: input, shape index: {}]
  %s20 = inlined_call_operand.hbm [shape: f32[2,1,128], index: 20, kind: output, shape index: {0}]
  %s21 = inlined_call_operand.hbm [shape: f32[2,1,128], index: 21, kind: output, shape index: {1}]
  %22 = xla_tuple %s20, %s21
  %s23 = sld [smem:[#allocation0]]
  $region129: #{vit_forward.1} parent=0
    _
  %s25 = ssub.s32 1, %s23
  %s26 = scalar_select 0, %s25, %s23
  $region1: #{vit_forward.1} parent=0
    #allocation3 [shape = 'u8[1024]{0}', space=vmem, size = 0x400, scoped, tag = 'output window, operand 0, single buffered']
    #allocation4 [shape = 's32[2]{0}', space=sflag, size = 0x8, scoped, tag = 'scoped memory for vit_forward.1']
    #allocation5 [shape = 'u8[1024]{0}', space=vmem, size = 0x400, scoped, tag = 'output window, operand 1, single buffered']
    #allocation6 [shape = 's32[1]{0}', space=sflag, size = 0x4, scoped, tag = 'scoped memory for vit_forward.1']
    %27 = vsyncpa [#allocation4], 0
    %28 = vsyncpa [#allocation6], 0
    loop: start=0, step=1, limit=4
    $region2: #{vit_forward.1} parent=1 // loop_pre_header
      _
    $region3: #{vit_forward.1} parent=1 // loop_header
      %s30 = sphi 0, %s34
      %p31 = scmp.ge.s32.totalorder %s30, 4
      %s37 = sphi 0, %s49
      %s38 = sphi 0, %s45
      %s39 = sphi 0, %s37
      %s40 = sphi 0, %s38
      %s41 = sphi 0, %s39
      %s42 = sphi 0, %s40
      %s52 = sphi 0, %s54
      %s55 = sphi 0, %s52
      %s56 = sphi 0, %s55
      %s72 = sphi 0, %s56
      %s76 = sphi 0, %s76
      %s78 = sphi 0, %s76
      %s79 = sphi 0, %s78
      %s93 = sphi 0, %s79
      %s97 = sphi 0, %s97
      %s99 = sphi 0, %s97
      %s100 = sphi 0, %s99
      %s114 = sphi 0, %s100
      %s118 = sphi 0, %s118
      %s120 = sphi 0, %s118
      %s121 = sphi 0, %s120
      %s135 = sphi 0, %s121
      %s139 = sphi 0, %s139
      %s141 = sphi 0, %s139
      %s142 = sphi 0, %s141
      %s156 = sphi 0, %s142
      %s162 = sphi 0, %s164
      %s165 = sphi 0, %s162
      %s166 = sphi 0, %s165
      %s182 = sphi 0, %s166
      %s188 = sphi 0, %s190
      %s191 = sphi 0, %s188
      %s192 = sphi 0, %s191
      %s208 = sphi 0, %s192
      %s214 = sphi 0, %s216
      %s217 = sphi 0, %s214
      %s218 = sphi 0, %s217
      %s234 = sphi 0, %s218
      %s240 = sphi 0, %s242
      %s243 = sphi 0, %s240
      %s244 = sphi 0, %s243
      %s260 = sphi 0, %s244
      %s266 = sphi 0, %s268
      %s269 = sphi 0, %s266
      %s270 = sphi 0, %s269
      %s286 = sphi 0, %s270
      %s292 = sphi 0, %s294
      %s295 = sphi 0, %s292
      %s296 = sphi 0, %s295
      %s312 = sphi 0, %s296
      %s318 = sphi 0, %s320
      %s321 = sphi 0, %s318
      %s322 = sphi 0, %s321
      %s338 = sphi 0, %s322
      %s344 = sphi 0, %s346
      %s347 = sphi 0, %s344
      %s348 = sphi 0, %s347
      %s364 = sphi 0, %s348
      %s370 = sphi 0, %s372
      %s373 = sphi 0, %s370
      %s374 = sphi 0, %s373
      %s390 = sphi 0, %s374
      %s396 = sphi 0, %s398
      %s399 = sphi 0, %s396
      %s400 = sphi 0, %s399
      %s416 = sphi 0, %s400
      %s422 = sphi 0, %s424
      %s425 = sphi 0, %s422
      %s426 = sphi 0, %s425
      %s442 = sphi 0, %s426
      %s446 = sphi 0, %s446
      %s448 = sphi 0, %s446
      %s449 = sphi 0, %s448
      %s463 = sphi 0, %s449
      %s467 = sphi 0, %s467
      %s469 = sphi 0, %s467
      %s470 = sphi 0, %s469
      %s484 = sphi 0, %s470
      %s488 = sphi 0, %s488
      %s490 = sphi 0, %s488
      %s491 = sphi 0, %s490
      %s505 = sphi 0, %s491
      %s509 = sphi 0, %s509
      %s511 = sphi 0, %s509
      %s512 = sphi 0, %s511
      %s526 = sphi 0, %s512
      %s532 = sphi 0, %s534
      %s535 = sphi 0, %s532
      %s536 = sphi 0, %s535
      %s552 = sphi 0, %s536
      %s558 = sphi 0, %s560
      %s561 = sphi 0, %s558
      %s562 = sphi 0, %s561
      %s578 = sphi 0, %s562
    $region4: #{vit_forward.1} parent=1 // loop_header_branch
      %33 = sbr.rel (%p31) target = $region8
    $region5: #{vit_forward.1} parent=1 // loop_body
      %s35 = ssub.s32 %s30, 1
      %s36 = ssub.s32 %s30, 2
      %s43 = sadd.s32 1, %s38
      %p44 = scmp.ge.s32.totalorder %s43, 2
      %s45 = scalar_select %p44, 0, %s43
      %s46 = sadd.s32 1, %s37
      %s47 = scalar_select %p44, %s46, %s37
      %p48 = scmp.ge.s32.totalorder %s47, 1
      %s49 = scalar_select %p48, 0, %s47
      %s50 = ssub.s32 %s37, %s49
      %p51 = scmp.eq.s32.totalorder %s50, 0
      %s53 = sadd.s32 %s52, 1
      %s54 = scalar_select %p51, %s52, %s53
      %p57 = pneg %p51
      %p58 = scmp.eq.s32.totalorder %s30, 1
      %p59 = por %p57, %p58
      %p60 = scmp.ne.s32.totalorder %s52, %s55
      %p61 = scmp.eq.s32.totalorder %s30, 0
      %p62 = por %p60, %p61
      %p63 = scmp.ne.s32.totalorder %s52, %s55
      %p64 = scmp.eq.s32.totalorder %s35, 1
      %p65 = por %p63, %p64
      %p66 = scmp.ne.s32.totalorder %s55, %s56
      %p67 = scmp.eq.s32.totalorder %s35, 0
      %p68 = por %p66, %p67
      %p69 = scmp.ne.s32.totalorder %s55, %s56
      %p70 = scmp.eq.s32.totalorder %s36, 1
      %p71 = por %p69, %p70
      %p73 = scmp.ne.s32.totalorder %s56, %s72
      %p74 = scmp.eq.s32.totalorder %s36, 0
      %p75 = por %p73, %p74
      %s77 = sadd.s32 %s76, 1
      %p80 = scmp.eq.s32.totalorder %s30, 1
      %p81 = scmp.ne.s32.totalorder %s76, %s78
      %p82 = scmp.eq.s32.totalorder %s30, 0
      %p83 = por %p81, %p82
      %p84 = scmp.ne.s32.totalorder %s76, %s78
      %p85 = scmp.eq.s32.totalorder %s35, 1
      %p86 = por %p84, %p85
      %p87 = scmp.ne.s32.totalorder %s78, %s79
      %p88 = scmp.eq.s32.totalorder %s35, 0
      %p89 = por %p87, %p88
      %p90 = scmp.ne.s32.totalorder %s78, %s79
      %p91 = scmp.eq.s32.totalorder %s36, 1
      %p92 = por %p90, %p91
      %p94 = scmp.ne.s32.totalorder %s79, %s93
      %p95 = scmp.eq.s32.totalorder %s36, 0
      %p96 = por %p94, %p95
      %s98 = sadd.s32 %s97, 1
      %p101 = scmp.eq.s32.totalorder %s30, 1
      %p102 = scmp.ne.s32.totalorder %s97, %s99
      %p103 = scmp.eq.s32.totalorder %s30, 0
      %p104 = por %p102, %p103
      %p105 = scmp.ne.s32.totalorder %s97, %s99
      %p106 = scmp.eq.s32.totalorder %s35, 1
      %p107 = por %p105, %p106
      %p108 = scmp.ne.s32.totalorder %s99, %s100
      %p109 = scmp.eq.s32.totalorder %s35, 0
      %p110 = por %p108, %p109
      %p111 = scmp.ne.s32.totalorder %s99, %s100
      %p112 = scmp.eq.s32.totalorder %s36, 1
      %p113 = por %p111, %p112
      %p115 = scmp.ne.s32.totalorder %s100, %s114
      %p116 = scmp.eq.s32.totalorder %s36, 0
      %p117 = por %p115, %p116
      %s119 = sadd.s32 %s118, 1
      %p122 = scmp.eq.s32.totalorder %s30, 1
      %p123 = scmp.ne.s32.totalorder %s118, %s120
      %p124 = scmp.eq.s32.totalorder %s30, 0
      %p125 = por %p123, %p124
      %p126 = scmp.ne.s32.totalorder %s118, %s120
      %p127 = scmp.eq.s32.totalorder %s35, 1
      %p128 = por %p126, %p127
      %p129 = scmp.ne.s32.totalorder %s120, %s121
      %p130 = scmp.eq.s32.totalorder %s35, 0
      %p131 = por %p129, %p130
      %p132 = scmp.ne.s32.totalorder %s120, %s121
      %p133 = scmp.eq.s32.totalorder %s36, 1
      %p134 = por %p132, %p133
      %p136 = scmp.ne.s32.totalorder %s121, %s135
      %p137 = scmp.eq.s32.totalorder %s36, 0
      %p138 = por %p136, %p137
      %s140 = sadd.s32 %s139, 1
      %p143 = scmp.eq.s32.totalorder %s30, 1
      %p144 = scmp.ne.s32.totalorder %s139, %s141
      %p145 = scmp.eq.s32.totalorder %s30, 0
      %p146 = por %p144, %p145
      %p147 = scmp.ne.s32.totalorder %s139, %s141
      %p148 = scmp.eq.s32.totalorder %s35, 1
      %p149 = por %p147, %p148
      %p150 = scmp.ne.s32.totalorder %s141, %s142
      %p151 = scmp.eq.s32.totalorder %s35, 0
      %p152 = por %p150, %p151
      %p153 = scmp.ne.s32.totalorder %s141, %s142
      %p154 = scmp.eq.s32.totalorder %s36, 1
      %p155 = por %p153, %p154
      %p157 = scmp.ne.s32.totalorder %s142, %s156
      %p158 = scmp.eq.s32.totalorder %s36, 0
      %p159 = por %p157, %p158
      %s160 = ssub.s32 %s38, %s45
      %p161 = scmp.eq.s32.totalorder %s160, 0
      %s163 = sadd.s32 %s162, 1
      %s164 = scalar_select %p161, %s162, %s163
      %p167 = pneg %p161
      %p168 = scmp.eq.s32.totalorder %s30, 1
      %p169 = por %p167, %p168
      %p170 = scmp.ne.s32.totalorder %s162, %s165
      %p171 = scmp.eq.s32.totalorder %s30, 0
      %p172 = por %p170, %p171
      %p173 = scmp.ne.s32.totalorder %s162, %s165
      %p174 = scmp.eq.s32.totalorder %s35, 1
      %p175 = por %p173, %p174
      %p176 = scmp.ne.s32.totalorder %s165, %s166
      %p177 = scmp.eq.s32.totalorder %s35, 0
      %p178 = por %p176, %p177
      %p179 = scmp.ne.s32.totalorder %s165, %s166
      %p180 = scmp.eq.s32.totalorder %s36, 1
      %p181 = por %p179, %p180
      %p183 = scmp.ne.s32.totalorder %s166, %s182
      %p184 = scmp.eq.s32.totalorder %s36, 0
      %p185 = por %p183, %p184
      %s186 = ssub.s32 %s38, %s45
      %p187 = scmp.eq.s32.totalorder %s186, 0
      %s189 = sadd.s32 %s188, 1
      %s190 = scalar_select %p187, %s188, %s189
      %p193 = pneg %p187
      %p194 = scmp.eq.s32.totalorder %s30, 1
      %p195 = por %p193, %p194
      %p196 = scmp.ne.s32.totalorder %s188, %s191
      %p197 = scmp.eq.s32.totalorder %s30, 0
      %p198 = por %p196, %p197
      %p199 = scmp.ne.s32.totalorder %s188, %s191
      %p200 = scmp.eq.s32.totalorder %s35, 1
      %p201 = por %p199, %p200
      %p202 = scmp.ne.s32.totalorder %s191, %s192
      %p203 = scmp.eq.s32.totalorder %s35, 0
      %p204 = por %p202, %p203
      %p205 = scmp.ne.s32.totalorder %s191, %s192
      %p206 = scmp.eq.s32.totalorder %s36, 1
      %p207 = por %p205, %p206
      %p209 = scmp.ne.s32.totalorder %s192, %s208
      %p210 = scmp.eq.s32.totalorder %s36, 0
      %p211 = por %p209, %p210
      %s212 = ssub.s32 %s38, %s45
      %p213 = scmp.eq.s32.totalorder %s212, 0
      %s215 = sadd.s32 %s214, 1
      %s216 = scalar_select %p213, %s214, %s215
      %p219 = pneg %p213
      %p220 = scmp.eq.s32.totalorder %s30, 1
      %p221 = por %p219, %p220
      %p222 = scmp.ne.s32.totalorder %s214, %s217
      %p223 = scmp.eq.s32.totalorder %s30, 0
      %p224 = por %p222, %p223
      %p225 = scmp.ne.s32.totalorder %s214, %s217
      %p226 = scmp.eq.s32.totalorder %s35, 1
      %p227 = por %p225, %p226
      %p228 = scmp.ne.s32.totalorder %s217, %s218
      %p229 = scmp.eq.s32.totalorder %s35, 0
      %p230 = por %p228, %p229
      %p231 = scmp.ne.s32.totalorder %s217, %s218
      %p232 = scmp.eq.s32.totalorder %s36, 1
      %p233 = por %p231, %p232
      %p235 = scmp.ne.s32.totalorder %s218, %s234
      %p236 = scmp.eq.s32.totalorder %s36, 0
      %p237 = por %p235, %p236
      %s238 = ssub.s32 %s38, %s45
      %p239 = scmp.eq.s32.totalorder %s238, 0
      %s241 = sadd.s32 %s240, 1
      %s242 = scalar_select %p239, %s240, %s241
      %p245 = pneg %p239
      %p246 = scmp.eq.s32.totalorder %s30, 1
      %p247 = por %p245, %p246
      %p248 = scmp.ne.s32.totalorder %s240, %s243
      %p249 = scmp.eq.s32.totalorder %s30, 0
      %p250 = por %p248, %p249
      %p251 = scmp.ne.s32.totalorder %s240, %s243
      %p252 = scmp.eq.s32.totalorder %s35, 1
      %p253 = por %p251, %p252
      %p254 = scmp.ne.s32.totalorder %s243, %s244
      %p255 = scmp.eq.s32.totalorder %s35, 0
      %p256 = por %p254, %p255
      %p257 = scmp.ne.s32.totalorder %s243, %s244
      %p258 = scmp.eq.s32.totalorder %s36, 1
      %p259 = por %p257, %p258
      %p261 = scmp.ne.s32.totalorder %s244, %s260
      %p262 = scmp.eq.s32.totalorder %s36, 0
      %p263 = por %p261, %p262
      %s264 = ssub.s32 %s38, %s45
      %p265 = scmp.eq.s32.totalorder %s264, 0
      %s267 = sadd.s32 %s266, 1
      %s268 = scalar_select %p265, %s266, %s267
      %p271 = pneg %p265
      %p272 = scmp.eq.s32.totalorder %s30, 1
      %p273 = por %p271, %p272
      %p274 = scmp.ne.s32.totalorder %s266, %s269
      %p275 = scmp.eq.s32.totalorder %s30, 0
      %p276 = por %p274, %p275
      %p277 = scmp.ne.s32.totalorder %s266, %s269
      %p278 = scmp.eq.s32.totalorder %s35, 1
      %p279 = por %p277, %p278
      %p280 = scmp.ne.s32.totalorder %s269, %s270
      %p281 = scmp.eq.s32.totalorder %s35, 0
      %p282 = por %p280, %p281
      %p283 = scmp.ne.s32.totalorder %s269, %s270
      %p284 = scmp.eq.s32.totalorder %s36, 1
      %p285 = por %p283, %p284
      %p287 = scmp.ne.s32.totalorder %s270, %s286
      %p288 = scmp.eq.s32.totalorder %s36, 0
      %p289 = por %p287, %p288
      %s290 = ssub.s32 %s38, %s45
      %p291 = scmp.eq.s32.totalorder %s290, 0
      %s293 = sadd.s32 %s292, 1
      %s294 = scalar_select %p291, %s292, %s293
      %p297 = pneg %p291
      %p298 = scmp.eq.s32.totalorder %s30, 1
      %p299 = por %p297, %p298
      %p300 = scmp.ne.s32.totalorder %s292, %s295
      %p301 = scmp.eq.s32.totalorder %s30, 0
      %p302 = por %p300, %p301
      %p303 = scmp.ne.s32.totalorder %s292, %s295
      %p304 = scmp.eq.s32.totalorder %s35, 1
      %p305 = por %p303, %p304
      %p306 = scmp.ne.s32.totalorder %s295, %s296
      %p307 = scmp.eq.s32.totalorder %s35, 0
      %p308 = por %p306, %p307
      %p309 = scmp.ne.s32.totalorder %s295, %s296
      %p310 = scmp.eq.s32.totalorder %s36, 1
      %p311 = por %p309, %p310
      %p313 = scmp.ne.s32.totalorder %s296, %s312
      %p314 = scmp.eq.s32.totalorder %s36, 0
      %p315 = por %p313, %p314
      %s316 = ssub.s32 %s38, %s45
      %p317 = scmp.eq.s32.totalorder %s316, 0
      %s319 = sadd.s32 %s318, 1
      %s320 = scalar_select %p317, %s318, %s319
      %p323 = pneg %p317
      %p324 = scmp.eq.s32.totalorder %s30, 1
      %p325 = por %p323, %p324
      %p326 = scmp.ne.s32.totalorder %s318, %s321
      %p327 = scmp.eq.s32.totalorder %s30, 0
      %p328 = por %p326, %p327
      %p329 = scmp.ne.s32.totalorder %s318, %s321
      %p330 = scmp.eq.s32.totalorder %s35, 1
      %p331 = por %p329, %p330
      %p332 = scmp.ne.s32.totalorder %s321, %s322
      %p333 = scmp.eq.s32.totalorder %s35, 0
      %p334 = por %p332, %p333
      %p335 = scmp.ne.s32.totalorder %s321, %s322
      %p336 = scmp.eq.s32.totalorder %s36, 1
      %p337 = por %p335, %p336
      %p339 = scmp.ne.s32.totalorder %s322, %s338
      %p340 = scmp.eq.s32.totalorder %s36, 0
      %p341 = por %p339, %p340
      %s342 = ssub.s32 %s38, %s45
      %p343 = scmp.eq.s32.totalorder %s342, 0
      %s345 = sadd.s32 %s344, 1
      %s346 = scalar_select %p343, %s344, %s345
      %p349 = pneg %p343
      %p350 = scmp.eq.s32.totalorder %s30, 1
      %p351 = por %p349, %p350
      %p352 = scmp.ne.s32.totalorder %s344, %s347
      %p353 = scmp.eq.s32.totalorder %s30, 0
      %p354 = por %p352, %p353
      %p355 = scmp.ne.s32.totalorder %s344, %s347
      %p356 = scmp.eq.s32.totalorder %s35, 1
      %p357 = por %p355, %p356
      %p358 = scmp.ne.s32.totalorder %s347, %s348
      %p359 = scmp.eq.s32.totalorder %s35, 0
      %p360 = por %p358, %p359
      %p361 = scmp.ne.s32.totalorder %s347, %s348
      %p362 = scmp.eq.s32.totalorder %s36, 1
      %p363 = por %p361, %p362
      %p365 = scmp.ne.s32.totalorder %s348, %s364
      %p366 = scmp.eq.s32.totalorder %s36, 0
      %p367 = por %p365, %p366
      %s368 = ssub.s32 %s38, %s45
      %p369 = scmp.eq.s32.totalorder %s368, 0
      %s371 = sadd.s32 %s370, 1
      %s372 = scalar_select %p369, %s370, %s371
      %p375 = pneg %p369
      %p376 = scmp.eq.s32.totalorder %s30, 1
      %p377 = por %p375, %p376
      %p378 = scmp.ne.s32.totalorder %s370, %s373
      %p379 = scmp.eq.s32.totalorder %s30, 0
      %p380 = por %p378, %p379
      %p381 = scmp.ne.s32.totalorder %s370, %s373
      %p382 = scmp.eq.s32.totalorder %s35, 1
      %p383 = por %p381, %p382
      %p384 = scmp.ne.s32.totalorder %s373, %s374
      %p385 = scmp.eq.s32.totalorder %s35, 0
      %p386 = por %p384, %p385
      %p387 = scmp.ne.s32.totalorder %s373, %s374
      %p388 = scmp.eq.s32.totalorder %s36, 1
      %p389 = por %p387, %p388
      %p391 = scmp.ne.s32.totalorder %s374, %s390
      %p392 = scmp.eq.s32.totalorder %s36, 0
      %p393 = por %p391, %p392
      %s394 = ssub.s32 %s38, %s45
      %p395 = scmp.eq.s32.totalorder %s394, 0
      %s397 = sadd.s32 %s396, 1
      %s398 = scalar_select %p395, %s396, %s397
      %p401 = pneg %p395
      %p402 = scmp.eq.s32.totalorder %s30, 1
      %p403 = por %p401, %p402
      %p404 = scmp.ne.s32.totalorder %s396, %s399
      %p405 = scmp.eq.s32.totalorder %s30, 0
      %p406 = por %p404, %p405
      %p407 = scmp.ne.s32.totalorder %s396, %s399
      %p408 = scmp.eq.s32.totalorder %s35, 1
      %p409 = por %p407, %p408
      %p410 = scmp.ne.s32.totalorder %s399, %s400
      %p411 = scmp.eq.s32.totalorder %s35, 0
      %p412 = por %p410, %p411
      %p413 = scmp.ne.s32.totalorder %s399, %s400
      %p414 = scmp.eq.s32.totalorder %s36, 1
      %p415 = por %p413, %p414
      %p417 = scmp.ne.s32.totalorder %s400, %s416
      %p418 = scmp.eq.s32.totalorder %s36, 0
      %p419 = por %p417, %p418
      %s420 = ssub.s32 %s38, %s45
      %p421 = scmp.eq.s32.totalorder %s420, 0
      %s423 = sadd.s32 %s422, 1
      %s424 = scalar_select %p421, %s422, %s423
      %p427 = pneg %p421
      %p428 = scmp.eq.s32.totalorder %s30, 1
      %p429 = por %p427, %p428
      %p430 = scmp.ne.s32.totalorder %s422, %s425
      %p431 = scmp.eq.s32.totalorder %s30, 0
      %p432 = por %p430, %p431
      %p433 = scmp.ne.s32.totalorder %s422, %s425
      %p434 = scmp.eq.s32.totalorder %s35, 1
      %p435 = por %p433, %p434
      %p436 = scmp.ne.s32.totalorder %s425, %s426
      %p437 = scmp.eq.s32.totalorder %s35, 0
      %p438 = por %p436, %p437
      %p439 = scmp.ne.s32.totalorder %s425, %s426
      %p440 = scmp.eq.s32.totalorder %s36, 1
      %p441 = por %p439, %p440
      %p443 = scmp.ne.s32.totalorder %s426, %s442
      %p444 = scmp.eq.s32.totalorder %s36, 0
      %p445 = por %p443, %p444
      %s447 = sadd.s32 %s446, 1
      %p450 = scmp.eq.s32.totalorder %s30, 1
      %p451 = scmp.ne.s32.totalorder %s446, %s448
      %p452 = scmp.eq.s32.totalorder %s30, 0
      %p453 = por %p451, %p452
      %p454 = scmp.ne.s32.totalorder %s446, %s448
      %p455 = scmp.eq.s32.totalorder %s35, 1
      %p456 = por %p454, %p455
      %p457 = scmp.ne.s32.totalorder %s448, %s449
      %p458 = scmp.eq.s32.totalorder %s35, 0
      %p459 = por %p457, %p458
      %p460 = scmp.ne.s32.totalorder %s448, %s449
      %p461 = scmp.eq.s32.totalorder %s36, 1
      %p462 = por %p460, %p461
      %p464 = scmp.ne.s32.totalorder %s449, %s463
      %p465 = scmp.eq.s32.totalorder %s36, 0
      %p466 = por %p464, %p465
      %s468 = sadd.s32 %s467, 1
      %p471 = scmp.eq.s32.totalorder %s30, 1
      %p472 = scmp.ne.s32.totalorder %s467, %s469
      %p473 = scmp.eq.s32.totalorder %s30, 0
      %p474 = por %p472, %p473
      %p475 = scmp.ne.s32.totalorder %s467, %s469
      %p476 = scmp.eq.s32.totalorder %s35, 1
      %p477 = por %p475, %p476
      %p478 = scmp.ne.s32.totalorder %s469, %s470
      %p479 = scmp.eq.s32.totalorder %s35, 0
      %p480 = por %p478, %p479
      %p481 = scmp.ne.s32.totalorder %s469, %s470
      %p482 = scmp.eq.s32.totalorder %s36, 1
      %p483 = por %p481, %p482
      %p485 = scmp.ne.s32.totalorder %s470, %s484
      %p486 = scmp.eq.s32.totalorder %s36, 0
      %p487 = por %p485, %p486
      %s489 = sadd.s32 %s488, 1
      %p492 = scmp.eq.s32.totalorder %s30, 1
      %p493 = scmp.ne.s32.totalorder %s488, %s490
      %p494 = scmp.eq.s32.totalorder %s30, 0
      %p495 = por %p493, %p494
      %p496 = scmp.ne.s32.totalorder %s488, %s490
      %p497 = scmp.eq.s32.totalorder %s35, 1
      %p498 = por %p496, %p497
      %p499 = scmp.ne.s32.totalorder %s490, %s491
      %p500 = scmp.eq.s32.totalorder %s35, 0
      %p501 = por %p499, %p500
      %p502 = scmp.ne.s32.totalorder %s490, %s491
      %p503 = scmp.eq.s32.totalorder %s36, 1
      %p504 = por %p502, %p503
      %p506 = scmp.ne.s32.totalorder %s491, %s505
      %p507 = scmp.eq.s32.totalorder %s36, 0
      %p508 = por %p506, %p507
      %s510 = sadd.s32 %s509, 1
      %p513 = scmp.eq.s32.totalorder %s30, 1
      %p514 = scmp.ne.s32.totalorder %s509, %s511
      %p515 = scmp.eq.s32.totalorder %s30, 0
      %p516 = por %p514, %p515
      %p517 = scmp.ne.s32.totalorder %s509, %s511
      %p518 = scmp.eq.s32.totalorder %s35, 1
      %p519 = por %p517, %p518
      %p520 = scmp.ne.s32.totalorder %s511, %s512
      %p521 = scmp.eq.s32.totalorder %s35, 0
      %p522 = por %p520, %p521
      %p523 = scmp.ne.s32.totalorder %s511, %s512
      %p524 = scmp.eq.s32.totalorder %s36, 1
      %p525 = por %p523, %p524
      %p527 = scmp.ne.s32.totalorder %s512, %s526
      %p528 = scmp.eq.s32.totalorder %s36, 0
      %p529 = por %p527, %p528
      %s530 = ssub.s32 %s37, %s49
      %p531 = scmp.eq.s32.totalorder %s530, 0
      %s533 = sadd.s32 %s532, 1
      %s534 = scalar_select %p531, %s532, %s533
      %p537 = pneg %p531
      %p538 = scmp.eq.s32.totalorder %s30, 1
      %p539 = por %p537, %p538
      %p540 = scmp.ne.s32.totalorder %s532, %s535
      %p541 = scmp.eq.s32.totalorder %s30, 0
      %p542 = por %p540, %p541
      %p543 = scmp.ne.s32.totalorder %s532, %s535
      %p544 = scmp.eq.s32.totalorder %s35, 1
      %p545 = por %p543, %p544
      %p546 = scmp.ne.s32.totalorder %s535, %s536
      %p547 = scmp.eq.s32.totalorder %s35, 0
      %p548 = por %p546, %p547
      %p549 = scmp.ne.s32.totalorder %s535, %s536
      %p550 = scmp.eq.s32.totalorder %s36, 1
      %p551 = por %p549, %p550
      %p553 = scmp.ne.s32.totalorder %s536, %s552
      %p554 = scmp.eq.s32.totalorder %s36, 0
      %p555 = por %p553, %p554
      %s556 = ssub.s32 %s37, %s49
      %p557 = scmp.eq.s32.totalorder %s556, 0
      %s559 = sadd.s32 %s558, 1
      %s560 = scalar_select %p557, %s558, %s559
      %p563 = pneg %p557
      %p564 = scmp.eq.s32.totalorder %s30, 1
      %p565 = por %p563, %p564
      %p566 = scmp.ne.s32.totalorder %s558, %s561
      %p567 = scmp.eq.s32.totalorder %s30, 0
      %p568 = por %p566, %p567
      %p569 = scmp.ne.s32.totalorder %s558, %s561
      %p570 = scmp.eq.s32.totalorder %s35, 1
      %p571 = por %p569, %p570
      %p572 = scmp.ne.s32.totalorder %s561, %s562
      %p573 = scmp.eq.s32.totalorder %s35, 0
      %p574 = por %p572, %p573
      %p575 = scmp.ne.s32.totalorder %s561, %s562
      %p576 = scmp.eq.s32.totalorder %s36, 1
      %p577 = por %p575, %p576
      %p579 = scmp.ne.s32.totalorder %s562, %s578
      %p580 = scmp.eq.s32.totalorder %s36, 0
      %p581 = por %p579, %p580
      %p582 = scmp.le.s32.totalorder 1, %s30
      %p583 = scmp.lt.s32.totalorder %s30, 3
      %p584 = pnand %p582, %p583
      %p585 = pneg %p584
      // Predicated region
      $region9: #{vit_forward.1} parent=5 // pred_check
        _
      $region10: #{vit_forward.1} parent=5 // pred_check_branch
        %587 = sbr.rel (%p584) target = $region12
      $region11: #{vit_forward.1} parent=5 // pred_region
        %s588 = ssub.s32 %s30, 1
        // Predicated region
        $region13: #{vit_forward.1} parent=11 // pred_check
          %p589 = pneg %p68
        $region14: #{vit_forward.1} parent=11 // pred_check_branch
          %591 = sbr.rel (%p589) target = $region16
        $region15: #{vit_forward.1} parent=11 // pred_region
          %s592 = smul.u32 2, %s39
          %p593 = scmp.lt.s32.totalorder %s592, 1
          %s594 = scalar_select %p593, %s592, 1
          %s595 = smul.addr %s594, 2
          %s596 = smul.addr %s595, 8
          %s597 = scalar_lea.vmem %s0, %s596
          %s598 = smul.u32 2, %s39
        $region16: #{vit_forward.1} parent=11 // pred_fallthru
          _
        // Predicated region
        $region17: #{vit_forward.1} parent=11 // pred_check
          %p599 = pneg %p89
        $region18: #{vit_forward.1} parent=11 // pred_check_branch
          %601 = sbr.rel (%p599) target = $region20
        $region19: #{vit_forward.1} parent=11 // pred_region
          _
        $region20: #{vit_forward.1} parent=11 // pred_fallthru
          _
        // Predicated region
        $region21: #{vit_forward.1} parent=11 // pred_check
          %p602 = pneg %p110
        $region22: #{vit_forward.1} parent=11 // pred_check_branch
          %604 = sbr.rel (%p602) target = $region24
        $region23: #{vit_forward.1} parent=11 // pred_region
          _
        $region24: #{vit_forward.1} parent=11 // pred_fallthru
          _
        // Predicated region
        $region25: #{vit_forward.1} parent=11 // pred_check
          %p605 = pneg %p131
        $region26: #{vit_forward.1} parent=11 // pred_check_branch
          %607 = sbr.rel (%p605) target = $region28
        $region27: #{vit_forward.1} parent=11 // pred_region
          _
        $region28: #{vit_forward.1} parent=11 // pred_fallthru
          _
        // Predicated region
        $region29: #{vit_forward.1} parent=11 // pred_check
          %p608 = pneg %p152
        $region30: #{vit_forward.1} parent=11 // pred_check_branch
          %610 = sbr.rel (%p608) target = $region32
        $region31: #{vit_forward.1} parent=11 // pred_region
          _
        $region32: #{vit_forward.1} parent=11 // pred_fallthru
          _
        // Predicated region
        $region33: #{vit_forward.1} parent=11 // pred_check
          %p611 = pneg %p459
        $region34: #{vit_forward.1} parent=11 // pred_check_branch
          %613 = sbr.rel (%p611) target = $region36
        $region35: #{vit_forward.1} parent=11 // pred_region
          _
        $region36: #{vit_forward.1} parent=11 // pred_fallthru
          _
        // Predicated region
        $region37: #{vit_forward.1} parent=11 // pred_check
          %p614 = pneg %p480
        $region38: #{vit_forward.1} parent=11 // pred_check_branch
          %616 = sbr.rel (%p614) target = $region40
        $region39: #{vit_forward.1} parent=11 // pred_region
          _
        $region40: #{vit_forward.1} parent=11 // pred_fallthru
          _
        // Predicated region
        $region41: #{vit_forward.1} parent=11 // pred_check
          %p617 = pneg %p501
        $region42: #{vit_forward.1} parent=11 // pred_check_branch
          %619 = sbr.rel (%p617) target = $region44
        $region43: #{vit_forward.1} parent=11 // pred_region
          _
        $region44: #{vit_forward.1} parent=11 // pred_fallthru
          _
        // Predicated region
        $region45: #{vit_forward.1} parent=11 // pred_check
          %p620 = pneg %p522
        $region46: #{vit_forward.1} parent=11 // pred_check_branch
          %622 = sbr.rel (%p620) target = $region48
        $region47: #{vit_forward.1} parent=11 // pred_region
          _
        $region48: #{vit_forward.1} parent=11 // pred_fallthru
          _
      $region12: #{vit_forward.1} parent=5 // pred_fallthru
        _
      %p623 = scmp.lt.s32.totalorder %s30, 2
      // Predicated region
      $region49: #{vit_forward.1} parent=5 // pred_check
        %p624 = pneg %p623
      $region50: #{vit_forward.1} parent=5 // pred_check_branch
        %626 = sbr.rel (%p624) target = $region52
      $region51: #{vit_forward.1} parent=5 // pred_region
        // Predicated region
        $region53: #{vit_forward.1} parent=51 // pred_check
          %p627 = pneg %p172
        $region54: #{vit_forward.1} parent=51 // pred_check_branch
          %629 = sbr.rel (%p627) target = $region56
        $region55: #{vit_forward.1} parent=51 // pred_region
          %p630 = scmp.lt.s32.totalorder %s38, 1
          %s631 = scalar_select %p630, %s38, 1
          %s632 = scalar_lea.vmem %s5, %s631
        $region56: #{vit_forward.1} parent=51 // pred_fallthru
          _
        // Predicated region
        $region57: #{vit_forward.1} parent=51 // pred_check
          %p633 = pneg %p198
        $region58: #{vit_forward.1} parent=51 // pred_check_branch
          %635 = sbr.rel (%p633) target = $region60
        $region59: #{vit_forward.1} parent=51 // pred_region
          %p636 = scmp.lt.s32.totalorder %s38, 1
          %s637 = scalar_select %p636, %s38, 1
          %s638 = scalar_lea.vmem %s6, %s637
        $region60: #{vit_forward.1} parent=51 // pred_fallthru
          _
        // Predicated region
        $region61: #{vit_forward.1} parent=51 // pred_check
          %p639 = pneg %p224
        $region62: #{vit_forward.1} parent=51 // pred_check_branch
          %641 = sbr.rel (%p639) target = $region64
        $region63: #{vit_forward.1} parent=51 // pred_region
          %p642 = scmp.lt.s32.totalorder %s38, 1
          %s643 = scalar_select %p642, %s38, 1
          %s644 = smul.addr %s643, 48
          %s645 = smul.addr %s644, 4
          %s646 = scalar_lea.vmem %s7, %s645
        $region64: #{vit_forward.1} parent=51 // pred_fallthru
          _
        // Predicated region
        $region65: #{vit_forward.1} parent=51 // pred_check
          %p647 = pneg %p250
        $region66: #{vit_forward.1} parent=51 // pred_check_branch
          %649 = sbr.rel (%p647) target = $region68
        $region67: #{vit_forward.1} parent=51 // pred_region
          %p650 = scmp.lt.s32.totalorder %s38, 1
          %s651 = scalar_select %p650, %s38, 1
          %s652 = smul.addr %s651, 16
          %s653 = smul.addr %s652, 4
          %s654 = scalar_lea.vmem %s8, %s653
        $region68: #{vit_forward.1} parent=51 // pred_fallthru
          _
        // Predicated region
        $region69: #{vit_forward.1} parent=51 // pred_check
          %p655 = pneg %p276
        $region70: #{vit_forward.1} parent=51 // pred_check_branch
          %657 = sbr.rel (%p655) target = $region72
        $region71: #{vit_forward.1} parent=51 // pred_region
          %p658 = scmp.lt.s32.totalorder %s38, 1
          %s659 = scalar_select %p658, %s38, 1
          %s660 = scalar_lea.vmem %s9, %s659
        $region72: #{vit_forward.1} parent=51 // pred_fallthru
          _
        // Predicated region
        $region73: #{vit_forward.1} parent=51 // pred_check
          %p661 = pneg %p302
        $region74: #{vit_forward.1} parent=51 // pred_check_branch
          %663 = sbr.rel (%p661) target = $region76
        $region75: #{vit_forward.1} parent=51 // pred_region
          %p664 = scmp.lt.s32.totalorder %s38, 1
          %s665 = scalar_select %p664, %s38, 1
          %s666 = scalar_lea.vmem %s10, %s665
        $region76: #{vit_forward.1} parent=51 // pred_fallthru
          _
        // Predicated region
        $region77: #{vit_forward.1} parent=51 // pred_check
          %p667 = pneg %p328
        $region78: #{vit_forward.1} parent=51 // pred_check_branch
          %669 = sbr.rel (%p667) target = $region80
        $region79: #{vit_forward.1} parent=51 // pred_region
          %p670 = scmp.lt.s32.totalorder %s38, 1
          %s671 = scalar_select %p670, %s38, 1
          %s672 = scalar_lea.vmem %s11, %s671
        $region80: #{vit_forward.1} parent=51 // pred_fallthru
          _
        // Predicated region
        $region81: #{vit_forward.1} parent=51 // pred_check
          %p673 = pneg %p354
        $region82: #{vit_forward.1} parent=51 // pred_check_branch
          %675 = sbr.rel (%p673) target = $region84
        $region83: #{vit_forward.1} parent=51 // pred_region
          %p676 = scmp.lt.s32.totalorder %s38, 1
          %s677 = scalar_select %p676, %s38, 1
          %s678 = smul.addr %s677, 32
          %s679 = smul.addr %s678, 4
          %s680 = scalar_lea.vmem %s12, %s679
        $region84: #{vit_forward.1} parent=51 // pred_fallthru
          _
        // Predicated region
        $region85: #{vit_forward.1} parent=51 // pred_check
          %p681 = pneg %p380
        $region86: #{vit_forward.1} parent=51 // pred_check_branch
          %683 = sbr.rel (%p681) target = $region88
        $region87: #{vit_forward.1} parent=51 // pred_region
          %p684 = scmp.lt.s32.totalorder %s38, 1
          %s685 = scalar_select %p684, %s38, 1
          %s686 = smul.addr %s685, 2
          %s687 = scalar_lea.vmem %s13, %s686
        $region88: #{vit_forward.1} parent=51 // pred_fallthru
          _
        // Predicated region
        $region89: #{vit_forward.1} parent=51 // pred_check
          %p688 = pneg %p406
        $region90: #{vit_forward.1} parent=51 // pred_check_branch
          %690 = sbr.rel (%p688) target = $region92
        $region91: #{vit_forward.1} parent=51 // pred_region
          %p691 = scmp.lt.s32.totalorder %s38, 1
          %s692 = scalar_select %p691, %s38, 1
          %s693 = smul.addr %s692, 32
          %s694 = smul.addr %s693, 4
          %s695 = scalar_lea.vmem %s14, %s694
        $region92: #{vit_forward.1} parent=51 // pred_fallthru
          _
        // Predicated region
        $region93: #{vit_forward.1} parent=51 // pred_check
          %p696 = pneg %p432
        $region94: #{vit_forward.1} parent=51 // pred_check_branch
          %698 = sbr.rel (%p696) target = $region96
        $region95: #{vit_forward.1} parent=51 // pred_region
          %p699 = scmp.lt.s32.totalorder %s38, 1
          %s700 = scalar_select %p699, %s38, 1
          %s701 = scalar_lea.vmem %s15, %s700
        $region96: #{vit_forward.1} parent=51 // pred_fallthru
          _
      $region52: #{vit_forward.1} parent=5 // pred_fallthru
        _
      %p702 = scmp.le.s32.totalorder 1, %s30
      %p703 = scmp.lt.s32.totalorder %s30, 3
      %p704 = pnand %p702, %p703
      %p705 = pneg %p704
      // Predicated region
      $region97: #{vit_forward.1} parent=5 // pred_check
        _
      $region98: #{vit_forward.1} parent=5 // pred_check_branch
        %707 = sbr.rel (%p704) target = $region100
      $region99: #{vit_forward.1} parent=5 // pred_region
        %s708 = ssub.s32 %s30, 1
        %s709 = smul.u32 2, %s39
        %p710 = scmp.lt.s32.totalorder %s709, 1
        %s711 = scalar_select %p710, %s709, 1
        %s712 = smul.addr %s711, 2
        %s713 = smul.addr %s712, 8
        %s714 = scalar_lea.vmem %s0, %s713
        %p715 = pneg %p68
        %p716 = pneg %p65
        %p717 = pneg %p89
        %p718 = pneg %p86
        %p719 = pneg %p110
        %p720 = pneg %p107
        %p721 = pneg %p131
        %p722 = pneg %p128
        %p723 = pneg %p152
        %p724 = pneg %p149
        %p725 = scmp.lt.s32.totalorder %s40, 1
        %s726 = scalar_select %p725, %s40, 1
        %s727 = scalar_lea.vmem %s5, %s726
        %p728 = pneg %p178
        %p729 = pneg %p175
        %p730 = scmp.lt.s32.totalorder %s40, 1
        %s731 = scalar_select %p730, %s40, 1
        %s732 = scalar_lea.vmem %s6, %s731
        %p733 = pneg %p204
        %p734 = pneg %p201
        %p735 = scmp.lt.s32.totalorder %s40, 1
        %s736 = scalar_select %p735, %s40, 1
        %s737 = smul.addr %s736, 48
        %s738 = smul.addr %s737, 4
        %s739 = scalar_lea.vmem %s7, %s738
        %p740 = pneg %p230
        %p741 = pneg %p227
        %p742 = scmp.lt.s32.totalorder %s40, 1
        %s743 = scalar_select %p742, %s40, 1
        %s744 = smul.addr %s743, 16
        %s745 = smul.addr %s744, 4
        %s746 = scalar_lea.vmem %s8, %s745
        %p747 = pneg %p256
        %p748 = pneg %p253
        %p749 = scmp.lt.s32.totalorder %s40, 1
        %s750 = scalar_select %p749, %s40, 1
        %s751 = scalar_lea.vmem %s9, %s750
        %p752 = pneg %p282
        %p753 = pneg %p279
        %p754 = scmp.lt.s32.totalorder %s40, 1
        %s755 = scalar_select %p754, %s40, 1
        %s756 = scalar_lea.vmem %s10, %s755
        %p757 = pneg %p308
        %p758 = pneg %p305
        %p759 = scmp.lt.s32.totalorder %s40, 1
        %s760 = scalar_select %p759, %s40, 1
        %s761 = scalar_lea.vmem %s11, %s760
        %p762 = pneg %p334
        %p763 = pneg %p331
        %p764 = scmp.lt.s32.totalorder %s40, 1
        %s765 = scalar_select %p764, %s40, 1
        %s766 = smul.addr %s765, 32
        %s767 = smul.addr %s766, 4
        %s768 = scalar_lea.vmem %s12, %s767
        %p769 = pneg %p360
        %p770 = pneg %p357
        %p771 = scmp.lt.s32.totalorder %s40, 1
        %s772 = scalar_select %p771, %s40, 1
        %s773 = smul.addr %s772, 2
        %s774 = scalar_lea.vmem %s13, %s773
        %p775 = pneg %p386
        %p776 = pneg %p383
        %p777 = scmp.lt.s32.totalorder %s40, 1
        %s778 = scalar_select %p777, %s40, 1
        %s779 = smul.addr %s778, 32
        %s780 = smul.addr %s779, 4
        %s781 = scalar_lea.vmem %s14, %s780
        %p782 = pneg %p412
        %p783 = pneg %p409
        %p784 = scmp.lt.s32.totalorder %s40, 1
        %s785 = scalar_select %p784, %s40, 1
        %s786 = scalar_lea.vmem %s15, %s785
        %p787 = pneg %p438
        %p788 = pneg %p435
        %p789 = pneg %p459
        %p790 = pneg %p456
        %p791 = pneg %p480
        %p792 = pneg %p477
        %p793 = pneg %p501
        %p794 = pneg %p498
        %p795 = pneg %p522
        %p796 = pneg %p519
        %p797 = pneg %p548
        %p798 = pneg %p545
        %p799 = pneg %p574
        %p800 = pneg %p571
        %s801 = smul.u32 2, %s39
        %p802 = scmp.lt.s32.totalorder %s801, 1
        %s803 = scalar_select %p802, %s801, 1
        %s804 = smul.addr %s803, 2
        %s805 = smul.addr %s804, 8
        %s806 = scalar_lea.vmem %s0, %s805
        %s807 = smul.u32 2, %s39
        %p808 = scmp.lt.s32.totalorder %s40, 1
        %s809 = scalar_select %p808, %s40, 1
        %s810 = scalar_lea.vmem %s5, %s809
        %p811 = scmp.lt.s32.totalorder %s40, 1
        %s812 = scalar_select %p811, %s40, 1
        %s813 = scalar_lea.vmem %s6, %s812
        %p814 = scmp.lt.s32.totalorder %s40, 1
        %s815 = scalar_select %p814, %s40, 1
        %s816 = smul.addr %s815, 48
        %s817 = smul.addr %s816, 4
        %s818 = scalar_lea.vmem %s7, %s817
        %p819 = scmp.lt.s32.totalorder %s40, 1
        %s820 = scalar_select %p819, %s40, 1
        %s821 = smul.addr %s820, 16
        %s822 = smul.addr %s821, 4
        %s823 = scalar_lea.vmem %s8, %s822
        %p824 = scmp.lt.s32.totalorder %s40, 1
        %s825 = scalar_select %p824, %s40, 1
        %s826 = scalar_lea.vmem %s9, %s825
        %p827 = scmp.lt.s32.totalorder %s40, 1
        %s828 = scalar_select %p827, %s40, 1
        %s829 = scalar_lea.vmem %s10, %s828
        %p830 = scmp.lt.s32.totalorder %s40, 1
        %s831 = scalar_select %p830, %s40, 1
        %s832 = scalar_lea.vmem %s11, %s831
        %p833 = scmp.lt.s32.totalorder %s40, 1
        %s834 = scalar_select %p833, %s40, 1
        %s835 = smul.addr %s834, 32
        %s836 = smul.addr %s835, 4
        %s837 = scalar_lea.vmem %s12, %s836
        %p838 = scmp.lt.s32.totalorder %s40, 1
        %s839 = scalar_select %p838, %s40, 1
        %s840 = smul.addr %s839, 2
        %s841 = scalar_lea.vmem %s13, %s840
        %p842 = scmp.lt.s32.totalorder %s40, 1
        %s843 = scalar_select %p842, %s40, 1
        %s844 = smul.addr %s843, 32
        %s845 = smul.addr %s844, 4
        %s846 = scalar_lea.vmem %s14, %s845
        %p847 = scmp.lt.s32.totalorder %s40, 1
        %s848 = scalar_select %p847, %s40, 1
        %s849 = scalar_lea.vmem %s15, %s848
        %s850 = smul.u32 2, %s39
        %s851 = smul.u32 2, %s39
        %p853 = scmp.eq.s32.totalorder %s40, 0
        // Predicated region
        $region101: #{vit_forward.1} parent=99 // pred_check
          %p854 = pneg %p853
        $region102: #{vit_forward.1} parent=99 // pred_check_branch
          %856 = sbr.rel (%p854) target = $region104
        $region103: #{vit_forward.1} parent=99 // pred_region
          %v857 = vld [vmem:[%s806] sm:$0xff]
          %v858 = vld [vmem:[%s806 + $0x8] sm:$0xff]
          %v859 = vld [vmem:[%s806 + $0x10] sm:$0xff]
          %v860 = vld [vmem:[%s806 + $0x18] sm:$0xff]
          %v861 = vpack.c.bf16 %v858, %v857
          %v862 = vpack.c.bf16 %v860, %v859
          %v863 = vld [vmem:[%s1] sm:$0xf]
          %v864 = vld [vmem:[%s1 + $0x4] sm:$0xf]
          %v865 = vld [vmem:[%s1 + $0x8] sm:$0xf]
          %v866 = vld [vmem:[%s1 + $0xc] sm:$0xf]
          %v867 = vld [vmem:[%s1 + $0x10] sm:$0xf]
          %v868 = vld [vmem:[%s1 + $0x14] sm:$0xf]
          %v869 = vld [vmem:[%s1 + $0x18] sm:$0xf]
          %v870 = vld [vmem:[%s1 + $0x1c] sm:$0xf]
          %v871 = vld [vmem:[%s1 + $0x20] sm:$0xf]
          %v872 = vld [vmem:[%s1 + $0x24] sm:$0xf]
          %v873 = vld [vmem:[%s1 + $0x28] sm:$0xf]
          %v874 = vld [vmem:[%s1 + $0x2c] sm:$0xf]
          %v875 = vld [vmem:[%s1 + $0x30] sm:$0xf]
          %v876 = vld [vmem:[%s1 + $0x34] sm:$0xf]
          %v877 = vld [vmem:[%s1 + $0x38] sm:$0xf]
          %v878 = vld [vmem:[%s1 + $0x3c] sm:$0xf]
          %v879 = vld [vmem:[%s2] sm:$0x1]
          %v881 = vlaneseq
          %v882 = vshrl.u32 %v881, 7
          %v883 = vsub.s32 0, %v882
          %v884 = vrot.slane %v879, %v883
          %v902 = vunpack.c.l.b16 %v863
          %v903 = vunpack.c.l.b16 %v864
          %v904 = vunpack.c.l.b16 %v865
          %v905 = vunpack.c.l.b16 %v866
          %v906 = vunpack.c.l.b16 %v867
          %v907 = vunpack.c.l.b16 %v868
          %v908 = vunpack.c.l.b16 %v869
          %v909 = vunpack.c.l.b16 %v870
          %v910 = vunpack.c.l.b16 %v871
          %v911 = vunpack.c.l.b16 %v872
          %v912 = vunpack.c.l.b16 %v873
          %v913 = vunpack.c.l.b16 %v874
          %v914 = vunpack.c.l.b16 %v875
          %v915 = vunpack.c.l.b16 %v876
          %v916 = vunpack.c.l.b16 %v877
          %v917 = vunpack.c.l.b16 %v878
          %v918 = vpack.c.b16 %v903, %v902
          %v919 = vpack.c.b16 %v905, %v904
          %v920 = vpack.c.b16 %v907, %v906
          %v921 = vpack.c.b16 %v909, %v908
          %v922 = vpack.c.b16 %v911, %v910
          %v923 = vpack.c.b16 %v913, %v912
          %v924 = vpack.c.b16 %v915, %v914
          %v925 = vpack.c.b16 %v917, %v916
          %934 = vmatprep.subr.bf16.mxu0 0
          %935 = vmatpush1.bf16.msra.mxu0 %v918
          %936 = vmatprep.subr.bf16.mxu0 0
          %937 = vmatpush1.bf16.msra.mxu0 %v919
          %938 = vmatprep.subr.bf16.mxu0 0
          %939 = vmatpush1.bf16.msra.mxu0 %v920
          %940 = vmatprep.subr.bf16.mxu0 0
          %941 = vmatpush1.bf16.msra.mxu0 %v921
          %942 = vmatprep.subr.bf16.mxu0 0
          %943 = vmatpush1.bf16.msra.mxu0 %v922
          %944 = vmatprep.subr.bf16.mxu0 0
          %945 = vmatpush1.bf16.msra.mxu0 %v923
          %946 = vmatprep.subr.bf16.mxu0 0
          %947 = vmatpush1.bf16.msra.mxu0 %v924
          %948 = vmatprep.subr.bf16.mxu0 0
          %949 = vmatpush1.bf16.msra.mxu0 %v925
          %950 = vmatprep.subr.bf16.mxu0 0
          %951 = vmatpush1.bf16.msra.mxu0 0
          %952 = vmatprep.subr.bf16.mxu0 0
          %953 = vmatpush1.bf16.msra.mxu0 0
          %954 = vmatprep.subr.bf16.mxu0 0
          %955 = vmatpush1.bf16.msra.mxu0 0
          %956 = vmatprep.subr.bf16.mxu0 0
          %957 = vmatpush1.bf16.msra.mxu0 0
          %958 = vmatprep.subr.bf16.mxu0 0
          %959 = vmatpush1.bf16.msra.mxu0 0
          %960 = vmatprep.subr.bf16.mxu0 0
          %961 = vmatpush1.bf16.msra.mxu0 0
          %962 = vmatprep.subr.bf16.mxu0 0
          %963 = vmatpush1.bf16.msra.mxu0 0
          %964 = vmatprep.subr.bf16.mxu0 0
          %965 = vmatpush1.bf16.msra.mxu0 0
          %966 = vmatprep.mubr.bf16.mxu0 0
          %967 = vmatmul.mubr.bf16.gmra.mrb[0].mxu0 %v861
          %v968 = vpop.f32.mrb[0].mxu0
          %v969 = vadd.f32 %v884, %v968
          %v970 = vpop.f32.mrb[0].mxu0
          %v971 = vpop.f32.mrb[0].mxu0
          %v972 = vadd.f32 %v884, %v971
          %v973 = vpop.f32.mrb[0].mxu0
          %974 = vmatprep.mubr.bf16.mxu0 0
          %975 = vmatmul.mubr.bf16.gmra.mrb[0].mxu0 %v862
          %v976 = vpop.f32.mrb[0].mxu0
          %v977 = vadd.f32 %v884, %v976
          %v978 = vpop.f32.mrb[0].mxu0
          %v979 = vpop.f32.mrb[0].mxu0
          %v980 = vadd.f32 %v884, %v979
          %v981 = vpop.f32.mrb[0].mxu0
          %982 = vdwg.mxu0
          %v983 = vld [vmem:[%s4] sm:$0xff]
          %v984 = vld [vmem:[%s4 + $0x8] sm:$0xff]
          %v985 = vld [vmem:[%s4 + $0x10] sm:$0xff]
          %v986 = vld [vmem:[%s3] sm:$0x1]
          %v987 = vadd.f32 %v986, %v983
          %988 = vst [vmem:[#allocation2] sm:$0x1] %v987
          %989 = vst [vmem:[#allocation2 + $0x20] sm:$0x1] %v987
          %vm993 = vcmask 1046528
          %v994 = vrot.slane %v983, 1
          %v995 = vrot.slane %v984, 1
          %v996 = vsel %vm993, %v994, %v995
          %v997 = vrot.slane %v985, 1
          %v998 = vsel %vm993, %v995, %v997
          %v1001 = vadd.f32 %v969, %v996
          %v1002 = vadd.f32 %v972, %v998
          %v1003 = vadd.f32 %v977, %v996
          %v1004 = vadd.f32 %v980, %v998
          %1005 = vst [vmem:[#allocation2 + $0x1] sm:$0xff] %v1001
          %1006 = vst [vmem:[#allocation2 + $0x9] sm:$0xff] %v1002
          %1007 = vst [vmem:[#allocation2 + $0x21] sm:$0xff] %v1003
          %1008 = vst [vmem:[#allocation2 + $0x29] sm:$0xff] %v1004
          %1009 = vst [vmem:[#allocation2 + $0x11] sm:$0xff] 0.0
          %1010 = vst [vmem:[#allocation2 + $0x19] sm:$0x7f] 0.0
          %1011 = vst [vmem:[#allocation2 + $0x31] sm:$0xff] 0.0
          %1012 = vst [vmem:[#allocation2 + $0x39] sm:$0x7f] 0.0
        $region104: #{vit_forward.1} parent=99 // pred_fallthru
          _
        %v1013 = vld [vmem:[#allocation2] sm:$0xff]
        %v1014 = vld [vmem:[#allocation2 + $0x8] sm:$0xff]
        %v1015 = vld [vmem:[#allocation2 + $0x10] sm:$0xff]
        %v1016 = vld [vmem:[#allocation2 + $0x18] sm:$0xff]
        %v1017 = vld [vmem:[#allocation2 + $0x20] sm:$0xff]
        %v1018 = vld [vmem:[#allocation2 + $0x28] sm:$0xff]
        %v1019 = vld [vmem:[#allocation2 + $0x30] sm:$0xff]
        %v1020 = vld [vmem:[#allocation2 + $0x38] sm:$0xff]
        %v1021 = vld [vmem:[%s810] sm:$0x1]
        %v1022 = vld [vmem:[%s813] sm:$0x1]
        %1023 = vadd.xlane.f32.xlu0 %v1013
        %v1024 = vpop.xlane.xlu0 %1023
        %1025 = vadd.xlane.f32.xlu0 %v1014
        %v1026 = vpop.xlane.xlu0 %1025
        %1027 = vadd.xlane.f32.xlu0 %v1015
        %v1028 = vpop.xlane.xlu0 %1027
        %1029 = vadd.xlane.f32.xlu0 %v1016
        %v1030 = vpop.xlane.xlu0 %1029
        %1031 = vadd.xlane.f32.xlu0 %v1017
        %v1032 = vpop.xlane.xlu0 %1031
        %1033 = vadd.xlane.f32.xlu0 %v1018
        %v1034 = vpop.xlane.xlu0 %1033
        %1035 = vadd.xlane.f32.xlu0 %v1019
        %v1036 = vpop.xlane.xlu0 %1035
        %1037 = vadd.xlane.f32.xlu0 %v1020
        %v1038 = vpop.xlane.xlu0 %1037
        %v1039 = vrcp.pop 128.0
        %v1040 = vmul.f32 %v1024, %v1039
        %v1041 = vmul.f32 %v1026, %v1039
        %v1042 = vmul.f32 %v1028, %v1039
        %v1043 = vmul.f32 %v1030, %v1039
        %v1044 = vmul.f32 %v1032, %v1039
        %v1045 = vmul.f32 %v1034, %v1039
        %v1046 = vmul.f32 %v1036, %v1039
        %v1047 = vmul.f32 %v1038, %v1039
        %v1048 = vsub.f32 %v1013, %v1040
        %v1049 = vsub.f32 %v1014, %v1041
        %v1050 = vsub.f32 %v1015, %v1042
        %v1051 = vsub.f32 %v1016, %v1043
        %v1052 = vsub.f32 %v1017, %v1044
        %v1053 = vsub.f32 %v1018, %v1045
        %v1054 = vsub.f32 %v1019, %v1046
        %v1055 = vsub.f32 %v1020, %v1047
        %v1056 = vmul.f32 %v1048, %v1048
        %v1057 = vmul.f32 %v1049, %v1049
        %v1058 = vmul.f32 %v1050, %v1050
        %v1059 = vmul.f32 %v1051, %v1051
        %v1060 = vmul.f32 %v1052, %v1052
        %v1061 = vmul.f32 %v1053, %v1053
        %v1062 = vmul.f32 %v1054, %v1054
        %v1063 = vmul.f32 %v1055, %v1055
        %1064 = vadd.xlane.f32.xlu0 %v1056
        %v1065 = vpop.xlane.xlu0 %1064
        %1066 = vadd.xlane.f32.xlu0 %v1057
        %v1067 = vpop.xlane.xlu0 %1066
        %1068 = vadd.xlane.f32.xlu0 %v1058
        %v1069 = vpop.xlane.xlu0 %1068
        %1070 = vadd.xlane.f32.xlu0 %v1059
        %v1071 = vpop.xlane.xlu0 %1070
        %1072 = vadd.xlane.f32.xlu0 %v1060
        %v1073 = vpop.xlane.xlu0 %1072
        %1074 = vadd.xlane.f32.xlu0 %v1061
        %v1075 = vpop.xlane.xlu0 %1074
        %1076 = vadd.xlane.f32.xlu0 %v1062
        %v1077 = vpop.xlane.xlu0 %1076
        %1078 = vadd.xlane.f32.xlu0 %v1063
        %v1079 = vpop.xlane.xlu0 %1078
        %v1080 = vmul.f32 %v1065, %v1039
        %v1081 = vmul.f32 %v1067, %v1039
        %v1082 = vmul.f32 %v1069, %v1039
        %v1083 = vmul.f32 %v1071, %v1039
        %v1084 = vmul.f32 %v1073, %v1039
        %v1085 = vmul.f32 %v1075, %v1039
        %v1086 = vmul.f32 %v1077, %v1039
        %v1087 = vmul.f32 %v1079, %v1039
        %v1088 = vadd.f32 %v1080, 1e-05
        %v1089 = vadd.f32 %v1081, 1e-05
        %v1090 = vadd.f32 %v1082, 1e-05
        %v1091 = vadd.f32 %v1083, 1e-05
        %v1092 = vadd.f32 %v1084, 1e-05
        %v1093 = vadd.f32 %v1085, 1e-05
        %v1094 = vadd.f32 %v1086, 1e-05
        %v1095 = vadd.f32 %v1087, 1e-05
        %v1096 = vrsqrt.pop %v1088
        %v1097 = vrsqrt.pop %v1089
        %v1098 = vrsqrt.pop %v1090
        %v1099 = vrsqrt.pop %v1091
        %v1100 = vrsqrt.pop %v1092
        %v1101 = vrsqrt.pop %v1093
        %v1102 = vrsqrt.pop %v1094
        %v1103 = vrsqrt.pop %v1095
        %v1104 = vmul.f32 %v1048, %v1096
        %v1105 = vmul.f32 %v1049, %v1097
        %v1106 = vmul.f32 %v1050, %v1098
        %v1107 = vmul.f32 %v1051, %v1099
        %v1108 = vmul.f32 %v1052, %v1100
        %v1109 = vmul.f32 %v1053, %v1101
        %v1110 = vmul.f32 %v1054, %v1102
        %v1111 = vmul.f32 %v1055, %v1103
        %v1113 = vlaneseq
        %v1114 = vshrl.u32 %v1113, 7
        %v1115 = vsub.s32 0, %v1114
        %v1116 = vrot.slane %v1021, %v1115
        %v1118 = vmul.f32 %v1104, %v1116
        %v1119 = vmul.f32 %v1105, %v1116
        %v1120 = vmul.f32 %v1106, %v1116
        %v1121 = vmul.f32 %v1107, %v1116
        %v1122 = vmul.f32 %v1108, %v1116
        %v1123 = vmul.f32 %v1109, %v1116
        %v1124 = vmul.f32 %v1110, %v1116
        %v1125 = vmul.f32 %v1111, %v1116
        %v1127 = vlaneseq
        %v1128 = vshrl.u32 %v1127, 7
        %v1129 = vsub.s32 0, %v1128
        %v1130 = vrot.slane %v1022, %v1129
        %v1132 = vadd.f32 %v1118, %v1130
        %v1133 = vadd.f32 %v1119, %v1130
        %v1134 = vadd.f32 %v1120, %v1130
        %v1135 = vadd.f32 %v1121, %v1130
        %v1136 = vadd.f32 %v1122, %v1130
        %v1137 = vadd.f32 %v1123, %v1130
        %v1138 = vadd.f32 %v1124, %v1130
        %v1139 = vadd.f32 %v1125, %v1130
        %v1140 = vpack.c.bf16 %v1133, %v1132
        %v1141 = vpack.c.bf16 %v1135, %v1134
        %v1142 = vpack.c.bf16 %v1137, %v1136
        %v1143 = vpack.c.bf16 %v1139, %v1138
        %v1144 = vld [vmem:[%s818] sm:$0xff]
        %v1145 = vld [vmem:[%s818 + $0x8] sm:$0xf]
        %v1146 = vld [vmem:[%s818 + $0xc] sm:$0xff]
        %v1147 = vld [vmem:[%s818 + $0x14] sm:$0xf]
        %v1148 = vld [vmem:[%s818 + $0x18] sm:$0xff]
        %v1149 = vld [vmem:[%s818 + $0x20] sm:$0xf]
        %v1150 = vld [vmem:[%s818 + $0x24] sm:$0xff]
        %v1151 = vld [vmem:[%s818 + $0x2c] sm:$0xf]
        %v1152 = vld [vmem:[%s818 + $0x30] sm:$0xff]
        %v1153 = vld [vmem:[%s818 + $0x38] sm:$0xf]
        %v1154 = vld [vmem:[%s818 + $0x3c] sm:$0xff]
        %v1155 = vld [vmem:[%s818 + $0x44] sm:$0xf]
        %v1156 = vld [vmem:[%s818 + $0x48] sm:$0xff]
        %v1157 = vld [vmem:[%s818 + $0x50] sm:$0xf]
        %v1158 = vld [vmem:[%s818 + $0x54] sm:$0xff]
        %v1159 = vld [vmem:[%s818 + $0x5c] sm:$0xf]
        %v1160 = vld [vmem:[%s818 + $0x60] sm:$0xff]
        %v1161 = vld [vmem:[%s818 + $0x68] sm:$0xf]
        %v1162 = vld [vmem:[%s818 + $0x6c] sm:$0xff]
        %v1163 = vld [vmem:[%s818 + $0x74] sm:$0xf]
        %v1164 = vld [vmem:[%s818 + $0x78] sm:$0xff]
        %v1165 = vld [vmem:[%s818 + $0x80] sm:$0xf]
        %v1166 = vld [vmem:[%s818 + $0x84] sm:$0xff]
        %v1167 = vld [vmem:[%s818 + $0x8c] sm:$0xf]
        %v1168 = vld [vmem:[%s818 + $0x90] sm:$0xff]
        %v1169 = vld [vmem:[%s818 + $0x98] sm:$0xf]
        %v1170 = vld [vmem:[%s818 + $0x9c] sm:$0xff]
        %v1171 = vld [vmem:[%s818 + $0xa4] sm:$0xf]
        %v1172 = vld [vmem:[%s818 + $0xa8] sm:$0xff]
        %v1173 = vld [vmem:[%s818 + $0xb0] sm:$0xf]
        %v1174 = vld [vmem:[%s818 + $0xb4] sm:$0xff]
        %v1175 = vld [vmem:[%s818 + $0xbc] sm:$0xf]
        %v1208 = vunpack.c.l.b16 %v1144
        %v1209 = vunpack.c.h.b16 %v1144
        %v1210 = vunpack.c.l.b16 %v1145
        %v1211 = vunpack.c.l.b16 %v1146
        %v1212 = vunpack.c.h.b16 %v1146
        %v1213 = vunpack.c.l.b16 %v1147
        %v1214 = vunpack.c.l.b16 %v1148
        %v1215 = vunpack.c.h.b16 %v1148
        %v1216 = vunpack.c.l.b16 %v1149
        %v1217 = vunpack.c.l.b16 %v1150
        %v1218 = vunpack.c.h.b16 %v1150
        %v1219 = vunpack.c.l.b16 %v1151
        %v1220 = vunpack.c.l.b16 %v1152
        %v1221 = vunpack.c.h.b16 %v1152
        %v1222 = vunpack.c.l.b16 %v1153
        %v1223 = vunpack.c.l.b16 %v1154
        %v1224 = vunpack.c.h.b16 %v1154
        %v1225 = vunpack.c.l.b16 %v1155
        %v1226 = vunpack.c.l.b16 %v1156
        %v1227 = vunpack.c.h.b16 %v1156
        %v1228 = vunpack.c.l.b16 %v1157
        %v1229 = vunpack.c.l.b16 %v1158
        %v1230 = vunpack.c.h.b16 %v1158
        %v1231 = vunpack.c.l.b16 %v1159
        %v1232 = vunpack.c.l.b16 %v1160
        %v1233 = vunpack.c.h.b16 %v1160
        %v1234 = vunpack.c.l.b16 %v1161
        %v1235 = vunpack.c.l.b16 %v1162
        %v1236 = vunpack.c.h.b16 %v1162
        %v1237 = vunpack.c.l.b16 %v1163
        %v1238 = vunpack.c.l.b16 %v1164
        %v1239 = vunpack.c.h.b16 %v1164
        %v1240 = vunpack.c.l.b16 %v1165
        %v1241 = vunpack.c.l.b16 %v1166
        %v1242 = vunpack.c.h.b16 %v1166
        %v1243 = vunpack.c.l.b16 %v1167
        %v1244 = vunpack.c.l.b16 %v1168
        %v1245 = vunpack.c.h.b16 %v1168
        %v1246 = vunpack.c.l.b16 %v1169
        %v1247 = vunpack.c.l.b16 %v1170
        %v1248 = vunpack.c.h.b16 %v1170
        %v1249 = vunpack.c.l.b16 %v1171
        %v1250 = vunpack.c.l.b16 %v1172
        %v1251 = vunpack.c.h.b16 %v1172
        %v1252 = vunpack.c.l.b16 %v1173
        %v1253 = vunpack.c.l.b16 %v1174
        %v1254 = vunpack.c.h.b16 %v1174
        %v1255 = vunpack.c.l.b16 %v1175
        %v1256 = vpack.c.b16 %v1211, %v1208
        %v1257 = vpack.c.b16 %v1212, %v1209
        %v1258 = vpack.c.b16 %v1213, %v1210
        %v1259 = vpack.c.b16 %v1217, %v1214
        %v1260 = vpack.c.b16 %v1218, %v1215
        %v1261 = vpack.c.b16 %v1219, %v1216
        %v1262 = vpack.c.b16 %v1223, %v1220
        %v1263 = vpack.c.b16 %v1224, %v1221
        %v1264 = vpack.c.b16 %v1225, %v1222
        %v1265 = vpack.c.b16 %v1229, %v1226
        %v1266 = vpack.c.b16 %v1230, %v1227
        %v1267 = vpack.c.b16 %v1231, %v1228
        %v1268 = vpack.c.b16 %v1235, %v1232
        %v1269 = vpack.c.b16 %v1236, %v1233
        %v1270 = vpack.c.b16 %v1237, %v1234
        %v1271 = vpack.c.b16 %v1241, %v1238
        %v1272 = vpack.c.b16 %v1242, %v1239
        %v1273 = vpack.c.b16 %v1243, %v1240
        %v1274 = vpack.c.b16 %v1247, %v1244
        %v1275 = vpack.c.b16 %v1248, %v1245
        %v1276 = vpack.c.b16 %v1249, %v1246
        %v1277 = vpack.c.b16 %v1253, %v1250
        %v1278 = vpack.c.b16 %v1254, %v1251
        %v1279 = vpack.c.b16 %v1255, %v1252
        %1304 = vmatprep.subr.bf16.mxu0 %v1257
        %1305 = vmatpush1.bf16.msra.mxu0 %v1256
        %1306 = vmatprep.subr.bf16.mxu0 %v1260
        %1307 = vmatpush1.bf16.msra.mxu0 %v1259
        %1308 = vmatprep.subr.bf16.mxu0 %v1263
        %1309 = vmatpush1.bf16.msra.mxu0 %v1262
        %1310 = vmatprep.subr.bf16.mxu0 %v1266
        %1311 = vmatpush1.bf16.msra.mxu0 %v1265
        %1312 = vmatprep.subr.bf16.mxu0 %v1269
        %1313 = vmatpush1.bf16.msra.mxu0 %v1268
        %1314 = vmatprep.subr.bf16.mxu0 %v1272
        %1315 = vmatpush1.bf16.msra.mxu0 %v1271
        %1316 = vmatprep.subr.bf16.mxu0 %v1275
        %1317 = vmatpush1.bf16.msra.mxu0 %v1274
        %1318 = vmatprep.subr.bf16.mxu0 %v1278
        %1319 = vmatpush1.bf16.msra.mxu0 %v1277
        %1320 = vmatprep.subr.bf16.mxu0 0
        %1321 = vmatpush1.bf16.msra.mxu0 0
        %1322 = vmatprep.subr.bf16.mxu0 0
        %1323 = vmatpush1.bf16.msra.mxu0 0
        %1324 = vmatprep.subr.bf16.mxu0 0
        %1325 = vmatpush1.bf16.msra.mxu0 0
        %1326 = vmatprep.subr.bf16.mxu0 0
        %1327 = vmatpush1.bf16.msra.mxu0 0
        %1328 = vmatprep.subr.bf16.mxu0 0
        %1329 = vmatpush1.bf16.msra.mxu0 0
        %1330 = vmatprep.subr.bf16.mxu0 0
        %1331 = vmatpush1.bf16.msra.mxu0 0
        %1332 = vmatprep.subr.bf16.mxu0 0
        %1333 = vmatpush1.bf16.msra.mxu0 0
        %1334 = vmatprep.subr.bf16.mxu0 0
        %1335 = vmatpush1.bf16.msra.mxu0 0
        %1336 = vmatprep.mubr.bf16.mxu0 0
        %1337 = vmatmul.mubr.bf16.gmra.mrb[0].mxu0 %v1140
        %v1338 = vpop.f32.mrb[0].mxu0
        %v1339 = vadd.f32 0.0, %v1338
        %v1340 = vpop.f32.mrb[0].mxu0
        %v1341 = vadd.f32 0.0, %v1340
        %v1342 = vpop.f32.mrb[0].mxu0
        %v1343 = vadd.f32 0.0, %v1342
        %v1344 = vpop.f32.mrb[0].mxu0
        %v1345 = vadd.f32 0.0, %v1344
        %1346 = vmatprep.mubr.bf16.mxu0 0
        %1347 = vmatmul.mubr.bf16.gmra.mrb[0].mxu0 %v1141
        %v1348 = vpop.f32.mrb[0].mxu0
        %v1349 = vadd.f32 0.0, %v1348
        %v1350 = vpop.f32.mrb[0].mxu0
        %v1351 = vadd.f32 0.0, %v1350
        %v1352 = vpop.f32.mrb[0].mxu0
        %v1353 = vadd.f32 0.0, %v1352
        %v1354 = vpop.f32.mrb[0].mxu0
        %v1355 = vadd.f32 0.0, %v1354
        %1356 = vmatprep.mubr.bf16.mxu0 0
        %1357 = vmatmul.mubr.bf16.gmra.mrb[0].mxu0 %v1142
        %v1358 = vpop.f32.mrb[0].mxu0
        %v1359 = vadd.f32 0.0, %v1358
        %v1360 = vpop.f32.mrb[0].mxu0
        %v1361 = vadd.f32 0.0, %v1360
        %v1362 = vpop.f32.mrb[0].mxu0
        %v1363 = vadd.f32 0.0, %v1362
        %v1364 = vpop.f32.mrb[0].mxu0
        %v1365 = vadd.f32 0.0, %v1364
        %1366 = vmatprep.mubr.bf16.mxu0 0
        %1367 = vmatmul.mubr.bf16.gmra.mrb[0].mxu0 %v1143
        %v1368 = vpop.f32.mrb[0].mxu0
        %v1369 = vadd.f32 0.0, %v1368
        %v1370 = vpop.f32.mrb[0].mxu0
        %v1371 = vadd.f32 0.0, %v1370
        %v1372 = vpop.f32.mrb[0].mxu0
        %v1373 = vadd.f32 0.0, %v1372
        %v1374 = vpop.f32.mrb[0].mxu0
        %v1375 = vadd.f32 0.0, %v1374
        %1376 = vdwg.mxu0
        %1377 = vmatprep.subr.bf16.mxu0 0
        %1378 = vmatpush1.bf16.msra.mxu0 %v1258
        %1379 = vmatprep.subr.bf16.mxu0 0
        %1380 = vmatpush1.bf16.msra.mxu0 %v1261
        %1381 = vmatprep.subr.bf16.mxu0 0
        %1382 = vmatpush1.bf16.msra.mxu0 %v1264
        %1383 = vmatprep.subr.bf16.mxu0 0
        %1384 = vmatpush1.bf16.msra.mxu0 %v1267
        %1385 = vmatprep.subr.bf16.mxu0 0
        %1386 = vmatpush1.bf16.msra.mxu0 %v1270
        %1387 = vmatprep.subr.bf16.mxu0 0
        %1388 = vmatpush1.bf16.msra.mxu0 %v1273
        %1389 = vmatprep.subr.bf16.mxu0 0
        %1390 = vmatpush1.bf16.msra.mxu0 %v1276
        %1391 = vmatprep.subr.bf16.mxu0 0
        %1392 = vmatpush1.bf16.msra.mxu0 %v1279
        %1393 = vmatprep.subr.bf16.mxu0 0
        %1394 = vmatpush1.bf16.msra.mxu0 0
        %1395 = vmatprep.subr.bf16.mxu0 0
        %1396 = vmatpush1.bf16.msra.mxu0 0
        %1397 = vmatprep.subr.bf16.mxu0 0
        %1398 = vmatpush1.bf16.msra.mxu0 0
        %1399 = vmatprep.subr.bf16.mxu0 0
        %1400 = vmatpush1.bf16.msra.mxu0 0
        %1401 = vmatprep.subr.bf16.mxu0 0
        %1402 = vmatpush1.bf16.msra.mxu0 0
        %1403 = vmatprep.subr.bf16.mxu0 0
        %1404 = vmatpush1.bf16.msra.mxu0 0
        %1405 = vmatprep.subr.bf16.mxu0 0
        %1406 = vmatpush1.bf16.msra.mxu0 0
        %1407 = vmatprep.subr.bf16.mxu0 0
        %1408 = vmatpush1.bf16.msra.mxu0 0
        %1409 = vmatprep.mubr.bf16.mxu0 0
        %1410 = vmatmul.mubr.bf16.gmra.mrb[0].mxu0 %v1140
        %v1411 = vpop.f32.mrb[0].mxu0
        %v1412 = vadd.f32 0.0, %v1411
        %v1413 = vpop.f32.mrb[0].mxu0
        %v1414 = vpop.f32.mrb[0].mxu0
        %v1415 = vadd.f32 0.0, %v1414
        %v1416 = vpop.f32.mrb[0].mxu0
        %1417 = vmatprep.mubr.bf16.mxu0 0
        %1418 = vmatmul.mubr.bf16.gmra.mrb[0].mxu0 %v1141
        %v1419 = vpop.f32.mrb[0].mxu0
        %v1420 = vadd.f32 0.0, %v1419
        %v1421 = vpop.f32.mrb[0].mxu0
        %v1422 = vpop.f32.mrb[0].mxu0
        %v1423 = vadd.f32 0.0, %v1422
        %v1424 = vpop.f32.mrb[0].mxu0
        %1425 = vmatprep.mubr.bf16.mxu0 0
        %1426 = vmatmul.mubr.bf16.gmra.mrb[0].mxu0 %v1142
        %v1427 = vpop.f32.mrb[0].mxu0
        %v1428 = vadd.f32 0.0, %v1427
        %v1429 = vpop.f32.mrb[0].mxu0
        %v1430 = vpop.f32.mrb[0].mxu0
        %v1431 = vadd.f32 0.0, %v1430
        %v1432 = vpop.f32.mrb[0].mxu0
        %1433 = vmatprep.mubr.bf16.mxu0 0
        %1434 = vmatmul.mubr.bf16.gmra.mrb[0].mxu0 %v1143
        %v1435 = vpop.f32.mrb[0].mxu0
        %v1436 = vadd.f32 0.0, %v1435
        %v1437 = vpop.f32.mrb[0].mxu0
        %v1438 = vpop.f32.mrb[0].mxu0
        %v1439 = vadd.f32 0.0, %v1438
        %v1440 = vpop.f32.mrb[0].mxu0
        %1441 = vdwg.mxu0
        %1450 = vrot.lane.b32.xlu0 %v1339, 96
        %v1451 = vpop.permute.xlu0 %1450
        %1452 = vrot.lane.b32.xlu0 %v1343, 96
        %v1453 = vpop.permute.xlu0 %1452
        %1454 = vrot.lane.b32.xlu0 %v1349, 96
        %v1455 = vpop.permute.xlu0 %1454
        %1456 = vrot.lane.b32.xlu0 %v1353, 96
        %v1457 = vpop.permute.xlu0 %1456
        %1458 = vrot.lane.b32.xlu0 %v1359, 96
        %v1459 = vpop.permute.xlu0 %1458
        %1460 = vrot.lane.b32.xlu0 %v1363, 96
        %v1461 = vpop.permute.xlu0 %1460
        %1462 = vrot.lane.b32.xlu0 %v1369, 96
        %v1463 = vpop.permute.xlu0 %1462
        %1464 = vrot.lane.b32.xlu0 %v1373, 96
        %v1465 = vpop.permute.xlu0 %1464
        %1474 = vrot.lane.b32.xlu0 %v1339, 64
        %v1475 = vpop.permute.xlu0 %1474
        %1476 = vrot.lane.b32.xlu0 %v1343, 64
        %v1477 = vpop.permute.xlu0 %1476
        %1478 = vrot.lane.b32.xlu0 %v1349, 64
        %v1479 = vpop.permute.xlu0 %1478
        %1480 = vrot.lane.b32.xlu0 %v1353, 64
        %v1481 = vpop.permute.xlu0 %1480
        %1482 = vrot.lane.b32.xlu0 %v1359, 64
        %v1483 = vpop.permute.xlu0 %1482
        %1484 = vrot.lane.b32.xlu0 %v1363, 64
        %v1485 = vpop.permute.xlu0 %1484
        %1486 = vrot.lane.b32.xlu0 %v1369, 64
        %v1487 = vpop.permute.xlu0 %1486
        %1488 = vrot.lane.b32.xlu0 %v1373, 64
        %v1489 = vpop.permute.xlu0 %1488
        %1498 = vrot.lane.b32.xlu0 %v1339, 32
        %v1499 = vpop.permute.xlu0 %1498
        %1500 = vrot.lane.b32.xlu0 %v1343, 32
        %v1501 = vpop.permute.xlu0 %1500
        %1502 = vrot.lane.b32.xlu0 %v1349, 32
        %v1503 = vpop.permute.xlu0 %1502
        %1504 = vrot.lane.b32.xlu0 %v1353, 32
        %v1505 = vpop.permute.xlu0 %1504
        %1506 = vrot.lane.b32.xlu0 %v1359, 32
        %v1507 = vpop.permute.xlu0 %1506
        %1508 = vrot.lane.b32.xlu0 %v1363, 32
        %v1509 = vpop.permute.xlu0 %1508
        %1510 = vrot.lane.b32.xlu0 %v1369, 32
        %v1511 = vpop.permute.xlu0 %1510
        %1512 = vrot.lane.b32.xlu0 %v1373, 32
        %v1513 = vpop.permute.xlu0 %1512
        %v1522 = vpack.c.bf16 %v1343, %v1339
        %v1523 = vpack.c.bf16 %v1353, %v1349
        %v1524 = vpack.c.bf16 %v1363, %v1359
        %v1525 = vpack.c.bf16 %v1373, %v1369
        %v1526 = vpack.c.bf16 %v1453, %v1451
        %v1527 = vpack.c.bf16 %v1457, %v1455
        %v1528 = vpack.c.bf16 %v1461, %v1459
        %v1529 = vpack.c.bf16 %v1465, %v1463
        %v1530 = vpack.c.bf16 %v1477, %v1475
        %v1531 = vpack.c.bf16 %v1481, %v1479
        %v1532 = vpack.c.bf16 %v1485, %v1483
        %v1533 = vpack.c.bf16 %v1489, %v1487
        %v1534 = vpack.c.bf16 %v1501, %v1499
        %v1535 = vpack.c.bf16 %v1505, %v1503
        %v1536 = vpack.c.bf16 %v1509, %v1507
        %v1537 = vpack.c.bf16 %v1513, %v1511
        %1546 = vrot.lane.b32.xlu0 %v1341, 96
        %v1547 = vpop.permute.xlu0 %1546
        %1548 = vrot.lane.b32.xlu0 %v1345, 96
        %v1549 = vpop.permute.xlu0 %1548
        %1550 = vrot.lane.b32.xlu0 %v1351, 96
        %v1551 = vpop.permute.xlu0 %1550
        %1552 = vrot.lane.b32.xlu0 %v1355, 96
        %v1553 = vpop.permute.xlu0 %1552
        %1554 = vrot.lane.b32.xlu0 %v1361, 96
        %v1555 = vpop.permute.xlu0 %1554
        %1556 = vrot.lane.b32.xlu0 %v1365, 96
        %v1557 = vpop.permute.xlu0 %1556
        %1558 = vrot.lane.b32.xlu0 %v1371, 96
        %v1559 = vpop.permute.xlu0 %1558
        %1560 = vrot.lane.b32.xlu0 %v1375, 96
        %v1561 = vpop.permute.xlu0 %1560
        %1570 = vrot.lane.b32.xlu0 %v1341, 64
        %v1571 = vpop.permute.xlu0 %1570
        %1572 = vrot.lane.b32.xlu0 %v1345, 64
        %v1573 = vpop.permute.xlu0 %1572
        %1574 = vrot.lane.b32.xlu0 %v1351, 64
        %v1575 = vpop.permute.xlu0 %1574
        %1576 = vrot.lane.b32.xlu0 %v1355, 64
        %v1577 = vpop.permute.xlu0 %1576
        %1578 = vrot.lane.b32.xlu0 %v1361, 64
        %v1579 = vpop.permute.xlu0 %1578
        %1580 = vrot.lane.b32.xlu0 %v1365, 64
        %v1581 = vpop.permute.xlu0 %1580
        %1582 = vrot.lane.b32.xlu0 %v1371, 64
        %v1583 = vpop.permute.xlu0 %1582
        %1584 = vrot.lane.b32.xlu0 %v1375, 64
        %v1585 = vpop.permute.xlu0 %1584
        %1594 = vrot.lane.b32.xlu0 %v1341, 32
        %v1595 = vpop.permute.xlu0 %1594
        %1596 = vrot.lane.b32.xlu0 %v1345, 32
        %v1597 = vpop.permute.xlu0 %1596
        %1598 = vrot.lane.b32.xlu0 %v1351, 32
        %v1599 = vpop.permute.xlu0 %1598
        %1600 = vrot.lane.b32.xlu0 %v1355, 32
        %v1601 = vpop.permute.xlu0 %1600
        %1602 = vrot.lane.b32.xlu0 %v1361, 32
        %v1603 = vpop.permute.xlu0 %1602
        %1604 = vrot.lane.b32.xlu0 %v1365, 32
        %v1605 = vpop.permute.xlu0 %1604
        %1606 = vrot.lane.b32.xlu0 %v1371, 32
        %v1607 = vpop.permute.xlu0 %1606
        %1608 = vrot.lane.b32.xlu0 %v1375, 32
        %v1609 = vpop.permute.xlu0 %1608
        %v1618 = vpack.c.bf16 %v1345, %v1341
        %v1619 = vpack.c.bf16 %v1355, %v1351
        %v1620 = vpack.c.bf16 %v1365, %v1361
        %v1621 = vpack.c.bf16 %v1375, %v1371
        %v1622 = vpack.c.bf16 %v1549, %v1547
        %v1623 = vpack.c.bf16 %v1553, %v1551
        %v1624 = vpack.c.bf16 %v1557, %v1555
        %v1625 = vpack.c.bf16 %v1561, %v1559
        %v1626 = vpack.c.bf16 %v1573, %v1571
        %v1627 = vpack.c.bf16 %v1577, %v1575
        %v1628 = vpack.c.bf16 %v1581, %v1579
        %v1629 = vpack.c.bf16 %v1585, %v1583
        %v1630 = vpack.c.bf16 %v1597, %v1595
        %v1631 = vpack.c.bf16 %v1601, %v1599
        %v1632 = vpack.c.bf16 %v1605, %v1603
        %v1633 = vpack.c.bf16 %v1609, %v1607
        %1642 = vrot.lane.b32.xlu0 %v1412, 96
        %v1643 = vpop.permute.xlu0 %1642
        %1644 = vrot.lane.b32.xlu0 %v1415, 96
        %v1645 = vpop.permute.xlu0 %1644
        %1646 = vrot.lane.b32.xlu0 %v1420, 96
        %v1647 = vpop.permute.xlu0 %1646
        %1648 = vrot.lane.b32.xlu0 %v1423, 96
        %v1649 = vpop.permute.xlu0 %1648
        %1650 = vrot.lane.b32.xlu0 %v1428, 96
        %v1651 = vpop.permute.xlu0 %1650
        %1652 = vrot.lane.b32.xlu0 %v1431, 96
        %v1653 = vpop.permute.xlu0 %1652
        %1654 = vrot.lane.b32.xlu0 %v1436, 96
        %v1655 = vpop.permute.xlu0 %1654
        %1656 = vrot.lane.b32.xlu0 %v1439, 96
        %v1657 = vpop.permute.xlu0 %1656
        %1666 = vrot.lane.b32.xlu0 %v1412, 64
        %v1667 = vpop.permute.xlu0 %1666
        %1668 = vrot.lane.b32.xlu0 %v1415, 64
        %v1669 = vpop.permute.xlu0 %1668
        %1670 = vrot.lane.b32.xlu0 %v1420, 64
        %v1671 = vpop.permute.xlu0 %1670
        %1672 = vrot.lane.b32.xlu0 %v1423, 64
        %v1673 = vpop.permute.xlu0 %1672
        %1674 = vrot.lane.b32.xlu0 %v1428, 64
        %v1675 = vpop.permute.xlu0 %1674
        %1676 = vrot.lane.b32.xlu0 %v1431, 64
        %v1677 = vpop.permute.xlu0 %1676
        %1678 = vrot.lane.b32.xlu0 %v1436, 64
        %v1679 = vpop.permute.xlu0 %1678
        %1680 = vrot.lane.b32.xlu0 %v1439, 64
        %v1681 = vpop.permute.xlu0 %1680
        %1690 = vrot.lane.b32.xlu0 %v1412, 32
        %v1691 = vpop.permute.xlu0 %1690
        %1692 = vrot.lane.b32.xlu0 %v1415, 32
        %v1693 = vpop.permute.xlu0 %1692
        %1694 = vrot.lane.b32.xlu0 %v1420, 32
        %v1695 = vpop.permute.xlu0 %1694
        %1696 = vrot.lane.b32.xlu0 %v1423, 32
        %v1697 = vpop.permute.xlu0 %1696
        %1698 = vrot.lane.b32.xlu0 %v1428, 32
        %v1699 = vpop.permute.xlu0 %1698
        %1700 = vrot.lane.b32.xlu0 %v1431, 32
        %v1701 = vpop.permute.xlu0 %1700
        %1702 = vrot.lane.b32.xlu0 %v1436, 32
        %v1703 = vpop.permute.xlu0 %1702
        %1704 = vrot.lane.b32.xlu0 %v1439, 32
        %v1705 = vpop.permute.xlu0 %1704
        %v1714 = vpack.c.bf16 %v1415, %v1412
        %v1715 = vpack.c.bf16 %v1423, %v1420
        %v1716 = vpack.c.bf16 %v1431, %v1428
        %v1717 = vpack.c.bf16 %v1439, %v1436
        %v1718 = vpack.c.bf16 %v1645, %v1643
        %v1719 = vpack.c.bf16 %v1649, %v1647
        %v1720 = vpack.c.bf16 %v1653, %v1651
        %v1721 = vpack.c.bf16 %v1657, %v1655
        %v1722 = vpack.c.bf16 %v1669, %v1667
        %v1723 = vpack.c.bf16 %v1673, %v1671
        %v1724 = vpack.c.bf16 %v1677, %v1675
        %v1725 = vpack.c.bf16 %v1681, %v1679
        %v1726 = vpack.c.bf16 %v1693, %v1691
        %v1727 = vpack.c.bf16 %v1697, %v1695
        %v1728 = vpack.c.bf16 %v1701, %v1699
        %v1729 = vpack.c.bf16 %v1705, %v1703
        %vm1730 = vcmask 261120
        %v1732 = vsel %vm1730, %v1522, 0
        %v1735 = vsel %vm1730, %v1523, 0
        %v1738 = vsel %vm1730, %v1618, 0
        %v1741 = vsel %vm1730, %v1619, 0
        %1743 = vmatprep.subr.bf16.mxu0 0
        %1744 = vmatpush1.bf16.xpose.msra.mxu0 %v1738
        %1745 = vmatprep.subr.bf16.mxu0 0
        %1746 = vmatpush1.bf16.xpose.msra.mxu0 %v1741
        %1747 = vmatprep.subr.bf16.mxu0 0
        %1748 = vmatpush1.bf16.xpose.msra.mxu0 0
        %1749 = vmatprep.subr.bf16.mxu0 0
        %1750 = vmatpush1.bf16.xpose.msra.mxu0 0
        %1751 = vmatprep.subr.bf16.mxu0 0
        %1752 = vmatpush1.bf16.xpose.msra.mxu0 0
        %1753 = vmatprep.subr.bf16.mxu0 0
        %1754 = vmatpush1.bf16.xpose.msra.mxu0 0
        %1755 = vmatprep.subr.bf16.mxu0 0
        %1756 = vmatpush1.bf16.xpose.msra.mxu0 0
        %1757 = vmatprep.subr.bf16.mxu0 0
        %1758 = vmatpush1.bf16.xpose.msra.mxu0 0
        %1759 = vmatprep.subr.bf16.mxu0 0
        %1760 = vmatpush1.bf16.xpose.msra.mxu0 0
        %1761 = vmatprep.subr.bf16.mxu0 0
        %1762 = vmatpush1.bf16.xpose.msra.mxu0 0
        %1763 = vmatprep.subr.bf16.mxu0 0
        %1764 = vmatpush1.bf16.xpose.msra.mxu0 0
        %1765 = vmatprep.subr.bf16.mxu0 0
        %1766 = vmatpush1.bf16.xpose.msra.mxu0 0
        %1767 = vmatprep.subr.bf16.mxu0 0
        %1768 = vmatpush1.bf16.xpose.msra.mxu0 0
        %1769 = vmatprep.subr.bf16.mxu0 0
        %1770 = vmatpush1.bf16.xpose.msra.mxu0 0
        %1771 = vmatprep.subr.bf16.mxu0 0
        %1772 = vmatpush1.bf16.xpose.msra.mxu0 0
        %1773 = vmatprep.subr.bf16.mxu0 0
        %1774 = vmatpush1.bf16.xpose.msra.mxu0 0
        %1775 = vmatprep.mubr.bf16.mxu0 0
        %1776 = vmatmul.mubr.bf16.gmra.mrb[0].mxu0 %v1732
        %v1777 = vpop.f32.mrb[0].mxu0
        %v1778 = vadd.f32 0.0, %v1777
        %v1779 = vpop.f32.mrb[0].mxu0
        %v1780 = vpop.f32.mrb[0].mxu0
        %v1781 = vadd.f32 0.0, %v1780
        %v1782 = vpop.f32.mrb[0].mxu0
        %1783 = vmatprep.mubr.bf16.mxu0 0
        %1784 = vmatmul.mubr.bf16.gmra.mrb[0].mxu0 %v1735
        %v1785 = vpop.f32.mrb[0].mxu0
        %v1786 = vadd.f32 0.0, %v1785
        %v1787 = vpop.f32.mrb[0].mxu0
        %v1788 = vpop.f32.mrb[0].mxu0
        %v1789 = vadd.f32 0.0, %v1788
        %v1790 = vpop.f32.mrb[0].mxu0
        %1791 = vdwg.mxu0
        %v1793 = vsel %vm1730, %v1524, 0
        %v1796 = vsel %vm1730, %v1525, 0
        %v1799 = vsel %vm1730, %v1620, 0
        %v1802 = vsel %vm1730, %v1621, 0
        %1804 = vmatprep.subr.bf16.mxu0 0
        %1805 = vmatpush1.bf16.xpose.msra.mxu0 %v1799
        %1806 = vmatprep.subr.bf16.mxu0 0
        %1807 = vmatpush1.bf16.xpose.msra.mxu0 %v1802
        %1808 = vmatprep.subr.bf16.mxu0 0
        %1809 = vmatpush1.bf16.xpose.msra.mxu0 0
        %1810 = vmatprep.subr.bf16.mxu0 0
        %1811 = vmatpush1.bf16.xpose.msra.mxu0 0
        %1812 = vmatprep.subr.bf16.mxu0 0
        %1813 = vmatpush1.bf16.xpose.msra.mxu0 0
        %1814 = vmatprep.subr.bf16.mxu0 0
        %1815 = vmatpush1.bf16.xpose.msra.mxu0 0
        %1816 = vmatprep.subr.bf16.mxu0 0
        %1817 = vmatpush1.bf16.xpose.msra.mxu0 0
        %1818 = vmatprep.subr.bf16.mxu0 0
        %1819 = vmatpush1.bf16.xpose.msra.mxu0 0
        %1820 = vmatprep.subr.bf16.mxu0 0
        %1821 = vmatpush1.bf16.xpose.msra.mxu0 0
        %1822 = vmatprep.subr.bf16.mxu0 0
        %1823 = vmatpush1.bf16.xpose.msra.mxu0 0
        %1824 = vmatprep.subr.bf16.mxu0 0
        %1825 = vmatpush1.bf16.xpose.msra.mxu0 0
        %1826 = vmatprep.subr.bf16.mxu0 0
        %1827 = vmatpush1.bf16.xpose.msra.mxu0 0
        %1828 = vmatprep.subr.bf16.mxu0 0
        %1829 = vmatpush1.bf16.xpose.msra.mxu0 0
        %1830 = vmatprep.subr.bf16.mxu0 0
        %1831 = vmatpush1.bf16.xpose.msra.mxu0 0
        %1832 = vmatprep.subr.bf16.mxu0 0
        %1833 = vmatpush1.bf16.xpose.msra.mxu0 0
        %1834 = vmatprep.subr.bf16.mxu0 0
        %1835 = vmatpush1.bf16.xpose.msra.mxu0 0
        %1836 = vmatprep.mubr.bf16.mxu0 0
        %1837 = vmatmul.mubr.bf16.gmra.mrb[0].mxu0 %v1793
        %v1838 = vpop.f32.mrb[0].mxu0
        %v1839 = vadd.f32 0.0, %v1838
        %v1840 = vpop.f32.mrb[0].mxu0
        %v1841 = vpop.f32.mrb[0].mxu0
        %v1842 = vadd.f32 0.0, %v1841
        %v1843 = vpop.f32.mrb[0].mxu0
        %1844 = vmatprep.mubr.bf16.mxu0 0
        %1845 = vmatmul.mubr.bf16.gmra.mrb[0].mxu0 %v1796
        %v1846 = vpop.f32.mrb[0].mxu0
        %v1847 = vadd.f32 0.0, %v1846
        %v1848 = vpop.f32.mrb[0].mxu0
        %v1849 = vpop.f32.mrb[0].mxu0
        %v1850 = vadd.f32 0.0, %v1849
        %v1851 = vpop.f32.mrb[0].mxu0
        %1852 = vdwg.mxu0
        %v1854 = vsel %vm1730, %v1526, 0
        %v1857 = vsel %vm1730, %v1527, 0
        %v1860 = vsel %vm1730, %v1622, 0
        %v1863 = vsel %vm1730, %v1623, 0
        %1865 = vmatprep.subr.bf16.mxu0 0
        %1866 = vmatpush1.bf16.xpose.msra.mxu0 %v1860
        %1867 = vmatprep.subr.bf16.mxu0 0
        %1868 = vmatpush1.bf16.xpose.msra.mxu0 %v1863
        %1869 = vmatprep.subr.bf16.mxu0 0
        %1870 = vmatpush1.bf16.xpose.msra.mxu0 0
        %1871 = vmatprep.subr.bf16.mxu0 0
        %1872 = vmatpush1.bf16.xpose.msra.mxu0 0
        %1873 = vmatprep.subr.bf16.mxu0 0
        %1874 = vmatpush1.bf16.xpose.msra.mxu0 0
        %1875 = vmatprep.subr.bf16.mxu0 0
        %1876 = vmatpush1.bf16.xpose.msra.mxu0 0
        %1877 = vmatprep.subr.bf16.mxu0 0
        %1878 = vmatpush1.bf16.xpose.msra.mxu0 0
        %1879 = vmatprep.subr.bf16.mxu0 0
        %1880 = vmatpush1.bf16.xpose.msra.mxu0 0
        %1881 = vmatprep.subr.bf16.mxu0 0
        %1882 = vmatpush1.bf16.xpose.msra.mxu0 0
        %1883 = vmatprep.subr.bf16.mxu0 0
        %1884 = vmatpush1.bf16.xpose.msra.mxu0 0
        %1885 = vmatprep.subr.bf16.mxu0 0
        %1886 = vmatpush1.bf16.xpose.msra.mxu0 0
        %1887 = vmatprep.subr.bf16.mxu0 0
        %1888 = vmatpush1.bf16.xpose.msra.mxu0 0
        %1889 = vmatprep.subr.bf16.mxu0 0
        %1890 = vmatpush1.bf16.xpose.msra.mxu0 0
        %1891 = vmatprep.subr.bf16.mxu0 0
        %1892 = vmatpush1.bf16.xpose.msra.mxu0 0
        %1893 = vmatprep.subr.bf16.mxu0 0
        %1894 = vmatpush1.bf16.xpose.msra.mxu0 0
        %1895 = vmatprep.subr.bf16.mxu0 0
        %1896 = vmatpush1.bf16.xpose.msra.mxu0 0
        %1897 = vmatprep.mubr.bf16.mxu0 0
        %1898 = vmatmul.mubr.bf16.gmra.mrb[0].mxu0 %v1854
        %v1899 = vpop.f32.mrb[0].mxu0
        %v1900 = vadd.f32 0.0, %v1899
        %v1901 = vpop.f32.mrb[0].mxu0
        %v1902 = vpop.f32.mrb[0].mxu0
        %v1903 = vadd.f32 0.0, %v1902
        %v1904 = vpop.f32.mrb[0].mxu0
        %1905 = vmatprep.mubr.bf16.mxu0 0
        %1906 = vmatmul.mubr.bf16.gmra.mrb[0].mxu0 %v1857
        %v1907 = vpop.f32.mrb[0].mxu0
        %v1908 = vadd.f32 0.0, %v1907
        %v1909 = vpop.f32.mrb[0].mxu0
        %v1910 = vpop.f32.mrb[0].mxu0
        %v1911 = vadd.f32 0.0, %v1910
        %v1912 = vpop.f32.mrb[0].mxu0
        %1913 = vdwg.mxu0
        %v1915 = vsel %vm1730, %v1528, 0
        %v1918 = vsel %vm1730, %v1529, 0
        %v1921 = vsel %vm1730, %v1624, 0
        %v1924 = vsel %vm1730, %v1625, 0
        %1926 = vmatprep.subr.bf16.mxu0 0
        %1927 = vmatpush1.bf16.xpose.msra.mxu0 %v1921
        %1928 = vmatprep.subr.bf16.mxu0 0
        %1929 = vmatpush1.bf16.xpose.msra.mxu0 %v1924
        %1930 = vmatprep.subr.bf16.mxu0 0
        %1931 = vmatpush1.bf16.xpose.msra.mxu0 0
        %1932 = vmatprep.subr.bf16.mxu0 0
        %1933 = vmatpush1.bf16.xpose.msra.mxu0 0
        %1934 = vmatprep.subr.bf16.mxu0 0
        %1935 = vmatpush1.bf16.xpose.msra.mxu0 0
        %1936 = vmatprep.subr.bf16.mxu0 0
        %1937 = vmatpush1.bf16.xpose.msra.mxu0 0
        %1938 = vmatprep.subr.bf16.mxu0 0
        %1939 = vmatpush1.bf16.xpose.msra.mxu0 0
        %1940 = vmatprep.subr.bf16.mxu0 0
        %1941 = vmatpush1.bf16.xpose.msra.mxu0 0
        %1942 = vmatprep.subr.bf16.mxu0 0
        %1943 = vmatpush1.bf16.xpose.msra.mxu0 0
        %1944 = vmatprep.subr.bf16.mxu0 0
        %1945 = vmatpush1.bf16.xpose.msra.mxu0 0
        %1946 = vmatprep.subr.bf16.mxu0 0
        %1947 = vmatpush1.bf16.xpose.msra.mxu0 0
        %1948 = vmatprep.subr.bf16.mxu0 0
        %1949 = vmatpush1.bf16.xpose.msra.mxu0 0
        %1950 = vmatprep.subr.bf16.mxu0 0
        %1951 = vmatpush1.bf16.xpose.msra.mxu0 0
        %1952 = vmatprep.subr.bf16.mxu0 0
        %1953 = vmatpush1.bf16.xpose.msra.mxu0 0
        %1954 = vmatprep.subr.bf16.mxu0 0
        %1955 = vmatpush1.bf16.xpose.msra.mxu0 0
        %1956 = vmatprep.subr.bf16.mxu0 0
        %1957 = vmatpush1.bf16.xpose.msra.mxu0 0
        %1958 = vmatprep.mubr.bf16.mxu0 0
        %1959 = vmatmul.mubr.bf16.gmra.mrb[0].mxu0 %v1915
        %v1960 = vpop.f32.mrb[0].mxu0
        %v1961 = vadd.f32 0.0, %v1960
        %v1962 = vpop.f32.mrb[0].mxu0
        %v1963 = vpop.f32.mrb[0].mxu0
        %v1964 = vadd.f32 0.0, %v1963
        %v1965 = vpop.f32.mrb[0].mxu0
        %1966 = vmatprep.mubr.bf16.mxu0 0
        %1967 = vmatmul.mubr.bf16.gmra.mrb[0].mxu0 %v1918
        %v1968 = vpop.f32.mrb[0].mxu0
        %v1969 = vadd.f32 0.0, %v1968
        %v1970 = vpop.f32.mrb[0].mxu0
        %v1971 = vpop.f32.mrb[0].mxu0
        %v1972 = vadd.f32 0.0, %v1971
        %v1973 = vpop.f32.mrb[0].mxu0
        %1974 = vdwg.mxu0
        %v1976 = vsel %vm1730, %v1530, 0
        %v1979 = vsel %vm1730, %v1531, 0
        %v1982 = vsel %vm1730, %v1626, 0
        %v1985 = vsel %vm1730, %v1627, 0
        %1987 = vmatprep.subr.bf16.mxu0 0
        %1988 = vmatpush1.bf16.xpose.msra.mxu0 %v1982
        %1989 = vmatprep.subr.bf16.mxu0 0
        %1990 = vmatpush1.bf16.xpose.msra.mxu0 %v1985
        %1991 = vmatprep.subr.bf16.mxu0 0
        %1992 = vmatpush1.bf16.xpose.msra.mxu0 0
        %1993 = vmatprep.subr.bf16.mxu0 0
        %1994 = vmatpush1.bf16.xpose.msra.mxu0 0
        %1995 = vmatprep.subr.bf16.mxu0 0
        %1996 = vmatpush1.bf16.xpose.msra.mxu0 0
        %1997 = vmatprep.subr.bf16.mxu0 0
        %1998 = vmatpush1.bf16.xpose.msra.mxu0 0
        %1999 = vmatprep.subr.bf16.mxu0 0
        %2000 = vmatpush1.bf16.xpose.msra.mxu0 0
        %2001 = vmatprep.subr.bf16.mxu0 0
        %2002 = vmatpush1.bf16.xpose.msra.mxu0 0
        %2003 = vmatprep.subr.bf16.mxu0 0
        %2004 = vmatpush1.bf16.xpose.msra.mxu0 0
        %2005 = vmatprep.subr.bf16.mxu0 0
        %2006 = vmatpush1.bf16.xpose.msra.mxu0 0
        %2007 = vmatprep.subr.bf16.mxu0 0
        %2008 = vmatpush1.bf16.xpose.msra.mxu0 0
        %2009 = vmatprep.subr.bf16.mxu0 0
        %2010 = vmatpush1.bf16.xpose.msra.mxu0 0
        %2011 = vmatprep.subr.bf16.mxu0 0
        %2012 = vmatpush1.bf16.xpose.msra.mxu0 0
        %2013 = vmatprep.subr.bf16.mxu0 0
        %2014 = vmatpush1.bf16.xpose.msra.mxu0 0
        %2015 = vmatprep.subr.bf16.mxu0 0
        %2016 = vmatpush1.bf16.xpose.msra.mxu0 0
        %2017 = vmatprep.subr.bf16.mxu0 0
        %2018 = vmatpush1.bf16.xpose.msra.mxu0 0
        %2019 = vmatprep.mubr.bf16.mxu0 0
        %2020 = vmatmul.mubr.bf16.gmra.mrb[0].mxu0 %v1976
        %v2021 = vpop.f32.mrb[0].mxu0
        %v2022 = vadd.f32 0.0, %v2021
        %v2023 = vpop.f32.mrb[0].mxu0
        %v2024 = vpop.f32.mrb[0].mxu0
        %v2025 = vadd.f32 0.0, %v2024
        %v2026 = vpop.f32.mrb[0].mxu0
        %2027 = vmatprep.mubr.bf16.mxu0 0
        %2028 = vmatmul.mubr.bf16.gmra.mrb[0].mxu0 %v1979
        %v2029 = vpop.f32.mrb[0].mxu0
        %v2030 = vadd.f32 0.0, %v2029
        %v2031 = vpop.f32.mrb[0].mxu0
        %v2032 = vpop.f32.mrb[0].mxu0
        %v2033 = vadd.f32 0.0, %v2032
        %v2034 = vpop.f32.mrb[0].mxu0
        %2035 = vdwg.mxu0
        %v2037 = vsel %vm1730, %v1532, 0
        %v2040 = vsel %vm1730, %v1533, 0
        %v2043 = vsel %vm1730, %v1628, 0
        %v2046 = vsel %vm1730, %v1629, 0
        %2048 = vmatprep.subr.bf16.mxu0 0
        %2049 = vmatpush1.bf16.xpose.msra.mxu0 %v2043
        %2050 = vmatprep.subr.bf16.mxu0 0
        %2051 = vmatpush1.bf16.xpose.msra.mxu0 %v2046
        %2052 = vmatprep.subr.bf16.mxu0 0
        %2053 = vmatpush1.bf16.xpose.msra.mxu0 0
        %2054 = vmatprep.subr.bf16.mxu0 0
        %2055 = vmatpush1.bf16.xpose.msra.mxu0 0
        %2056 = vmatprep.subr.bf16.mxu0 0
        %2057 = vmatpush1.bf16.xpose.msra.mxu0 0
        %2058 = vmatprep.subr.bf16.mxu0 0
        %2059 = vmatpush1.bf16.xpose.msra.mxu0 0
        %2060 = vmatprep.subr.bf16.mxu0 0
        %2061 = vmatpush1.bf16.xpose.msra.mxu0 0
        %2062 = vmatprep.subr.bf16.mxu0 0
        %2063 = vmatpush1.bf16.xpose.msra.mxu0 0
        %2064 = vmatprep.subr.bf16.mxu0 0
        %2065 = vmatpush1.bf16.xpose.msra.mxu0 0
        %2066 = vmatprep.subr.bf16.mxu0 0
        %2067 = vmatpush1.bf16.xpose.msra.mxu0 0
        %2068 = vmatprep.subr.bf16.mxu0 0
        %2069 = vmatpush1.bf16.xpose.msra.mxu0 0
        %2070 = vmatprep.subr.bf16.mxu0 0
        %2071 = vmatpush1.bf16.xpose.msra.mxu0 0
        %2072 = vmatprep.subr.bf16.mxu0 0
        %2073 = vmatpush1.bf16.xpose.msra.mxu0 0
        %2074 = vmatprep.subr.bf16.mxu0 0
        %2075 = vmatpush1.bf16.xpose.msra.mxu0 0
        %2076 = vmatprep.subr.bf16.mxu0 0
        %2077 = vmatpush1.bf16.xpose.msra.mxu0 0
        %2078 = vmatprep.subr.bf16.mxu0 0
        %2079 = vmatpush1.bf16.xpose.msra.mxu0 0
        %2080 = vmatprep.mubr.bf16.mxu0 0
        %2081 = vmatmul.mubr.bf16.gmra.mrb[0].mxu0 %v2037
        %v2082 = vpop.f32.mrb[0].mxu0
        %v2083 = vadd.f32 0.0, %v2082
        %v2084 = vpop.f32.mrb[0].mxu0
        %v2085 = vpop.f32.mrb[0].mxu0
        %v2086 = vadd.f32 0.0, %v2085
        %v2087 = vpop.f32.mrb[0].mxu0
        %2088 = vmatprep.mubr.bf16.mxu0 0
        %2089 = vmatmul.mubr.bf16.gmra.mrb[0].mxu0 %v2040
        %v2090 = vpop.f32.mrb[0].mxu0
        %v2091 = vadd.f32 0.0, %v2090
        %v2092 = vpop.f32.mrb[0].mxu0
        %v2093 = vpop.f32.mrb[0].mxu0
        %v2094 = vadd.f32 0.0, %v2093
        %v2095 = vpop.f32.mrb[0].mxu0
        %2096 = vdwg.mxu0
        %v2098 = vsel %vm1730, %v1534, 0
        %v2101 = vsel %vm1730, %v1535, 0
        %v2104 = vsel %vm1730, %v1630, 0
        %v2107 = vsel %vm1730, %v1631, 0
        %2109 = vmatprep.subr.bf16.mxu0 0
        %2110 = vmatpush1.bf16.xpose.msra.mxu0 %v2104
        %2111 = vmatprep.subr.bf16.mxu0 0
        %2112 = vmatpush1.bf16.xpose.msra.mxu0 %v2107
        %2113 = vmatprep.subr.bf16.mxu0 0
        %2114 = vmatpush1.bf16.xpose.msra.mxu0 0
        %2115 = vmatprep.subr.bf16.mxu0 0
        %2116 = vmatpush1.bf16.xpose.msra.mxu0 0
        %2117 = vmatprep.subr.bf16.mxu0 0
        %2118 = vmatpush1.bf16.xpose.msra.mxu0 0
        %2119 = vmatprep.subr.bf16.mxu0 0
        %2120 = vmatpush1.bf16.xpose.msra.mxu0 0
        %2121 = vmatprep.subr.bf16.mxu0 0
        %2122 = vmatpush1.bf16.xpose.msra.mxu0 0
        %2123 = vmatprep.subr.bf16.mxu0 0
        %2124 = vmatpush1.bf16.xpose.msra.mxu0 0
        %2125 = vmatprep.subr.bf16.mxu0 0
        %2126 = vmatpush1.bf16.xpose.msra.mxu0 0
        %2127 = vmatprep.subr.bf16.mxu0 0
        %2128 = vmatpush1.bf16.xpose.msra.mxu0 0
        %2129 = vmatprep.subr.bf16.mxu0 0
        %2130 = vmatpush1.bf16.xpose.msra.mxu0 0
        %2131 = vmatprep.subr.bf16.mxu0 0
        %2132 = vmatpush1.bf16.xpose.msra.mxu0 0
        %2133 = vmatprep.subr.bf16.mxu0 0
        %2134 = vmatpush1.bf16.xpose.msra.mxu0 0
        %2135 = vmatprep.subr.bf16.mxu0 0
        %2136 = vmatpush1.bf16.xpose.msra.mxu0 0
        %2137 = vmatprep.subr.bf16.mxu0 0
        %2138 = vmatpush1.bf16.xpose.msra.mxu0 0
        %2139 = vmatprep.subr.bf16.mxu0 0
        %2140 = vmatpush1.bf16.xpose.msra.mxu0 0
        %2141 = vmatprep.mubr.bf16.mxu0 0
        %2142 = vmatmul.mubr.bf16.gmra.mrb[0].mxu0 %v2098
        %v2143 = vpop.f32.mrb[0].mxu0
        %v2144 = vadd.f32 0.0, %v2143
        %v2145 = vpop.f32.mrb[0].mxu0
        %v2146 = vpop.f32.mrb[0].mxu0
        %v2147 = vadd.f32 0.0, %v2146
        %v2148 = vpop.f32.mrb[0].mxu0
        %2149 = vmatprep.mubr.bf16.mxu0 0
        %2150 = vmatmul.mubr.bf16.gmra.mrb[0].mxu0 %v2101
        %v2151 = vpop.f32.mrb[0].mxu0
        %v2152 = vadd.f32 0.0, %v2151
        %v2153 = vpop.f32.mrb[0].mxu0
        %v2154 = vpop.f32.mrb[0].mxu0
        %v2155 = vadd.f32 0.0, %v2154
        %v2156 = vpop.f32.mrb[0].mxu0
        %2157 = vdwg.mxu0
        %v2159 = vsel %vm1730, %v1536, 0
        %v2162 = vsel %vm1730, %v1537, 0
        %v2165 = vsel %vm1730, %v1632, 0
        %v2168 = vsel %vm1730, %v1633, 0
        %2170 = vmatprep.subr.bf16.mxu0 0
        %2171 = vmatpush1.bf16.xpose.msra.mxu0 %v2165
        %2172 = vmatprep.subr.bf16.mxu0 0
        %2173 = vmatpush1.bf16.xpose.msra.mxu0 %v2168
        %2174 = vmatprep.subr.bf16.mxu0 0
        %2175 = vmatpush1.bf16.xpose.msra.mxu0 0
        %2176 = vmatprep.subr.bf16.mxu0 0
        %2177 = vmatpush1.bf16.xpose.msra.mxu0 0
        %2178 = vmatprep.subr.bf16.mxu0 0
        %2179 = vmatpush1.bf16.xpose.msra.mxu0 0
        %2180 = vmatprep.subr.bf16.mxu0 0
        %2181 = vmatpush1.bf16.xpose.msra.mxu0 0
        %2182 = vmatprep.subr.bf16.mxu0 0
        %2183 = vmatpush1.bf16.xpose.msra.mxu0 0
        %2184 = vmatprep.subr.bf16.mxu0 0
        %2185 = vmatpush1.bf16.xpose.msra.mxu0 0
        %2186 = vmatprep.subr.bf16.mxu0 0
        %2187 = vmatpush1.bf16.xpose.msra.mxu0 0
        %2188 = vmatprep.subr.bf16.mxu0 0
        %2189 = vmatpush1.bf16.xpose.msra.mxu0 0
        %2190 = vmatprep.subr.bf16.mxu0 0
        %2191 = vmatpush1.bf16.xpose.msra.mxu0 0
        %2192 = vmatprep.subr.bf16.mxu0 0
        %2193 = vmatpush1.bf16.xpose.msra.mxu0 0
        %2194 = vmatprep.subr.bf16.mxu0 0
        %2195 = vmatpush1.bf16.xpose.msra.mxu0 0
        %2196 = vmatprep.subr.bf16.mxu0 0
        %2197 = vmatpush1.bf16.xpose.msra.mxu0 0
        %2198 = vmatprep.subr.bf16.mxu0 0
        %2199 = vmatpush1.bf16.xpose.msra.mxu0 0
        %2200 = vmatprep.subr.bf16.mxu0 0
        %2201 = vmatpush1.bf16.xpose.msra.mxu0 0
        %2202 = vmatprep.mubr.bf16.mxu0 0
        %2203 = vmatmul.mubr.bf16.gmra.mrb[0].mxu0 %v2159
        %v2204 = vpop.f32.mrb[0].mxu0
        %v2205 = vadd.f32 0.0, %v2204
        %v2206 = vpop.f32.mrb[0].mxu0
        %v2207 = vpop.f32.mrb[0].mxu0
        %v2208 = vadd.f32 0.0, %v2207
        %v2209 = vpop.f32.mrb[0].mxu0
        %2210 = vmatprep.mubr.bf16.mxu0 0
        %2211 = vmatmul.mubr.bf16.gmra.mrb[0].mxu0 %v2162
        %v2212 = vpop.f32.mrb[0].mxu0
        %v2213 = vadd.f32 0.0, %v2212
        %v2214 = vpop.f32.mrb[0].mxu0
        %v2215 = vpop.f32.mrb[0].mxu0
        %v2216 = vadd.f32 0.0, %v2215
        %v2217 = vpop.f32.mrb[0].mxu0
        %2218 = vdwg.mxu0
        %v2219 = vmul.f32 %v1778, 0.17677669
        %v2220 = vmul.f32 %v1781, 0.17677669
        %v2221 = vmul.f32 %v1786, 0.17677669
        %v2222 = vmul.f32 %v1789, 0.17677669
        %v2223 = vmul.f32 %v1839, 0.17677669
        %v2224 = vmul.f32 %v1842, 0.17677669
        %v2225 = vmul.f32 %v1847, 0.17677669
        %v2226 = vmul.f32 %v1850, 0.17677669
        %v2227 = vmul.f32 %v1900, 0.17677669
        %v2228 = vmul.f32 %v1903, 0.17677669
        %v2229 = vmul.f32 %v1908, 0.17677669
        %v2230 = vmul.f32 %v1911, 0.17677669
        %v2231 = vmul.f32 %v1961, 0.17677669
        %v2232 = vmul.f32 %v1964, 0.17677669
        %v2233 = vmul.f32 %v1969, 0.17677669
        %v2234 = vmul.f32 %v1972, 0.17677669
        %v2235 = vmul.f32 %v2022, 0.17677669
        %v2236 = vmul.f32 %v2025, 0.17677669
        %v2237 = vmul.f32 %v2030, 0.17677669
        %v2238 = vmul.f32 %v2033, 0.17677669
        %v2239 = vmul.f32 %v2083, 0.17677669
        %v2240 = vmul.f32 %v2086, 0.17677669
        %v2241 = vmul.f32 %v2091, 0.17677669
        %v2242 = vmul.f32 %v2094, 0.17677669
        %v2243 = vmul.f32 %v2144, 0.17677669
        %v2244 = vmul.f32 %v2147, 0.17677669
        %v2245 = vmul.f32 %v2152, 0.17677669
        %v2246 = vmul.f32 %v2155, 0.17677669
        %v2247 = vmul.f32 %v2205, 0.17677669
        %v2248 = vmul.f32 %v2208, 0.17677669
        %v2249 = vmul.f32 %v2213, 0.17677669
        %v2250 = vmul.f32 %v2216, 0.17677669
        %v2251 = vlaneseq
        %v2252 = vand.u32 %v2251, 127
        %vm2253 = vcmp.lt.s32.totalorder %v2252, 17
        %v2254 = vsel %vm2253, 1, 0
        %vm2255 = vcmp.eq.s32.totalorder %v2254, 1
        %v2256 = vsel %vm2255, %v2219, -1e+30
        %v2257 = vsel %vm2255, %v2220, -1e+30
        %v2258 = vsel %vm2255, %v2221, -1e+30
        %v2259 = vsel %vm2255, %v2222, -1e+30
        %v2260 = vsel %vm2255, %v2223, -1e+30
        %v2261 = vsel %vm2255, %v2224, -1e+30
        %v2262 = vsel %vm2255, %v2225, -1e+30
        %v2263 = vsel %vm2255, %v2226, -1e+30
        %v2264 = vsel %vm2255, %v2227, -1e+30
        %v2265 = vsel %vm2255, %v2228, -1e+30
        %v2266 = vsel %vm2255, %v2229, -1e+30
        %v2267 = vsel %vm2255, %v2230, -1e+30
        %v2268 = vsel %vm2255, %v2231, -1e+30
        %v2269 = vsel %vm2255, %v2232, -1e+30
        %v2270 = vsel %vm2255, %v2233, -1e+30
        %v2271 = vsel %vm2255, %v2234, -1e+30
        %v2272 = vsel %vm2255, %v2235, -1e+30
        %v2273 = vsel %vm2255, %v2236, -1e+30
        %v2274 = vsel %vm2255, %v2237, -1e+30
        %v2275 = vsel %vm2255, %v2238, -1e+30
        %v2276 = vsel %vm2255, %v2239, -1e+30
        %v2277 = vsel %vm2255, %v2240, -1e+30
        %v2278 = vsel %vm2255, %v2241, -1e+30
        %v2279 = vsel %vm2255, %v2242, -1e+30
        %v2280 = vsel %vm2255, %v2243, -1e+30
        %v2281 = vsel %vm2255, %v2244, -1e+30
        %v2282 = vsel %vm2255, %v2245, -1e+30
        %v2283 = vsel %vm2255, %v2246, -1e+30
        %v2284 = vsel %vm2255, %v2247, -1e+30
        %v2285 = vsel %vm2255, %v2248, -1e+30
        %v2286 = vsel %vm2255, %v2249, -1e+30
        %v2287 = vsel %vm2255, %v2250, -1e+30
        %v2288 = vsel %vm1730, %v2256, -inf
        %2289 = vmax.xlane.f32.xlu0 %v2288
        %v2290 = vpop.xlane.xlu0 %2289
        %v2291 = vsel %vm1730, %v2257, -inf
        %2292 = vmax.xlane.f32.xlu0 %v2291
        %v2293 = vpop.xlane.xlu0 %2292
        %v2294 = vsel %vm1730, %v2258, -inf
        %2295 = vmax.xlane.f32.xlu0 %v2294
        %v2296 = vpop.xlane.xlu0 %2295
        %v2297 = vsel %vm1730, %v2259, -inf
        %2298 = vmax.xlane.f32.xlu0 %v2297
        %v2299 = vpop.xlane.xlu0 %2298
        %v2300 = vsel %vm1730, %v2260, -inf
        %2301 = vmax.xlane.f32.xlu0 %v2300
        %v2302 = vpop.xlane.xlu0 %2301
        %v2303 = vsel %vm1730, %v2261, -inf
        %2304 = vmax.xlane.f32.xlu0 %v2303
        %v2305 = vpop.xlane.xlu0 %2304
        %v2306 = vsel %vm1730, %v2262, -inf
        %2307 = vmax.xlane.f32.xlu0 %v2306
        %v2308 = vpop.xlane.xlu0 %2307
        %v2309 = vsel %vm1730, %v2263, -inf
        %2310 = vmax.xlane.f32.xlu0 %v2309
        %v2311 = vpop.xlane.xlu0 %2310
        %v2312 = vsel %vm1730, %v2264, -inf
        %2313 = vmax.xlane.f32.xlu0 %v2312
        %v2314 = vpop.xlane.xlu0 %2313
        %v2315 = vsel %vm1730, %v2265, -inf
        %2316 = vmax.xlane.f32.xlu0 %v2315
        %v2317 = vpop.xlane.xlu0 %2316
        %v2318 = vsel %vm1730, %v2266, -inf
        %2319 = vmax.xlane.f32.xlu0 %v2318
        %v2320 = vpop.xlane.xlu0 %2319
        %v2321 = vsel %vm1730, %v2267, -inf
        %2322 = vmax.xlane.f32.xlu0 %v2321
        %v2323 = vpop.xlane.xlu0 %2322
        %v2324 = vsel %vm1730, %v2268, -inf
        %2325 = vmax.xlane.f32.xlu0 %v2324
        %v2326 = vpop.xlane.xlu0 %2325
        %v2327 = vsel %vm1730, %v2269, -inf
        %2328 = vmax.xlane.f32.xlu0 %v2327
        %v2329 = vpop.xlane.xlu0 %2328
        %v2330 = vsel %vm1730, %v2270, -inf
        %2331 = vmax.xlane.f32.xlu0 %v2330
        %v2332 = vpop.xlane.xlu0 %2331
        %v2333 = vsel %vm1730, %v2271, -inf
        %2334 = vmax.xlane.f32.xlu0 %v2333
        %v2335 = vpop.xlane.xlu0 %2334
        %v2336 = vsel %vm1730, %v2272, -inf
        %2337 = vmax.xlane.f32.xlu0 %v2336
        %v2338 = vpop.xlane.xlu0 %2337
        %v2339 = vsel %vm1730, %v2273, -inf
        %2340 = vmax.xlane.f32.xlu0 %v2339
        %v2341 = vpop.xlane.xlu0 %2340
        %v2342 = vsel %vm1730, %v2274, -inf
        %2343 = vmax.xlane.f32.xlu0 %v2342
        %v2344 = vpop.xlane.xlu0 %2343
        %v2345 = vsel %vm1730, %v2275, -inf
        %2346 = vmax.xlane.f32.xlu0 %v2345
        %v2347 = vpop.xlane.xlu0 %2346
        %v2348 = vsel %vm1730, %v2276, -inf
        %2349 = vmax.xlane.f32.xlu0 %v2348
        %v2350 = vpop.xlane.xlu0 %2349
        %v2351 = vsel %vm1730, %v2277, -inf
        %2352 = vmax.xlane.f32.xlu0 %v2351
        %v2353 = vpop.xlane.xlu0 %2352
        %v2354 = vsel %vm1730, %v2278, -inf
        %2355 = vmax.xlane.f32.xlu0 %v2354
        %v2356 = vpop.xlane.xlu0 %2355
        %v2357 = vsel %vm1730, %v2279, -inf
        %2358 = vmax.xlane.f32.xlu0 %v2357
        %v2359 = vpop.xlane.xlu0 %2358
        %v2360 = vsel %vm1730, %v2280, -inf
        %2361 = vmax.xlane.f32.xlu0 %v2360
        %v2362 = vpop.xlane.xlu0 %2361
        %v2363 = vsel %vm1730, %v2281, -inf
        %2364 = vmax.xlane.f32.xlu0 %v2363
        %v2365 = vpop.xlane.xlu0 %2364
        %v2366 = vsel %vm1730, %v2282, -inf
        %2367 = vmax.xlane.f32.xlu0 %v2366
        %v2368 = vpop.xlane.xlu0 %2367
        %v2369 = vsel %vm1730, %v2283, -inf
        %2370 = vmax.xlane.f32.xlu0 %v2369
        %v2371 = vpop.xlane.xlu0 %2370
        %v2372 = vsel %vm1730, %v2284, -inf
        %2373 = vmax.xlane.f32.xlu0 %v2372
        %v2374 = vpop.xlane.xlu0 %2373
        %v2375 = vsel %vm1730, %v2285, -inf
        %2376 = vmax.xlane.f32.xlu0 %v2375
        %v2377 = vpop.xlane.xlu0 %2376
        %v2378 = vsel %vm1730, %v2286, -inf
        %2379 = vmax.xlane.f32.xlu0 %v2378
        %v2380 = vpop.xlane.xlu0 %2379
        %v2381 = vsel %vm1730, %v2287, -inf
        %2382 = vmax.xlane.f32.xlu0 %v2381
        %v2383 = vpop.xlane.xlu0 %2382
        %v2384 = vsub.f32 %v2256, %v2290
        %v2385 = vsub.f32 %v2257, %v2293
        %v2386 = vsub.f32 %v2258, %v2296
        %v2387 = vsub.f32 %v2259, %v2299
        %v2388 = vsub.f32 %v2260, %v2302
        %v2389 = vsub.f32 %v2261, %v2305
        %v2390 = vsub.f32 %v2262, %v2308
        %v2391 = vsub.f32 %v2263, %v2311
        %v2392 = vsub.f32 %v2264, %v2314
        %v2393 = vsub.f32 %v2265, %v2317
        %v2394 = vsub.f32 %v2266, %v2320
        %v2395 = vsub.f32 %v2267, %v2323
        %v2396 = vsub.f32 %v2268, %v2326
        %v2397 = vsub.f32 %v2269, %v2329
        %v2398 = vsub.f32 %v2270, %v2332
        %v2399 = vsub.f32 %v2271, %v2335
        %v2400 = vsub.f32 %v2272, %v2338
        %v2401 = vsub.f32 %v2273, %v2341
        %v2402 = vsub.f32 %v2274, %v2344
        %v2403 = vsub.f32 %v2275, %v2347
        %v2404 = vsub.f32 %v2276, %v2350
        %v2405 = vsub.f32 %v2277, %v2353
        %v2406 = vsub.f32 %v2278, %v2356
        %v2407 = vsub.f32 %v2279, %v2359
        %v2408 = vsub.f32 %v2280, %v2362
        %v2409 = vsub.f32 %v2281, %v2365
        %v2410 = vsub.f32 %v2282, %v2368
        %v2411 = vsub.f32 %v2283, %v2371
        %v2412 = vsub.f32 %v2284, %v2374
        %v2413 = vsub.f32 %v2285, %v2377
        %v2414 = vsub.f32 %v2286, %v2380
        %v2415 = vsub.f32 %v2287, %v2383
        %v2416 = vmul.f32 %v2384, 1.442695
        %v2417 = vpow.pop %v2416
        %v2418 = vmul.f32 %v2385, 1.442695
        %v2419 = vpow.pop %v2418
        %v2420 = vmul.f32 %v2386, 1.442695
        %v2421 = vpow.pop %v2420
        %v2422 = vmul.f32 %v2387, 1.442695
        %v2423 = vpow.pop %v2422
        %v2424 = vmul.f32 %v2388, 1.442695
        %v2425 = vpow.pop %v2424
        %v2426 = vmul.f32 %v2389, 1.442695
        %v2427 = vpow.pop %v2426
        %v2428 = vmul.f32 %v2390, 1.442695
        %v2429 = vpow.pop %v2428
        %v2430 = vmul.f32 %v2391, 1.442695
        %v2431 = vpow.pop %v2430
        %v2432 = vmul.f32 %v2392, 1.442695
        %v2433 = vpow.pop %v2432
        %v2434 = vmul.f32 %v2393, 1.442695
        %v2435 = vpow.pop %v2434
        %v2436 = vmul.f32 %v2394, 1.442695
        %v2437 = vpow.pop %v2436
        %v2438 = vmul.f32 %v2395, 1.442695
        %v2439 = vpow.pop %v2438
        %v2440 = vmul.f32 %v2396, 1.442695
        %v2441 = vpow.pop %v2440
        %v2442 = vmul.f32 %v2397, 1.442695
        %v2443 = vpow.pop %v2442
        %v2444 = vmul.f32 %v2398, 1.442695
        %v2445 = vpow.pop %v2444
        %v2446 = vmul.f32 %v2399, 1.442695
        %v2447 = vpow.pop %v2446
        %v2448 = vmul.f32 %v2400, 1.442695
        %v2449 = vpow.pop %v2448
        %v2450 = vmul.f32 %v2401, 1.442695
        %v2451 = vpow.pop %v2450
        %v2452 = vmul.f32 %v2402, 1.442695
        %v2453 = vpow.pop %v2452
        %v2454 = vmul.f32 %v2403, 1.442695
        %v2455 = vpow.pop %v2454
        %v2456 = vmul.f32 %v2404, 1.442695
        %v2457 = vpow.pop %v2456
        %v2458 = vmul.f32 %v2405, 1.442695
        %v2459 = vpow.pop %v2458
        %v2460 = vmul.f32 %v2406, 1.442695
        %v2461 = vpow.pop %v2460
        %v2462 = vmul.f32 %v2407, 1.442695
        %v2463 = vpow.pop %v2462
        %v2464 = vmul.f32 %v2408, 1.442695
        %v2465 = vpow.pop %v2464
        %v2466 = vmul.f32 %v2409, 1.442695
        %v2467 = vpow.pop %v2466
        %v2468 = vmul.f32 %v2410, 1.442695
        %v2469 = vpow.pop %v2468
        %v2470 = vmul.f32 %v2411, 1.442695
        %v2471 = vpow.pop %v2470
        %v2472 = vmul.f32 %v2412, 1.442695
        %v2473 = vpow.pop %v2472
        %v2474 = vmul.f32 %v2413, 1.442695
        %v2475 = vpow.pop %v2474
        %v2476 = vmul.f32 %v2414, 1.442695
        %v2477 = vpow.pop %v2476
        %v2478 = vmul.f32 %v2415, 1.442695
        %v2479 = vpow.pop %v2478
        %v2480 = vsel %vm1730, %v2417, 0.0
        %2481 = vadd.xlane.f32.xlu0 %v2480
        %v2482 = vpop.xlane.xlu0 %2481
        %v2483 = vsel %vm1730, %v2419, 0.0
        %2484 = vadd.xlane.f32.xlu0 %v2483
        %v2485 = vpop.xlane.xlu0 %2484
        %v2486 = vsel %vm1730, %v2421, 0.0
        %2487 = vadd.xlane.f32.xlu0 %v2486
        %v2488 = vpop.xlane.xlu0 %2487
        %v2489 = vsel %vm1730, %v2423, 0.0
        %2490 = vadd.xlane.f32.xlu0 %v2489
        %v2491 = vpop.xlane.xlu0 %2490
        %v2492 = vsel %vm1730, %v2425, 0.0
        %2493 = vadd.xlane.f32.xlu0 %v2492
        %v2494 = vpop.xlane.xlu0 %2493
        %v2495 = vsel %vm1730, %v2427, 0.0
        %2496 = vadd.xlane.f32.xlu0 %v2495
        %v2497 = vpop.xlane.xlu0 %2496
        %v2498 = vsel %vm1730, %v2429, 0.0
        %2499 = vadd.xlane.f32.xlu0 %v2498
        %v2500 = vpop.xlane.xlu0 %2499
        %v2501 = vsel %vm1730, %v2431, 0.0
        %2502 = vadd.xlane.f32.xlu0 %v2501
        %v2503 = vpop.xlane.xlu0 %2502
        %v2504 = vsel %vm1730, %v2433, 0.0
        %2505 = vadd.xlane.f32.xlu0 %v2504
        %v2506 = vpop.xlane.xlu0 %2505
        %v2507 = vsel %vm1730, %v2435, 0.0
        %2508 = vadd.xlane.f32.xlu0 %v2507
        %v2509 = vpop.xlane.xlu0 %2508
        %v2510 = vsel %vm1730, %v2437, 0.0
        %2511 = vadd.xlane.f32.xlu0 %v2510
        %v2512 = vpop.xlane.xlu0 %2511
        %v2513 = vsel %vm1730, %v2439, 0.0
        %2514 = vadd.xlane.f32.xlu0 %v2513
        %v2515 = vpop.xlane.xlu0 %2514
        %v2516 = vsel %vm1730, %v2441, 0.0
        %2517 = vadd.xlane.f32.xlu0 %v2516
        %v2518 = vpop.xlane.xlu0 %2517
        %v2519 = vsel %vm1730, %v2443, 0.0
        %2520 = vadd.xlane.f32.xlu0 %v2519
        %v2521 = vpop.xlane.xlu0 %2520
        %v2522 = vsel %vm1730, %v2445, 0.0
        %2523 = vadd.xlane.f32.xlu0 %v2522
        %v2524 = vpop.xlane.xlu0 %2523
        %v2525 = vsel %vm1730, %v2447, 0.0
        %2526 = vadd.xlane.f32.xlu0 %v2525
        %v2527 = vpop.xlane.xlu0 %2526
        %v2528 = vsel %vm1730, %v2449, 0.0
        %2529 = vadd.xlane.f32.xlu0 %v2528
        %v2530 = vpop.xlane.xlu0 %2529
        %v2531 = vsel %vm1730, %v2451, 0.0
        %2532 = vadd.xlane.f32.xlu0 %v2531
        %v2533 = vpop.xlane.xlu0 %2532
        %v2534 = vsel %vm1730, %v2453, 0.0
        %2535 = vadd.xlane.f32.xlu0 %v2534
        %v2536 = vpop.xlane.xlu0 %2535
        %v2537 = vsel %vm1730, %v2455, 0.0
        %2538 = vadd.xlane.f32.xlu0 %v2537
        %v2539 = vpop.xlane.xlu0 %2538
        %v2540 = vsel %vm1730, %v2457, 0.0
        %2541 = vadd.xlane.f32.xlu0 %v2540
        %v2542 = vpop.xlane.xlu0 %2541
        %v2543 = vsel %vm1730, %v2459, 0.0
        %2544 = vadd.xlane.f32.xlu0 %v2543
        %v2545 = vpop.xlane.xlu0 %2544
        %v2546 = vsel %vm1730, %v2461, 0.0
        %2547 = vadd.xlane.f32.xlu0 %v2546
        %v2548 = vpop.xlane.xlu0 %2547
        %v2549 = vsel %vm1730, %v2463, 0.0
        %2550 = vadd.xlane.f32.xlu0 %v2549
        %v2551 = vpop.xlane.xlu0 %2550
        %v2552 = vsel %vm1730, %v2465, 0.0
        %2553 = vadd.xlane.f32.xlu0 %v2552
        %v2554 = vpop.xlane.xlu0 %2553
        %v2555 = vsel %vm1730, %v2467, 0.0
        %2556 = vadd.xlane.f32.xlu0 %v2555
        %v2557 = vpop.xlane.xlu0 %2556
        %v2558 = vsel %vm1730, %v2469, 0.0
        %2559 = vadd.xlane.f32.xlu0 %v2558
        %v2560 = vpop.xlane.xlu0 %2559
        %v2561 = vsel %vm1730, %v2471, 0.0
        %2562 = vadd.xlane.f32.xlu0 %v2561
        %v2563 = vpop.xlane.xlu0 %2562
        %v2564 = vsel %vm1730, %v2473, 0.0
        %2565 = vadd.xlane.f32.xlu0 %v2564
        %v2566 = vpop.xlane.xlu0 %2565
        %v2567 = vsel %vm1730, %v2475, 0.0
        %2568 = vadd.xlane.f32.xlu0 %v2567
        %v2569 = vpop.xlane.xlu0 %2568
        %v2570 = vsel %vm1730, %v2477, 0.0
        %2571 = vadd.xlane.f32.xlu0 %v2570
        %v2572 = vpop.xlane.xlu0 %2571
        %v2573 = vsel %vm1730, %v2479, 0.0
        %2574 = vadd.xlane.f32.xlu0 %v2573
        %v2575 = vpop.xlane.xlu0 %2574
        %v2576 = vrcp.pop %v2482
        %v2577 = vrcp.pop %v2485
        %v2578 = vrcp.pop %v2488
        %v2579 = vrcp.pop %v2491
        %v2580 = vrcp.pop %v2494
        %v2581 = vrcp.pop %v2497
        %v2582 = vrcp.pop %v2500
        %v2583 = vrcp.pop %v2503
        %v2584 = vrcp.pop %v2506
        %v2585 = vrcp.pop %v2509
        %v2586 = vrcp.pop %v2512
        %v2587 = vrcp.pop %v2515
        %v2588 = vrcp.pop %v2518
        %v2589 = vrcp.pop %v2521
        %v2590 = vrcp.pop %v2524
        %v2591 = vrcp.pop %v2527
        %v2592 = vrcp.pop %v2530
        %v2593 = vrcp.pop %v2533
        %v2594 = vrcp.pop %v2536
        %v2595 = vrcp.pop %v2539
        %v2596 = vrcp.pop %v2542
        %v2597 = vrcp.pop %v2545
        %v2598 = vrcp.pop %v2548
        %v2599 = vrcp.pop %v2551
        %v2600 = vrcp.pop %v2554
        %v2601 = vrcp.pop %v2557
        %v2602 = vrcp.pop %v2560
        %v2603 = vrcp.pop %v2563
        %v2604 = vrcp.pop %v2566
        %v2605 = vrcp.pop %v2569
        %v2606 = vrcp.pop %v2572
        %v2607 = vrcp.pop %v2575
        %v2608 = vmul.f32 %v2417, %v2576
        %v2609 = vmul.f32 %v2419, %v2577
        %v2610 = vmul.f32 %v2421, %v2578
        %v2611 = vmul.f32 %v2423, %v2579
        %v2612 = vmul.f32 %v2425, %v2580
        %v2613 = vmul.f32 %v2427, %v2581
        %v2614 = vmul.f32 %v2429, %v2582
        %v2615 = vmul.f32 %v2431, %v2583
        %v2616 = vmul.f32 %v2433, %v2584
        %v2617 = vmul.f32 %v2435, %v2585
        %v2618 = vmul.f32 %v2437, %v2586
        %v2619 = vmul.f32 %v2439, %v2587
        %v2620 = vmul.f32 %v2441, %v2588
        %v2621 = vmul.f32 %v2443, %v2589
        %v2622 = vmul.f32 %v2445, %v2590
        %v2623 = vmul.f32 %v2447, %v2591
        %v2624 = vmul.f32 %v2449, %v2592
        %v2625 = vmul.f32 %v2451, %v2593
        %v2626 = vmul.f32 %v2453, %v2594
        %v2627 = vmul.f32 %v2455, %v2595
        %v2628 = vmul.f32 %v2457, %v2596
        %v2629 = vmul.f32 %v2459, %v2597
        %v2630 = vmul.f32 %v2461, %v2598
        %v2631 = vmul.f32 %v2463, %v2599
        %v2632 = vmul.f32 %v2465, %v2600
        %v2633 = vmul.f32 %v2467, %v2601
        %v2634 = vmul.f32 %v2469, %v2602
        %v2635 = vmul.f32 %v2471, %v2603
        %v2636 = vmul.f32 %v2473, %v2604
        %v2637 = vmul.f32 %v2475, %v2605
        %v2638 = vmul.f32 %v2477, %v2606
        %v2639 = vmul.f32 %v2479, %v2607
        %v2640 = vpack.c.bf16 %v2609, %v2608
        %v2641 = vpack.c.bf16 %v2611, %v2610
        %v2642 = vpack.c.bf16 %v2613, %v2612
        %v2643 = vpack.c.bf16 %v2615, %v2614
        %v2644 = vpack.c.bf16 %v2617, %v2616
        %v2645 = vpack.c.bf16 %v2619, %v2618
        %v2646 = vpack.c.bf16 %v2621, %v2620
        %v2647 = vpack.c.bf16 %v2623, %v2622
        %v2648 = vpack.c.bf16 %v2625, %v2624
        %v2649 = vpack.c.bf16 %v2627, %v2626
        %v2650 = vpack.c.bf16 %v2629, %v2628
        %v2651 = vpack.c.bf16 %v2631, %v2630
        %v2652 = vpack.c.bf16 %v2633, %v2632
        %v2653 = vpack.c.bf16 %v2635, %v2634
        %v2654 = vpack.c.bf16 %v2637, %v2636
        %v2655 = vpack.c.bf16 %v2639, %v2638
        %v2657 = vsel %vm1730, %v2640, 0
        %v2660 = vsel %vm1730, %v2641, 0
        %2662 = vmatprep.subr.bf16.mxu0 0
        %2663 = vmatpush1.bf16.msra.mxu0 %v1714
        %2664 = vmatprep.subr.bf16.mxu0 0
        %2665 = vmatpush1.bf16.msra.mxu0 %v1715
        %2666 = vmatprep.subr.bf16.mxu0 0
        %2667 = vmatpush1.bf16.msra.mxu0 0
        %2668 = vmatprep.subr.bf16.mxu0 0
        %2669 = vmatpush1.bf16.msra.mxu0 0
        %2670 = vmatprep.subr.bf16.mxu0 0
        %2671 = vmatpush1.bf16.msra.mxu0 0
        %2672 = vmatprep.subr.bf16.mxu0 0
        %2673 = vmatpush1.bf16.msra.mxu0 0
        %2674 = vmatprep.subr.bf16.mxu0 0
        %2675 = vmatpush1.bf16.msra.mxu0 0
        %2676 = vmatprep.subr.bf16.mxu0 0
        %2677 = vmatpush1.bf16.msra.mxu0 0
        %2678 = vmatprep.subr.bf16.mxu0 0
        %2679 = vmatpush1.bf16.msra.mxu0 0
        %2680 = vmatprep.subr.bf16.mxu0 0
        %2681 = vmatpush1.bf16.msra.mxu0 0
        %2682 = vmatprep.subr.bf16.mxu0 0
        %2683 = vmatpush1.bf16.msra.mxu0 0
        %2684 = vmatprep.subr.bf16.mxu0 0
        %2685 = vmatpush1.bf16.msra.mxu0 0
        %2686 = vmatprep.subr.bf16.mxu0 0
        %2687 = vmatpush1.bf16.msra.mxu0 0
        %2688 = vmatprep.subr.bf16.mxu0 0
        %2689 = vmatpush1.bf16.msra.mxu0 0
        %2690 = vmatprep.subr.bf16.mxu0 0
        %2691 = vmatpush1.bf16.msra.mxu0 0
        %2692 = vmatprep.subr.bf16.mxu0 0
        %2693 = vmatpush1.bf16.msra.mxu0 0
        %2694 = vmatprep.mubr.bf16.mxu0 0
        %2695 = vmatmul.mubr.bf16.gmra.mrb[0].mxu0 %v2657
        %v2696 = vpop.f32.mrb[0].mxu0
        %v2697 = vadd.f32 0.0, %v2696
        %v2698 = vpop.f32.mrb[0].mxu0
        %v2699 = vpop.f32.mrb[0].mxu0
        %v2700 = vadd.f32 0.0, %v2699
        %v2701 = vpop.f32.mrb[0].mxu0
        %2702 = vmatprep.mubr.bf16.mxu0 0
        %2703 = vmatmul.mubr.bf16.gmra.mrb[0].mxu0 %v2660
        %v2704 = vpop.f32.mrb[0].mxu0
        %v2705 = vadd.f32 0.0, %v2704
        %v2706 = vpop.f32.mrb[0].mxu0
        %v2707 = vpop.f32.mrb[0].mxu0
        %v2708 = vadd.f32 0.0, %v2707
        %v2709 = vpop.f32.mrb[0].mxu0
        %2710 = vdwg.mxu0
        %v2712 = vsel %vm1730, %v2642, 0
        %v2715 = vsel %vm1730, %v2643, 0
        %2717 = vmatprep.subr.bf16.mxu0 0
        %2718 = vmatpush1.bf16.msra.mxu0 %v1716
        %2719 = vmatprep.subr.bf16.mxu0 0
        %2720 = vmatpush1.bf16.msra.mxu0 %v1717
        %2721 = vmatprep.subr.bf16.mxu0 0
        %2722 = vmatpush1.bf16.msra.mxu0 0
        %2723 = vmatprep.subr.bf16.mxu0 0
        %2724 = vmatpush1.bf16.msra.mxu0 0
        %2725 = vmatprep.subr.bf16.mxu0 0
        %2726 = vmatpush1.bf16.msra.mxu0 0
        %2727 = vmatprep.subr.bf16.mxu0 0
        %2728 = vmatpush1.bf16.msra.mxu0 0
        %2729 = vmatprep.subr.bf16.mxu0 0
        %2730 = vmatpush1.bf16.msra.mxu0 0
        %2731 = vmatprep.subr.bf16.mxu0 0
        %2732 = vmatpush1.bf16.msra.mxu0 0
        %2733 = vmatprep.subr.bf16.mxu0 0
        %2734 = vmatpush1.bf16.msra.mxu0 0
        %2735 = vmatprep.subr.bf16.mxu0 0
        %2736 = vmatpush1.bf16.msra.mxu0 0
        %2737 = vmatprep.subr.bf16.mxu0 0
        %2738 = vmatpush1.bf16.msra.mxu0 0
        %2739 = vmatprep.subr.bf16.mxu0 0
        %2740 = vmatpush1.bf16.msra.mxu0 0
        %2741 = vmatprep.subr.bf16.mxu0 0
        %2742 = vmatpush1.bf16.msra.mxu0 0
        %2743 = vmatprep.subr.bf16.mxu0 0
        %2744 = vmatpush1.bf16.msra.mxu0 0
        %2745 = vmatprep.subr.bf16.mxu0 0
        %2746 = vmatpush1.bf16.msra.mxu0 0
        %2747 = vmatprep.subr.bf16.mxu0 0
        %2748 = vmatpush1.bf16.msra.mxu0 0
        %2749 = vmatprep.mubr.bf16.mxu0 0
        %2750 = vmatmul.mubr.bf16.gmra.mrb[0].mxu0 %v2712
        %v2751 = vpop.f32.mrb[0].mxu0
        %v2752 = vadd.f32 0.0, %v2751
        %v2753 = vpop.f32.mrb[0].mxu0
        %v2754 = vpop.f32.mrb[0].mxu0
        %v2755 = vadd.f32 0.0, %v2754
        %v2756 = vpop.f32.mrb[0].mxu0
        %2757 = vmatprep.mubr.bf16.mxu0 0
        %2758 = vmatmul.mubr.bf16.gmra.mrb[0].mxu0 %v2715
        %v2759 = vpop.f32.mrb[0].mxu0
        %v2760 = vadd.f32 0.0, %v2759
        %v2761 = vpop.f32.mrb[0].mxu0
        %v2762 = vpop.f32.mrb[0].mxu0
        %v2763 = vadd.f32 0.0, %v2762
        %v2764 = vpop.f32.mrb[0].mxu0
        %2765 = vdwg.mxu0
        %v2767 = vsel %vm1730, %v2644, 0
        %v2770 = vsel %vm1730, %v2645, 0
        %2772 = vmatprep.subr.bf16.mxu0 0
        %2773 = vmatpush1.bf16.msra.mxu0 %v1718
        %2774 = vmatprep.subr.bf16.mxu0 0
        %2775 = vmatpush1.bf16.msra.mxu0 %v1719
        %2776 = vmatprep.subr.bf16.mxu0 0
        %2777 = vmatpush1.bf16.msra.mxu0 0
        %2778 = vmatprep.subr.bf16.mxu0 0
        %2779 = vmatpush1.bf16.msra.mxu0 0
        %2780 = vmatprep.subr.bf16.mxu0 0
        %2781 = vmatpush1.bf16.msra.mxu0 0
        %2782 = vmatprep.subr.bf16.mxu0 0
        %2783 = vmatpush1.bf16.msra.mxu0 0
        %2784 = vmatprep.subr.bf16.mxu0 0
        %2785 = vmatpush1.bf16.msra.mxu0 0
        %2786 = vmatprep.subr.bf16.mxu0 0
        %2787 = vmatpush1.bf16.msra.mxu0 0
        %2788 = vmatprep.subr.bf16.mxu0 0
        %2789 = vmatpush1.bf16.msra.mxu0 0
        %2790 = vmatprep.subr.bf16.mxu0 0
        %2791 = vmatpush1.bf16.msra.mxu0 0
        %2792 = vmatprep.subr.bf16.mxu0 0
        %2793 = vmatpush1.bf16.msra.mxu0 0
        %2794 = vmatprep.subr.bf16.mxu0 0
        %2795 = vmatpush1.bf16.msra.mxu0 0
        %2796 = vmatprep.subr.bf16.mxu0 0
        %2797 = vmatpush1.bf16.msra.mxu0 0
        %2798 = vmatprep.subr.bf16.mxu0 0
        %2799 = vmatpush1.bf16.msra.mxu0 0
        %2800 = vmatprep.subr.bf16.mxu0 0
        %2801 = vmatpush1.bf16.msra.mxu0 0
        %2802 = vmatprep.subr.bf16.mxu0 0
        %2803 = vmatpush1.bf16.msra.mxu0 0
        %2804 = vmatprep.mubr.bf16.mxu0 0
        %2805 = vmatmul.mubr.bf16.gmra.mrb[0].mxu0 %v2767
        %v2806 = vpop.f32.mrb[0].mxu0
        %v2807 = vadd.f32 0.0, %v2806
        %v2808 = vpop.f32.mrb[0].mxu0
        %v2809 = vpop.f32.mrb[0].mxu0
        %v2810 = vadd.f32 0.0, %v2809
        %v2811 = vpop.f32.mrb[0].mxu0
        %2812 = vmatprep.mubr.bf16.mxu0 0
        %2813 = vmatmul.mubr.bf16.gmra.mrb[0].mxu0 %v2770
        %v2814 = vpop.f32.mrb[0].mxu0
        %v2815 = vadd.f32 0.0, %v2814
        %v2816 = vpop.f32.mrb[0].mxu0
        %v2817 = vpop.f32.mrb[0].mxu0
        %v2818 = vadd.f32 0.0, %v2817
        %v2819 = vpop.f32.mrb[0].mxu0
        %2820 = vdwg.mxu0
        %v2822 = vsel %vm1730, %v2646, 0
        %v2825 = vsel %vm1730, %v2647, 0
        %2827 = vmatprep.subr.bf16.mxu0 0
        %2828 = vmatpush1.bf16.msra.mxu0 %v1720
        %2829 = vmatprep.subr.bf16.mxu0 0
        %2830 = vmatpush1.bf16.msra.mxu0 %v1721
        %2831 = vmatprep.subr.bf16.mxu0 0
        %2832 = vmatpush1.bf16.msra.mxu0 0
        %2833 = vmatprep.subr.bf16.mxu0 0
        %2834 = vmatpush1.bf16.msra.mxu0 0
        %2835 = vmatprep.subr.bf16.mxu0 0
        %2836 = vmatpush1.bf16.msra.mxu0 0
        %2837 = vmatprep.subr.bf16.mxu0 0
        %2838 = vmatpush1.bf16.msra.mxu0 0
        %2839 = vmatprep.subr.bf16.mxu0 0
        %2840 = vmatpush1.bf16.msra.mxu0 0
        %2841 = vmatprep.subr.bf16.mxu0 0
        %2842 = vmatpush1.bf16.msra.mxu0 0
        %2843 = vmatprep.subr.bf16.mxu0 0
        %2844 = vmatpush1.bf16.msra.mxu0 0
        %2845 = vmatprep.subr.bf16.mxu0 0
        %2846 = vmatpush1.bf16.msra.mxu0 0
        %2847 = vmatprep.subr.bf16.mxu0 0
        %2848 = vmatpush1.bf16.msra.mxu0 0
        %2849 = vmatprep.subr.bf16.mxu0 0
        %2850 = vmatpush1.bf16.msra.mxu0 0
        %2851 = vmatprep.subr.bf16.mxu0 0
        %2852 = vmatpush1.bf16.msra.mxu0 0
        %2853 = vmatprep.subr.bf16.mxu0 0
        %2854 = vmatpush1.bf16.msra.mxu0 0
        %2855 = vmatprep.subr.bf16.mxu0 0
        %2856 = vmatpush1.bf16.msra.mxu0 0
        %2857 = vmatprep.subr.bf16.mxu0 0
        %2858 = vmatpush1.bf16.msra.mxu0 0
        %2859 = vmatprep.mubr.bf16.mxu0 0
        %2860 = vmatmul.mubr.bf16.gmra.mrb[0].mxu0 %v2822
        %v2861 = vpop.f32.mrb[0].mxu0
        %v2862 = vadd.f32 0.0, %v2861
        %v2863 = vpop.f32.mrb[0].mxu0
        %v2864 = vpop.f32.mrb[0].mxu0
        %v2865 = vadd.f32 0.0, %v2864
        %v2866 = vpop.f32.mrb[0].mxu0
        %2867 = vmatprep.mubr.bf16.mxu0 0
        %2868 = vmatmul.mubr.bf16.gmra.mrb[0].mxu0 %v2825
        %v2869 = vpop.f32.mrb[0].mxu0
        %v2870 = vadd.f32 0.0, %v2869
        %v2871 = vpop.f32.mrb[0].mxu0
        %v2872 = vpop.f32.mrb[0].mxu0
        %v2873 = vadd.f32 0.0, %v2872
        %v2874 = vpop.f32.mrb[0].mxu0
        %2875 = vdwg.mxu0
        %v2877 = vsel %vm1730, %v2648, 0
        %v2880 = vsel %vm1730, %v2649, 0
        %2882 = vmatprep.subr.bf16.mxu0 0
        %2883 = vmatpush1.bf16.msra.mxu0 %v1722
        %2884 = vmatprep.subr.bf16.mxu0 0
        %2885 = vmatpush1.bf16.msra.mxu0 %v1723
        %2886 = vmatprep.subr.bf16.mxu0 0
        %2887 = vmatpush1.bf16.msra.mxu0 0
        %2888 = vmatprep.subr.bf16.mxu0 0
        %2889 = vmatpush1.bf16.msra.mxu0 0
        %2890 = vmatprep.subr.bf16.mxu0 0
        %2891 = vmatpush1.bf16.msra.mxu0 0
        %2892 = vmatprep.subr.bf16.mxu0 0
        %2893 = vmatpush1.bf16.msra.mxu0 0
        %2894 = vmatprep.subr.bf16.mxu0 0
        %2895 = vmatpush1.bf16.msra.mxu0 0
        %2896 = vmatprep.subr.bf16.mxu0 0
        %2897 = vmatpush1.bf16.msra.mxu0 0
        %2898 = vmatprep.subr.bf16.mxu0 0
        %2899 = vmatpush1.bf16.msra.mxu0 0
        %2900 = vmatprep.subr.bf16.mxu0 0
        %2901 = vmatpush1.bf16.msra.mxu0 0
        %2902 = vmatprep.subr.bf16.mxu0 0
        %2903 = vmatpush1.bf16.msra.mxu0 0
        %2904 = vmatprep.subr.bf16.mxu0 0
        %2905 = vmatpush1.bf16.msra.mxu0 0
        %2906 = vmatprep.subr.bf16.mxu0 0
        %2907 = vmatpush1.bf16.msra.mxu0 0
        %2908 = vmatprep.subr.bf16.mxu0 0
        %2909 = vmatpush1.bf16.msra.mxu0 0
        %2910 = vmatprep.subr.bf16.mxu0 0
        %2911 = vmatpush1.bf16.msra.mxu0 0
        %2912 = vmatprep.subr.bf16.mxu0 0
        %2913 = vmatpush1.bf16.msra.mxu0 0
        %2914 = vmatprep.mubr.bf16.mxu0 0
        %2915 = vmatmul.mubr.bf16.gmra.mrb[0].mxu0 %v2877
        %v2916 = vpop.f32.mrb[0].mxu0
        %v2917 = vadd.f32 0.0, %v2916
        %v2918 = vpop.f32.mrb[0].mxu0
        %v2919 = vpop.f32.mrb[0].mxu0
        %v2920 = vadd.f32 0.0, %v2919
        %v2921 = vpop.f32.mrb[0].mxu0
        %2922 = vmatprep.mubr.bf16.mxu0 0
        %2923 = vmatmul.mubr.bf16.gmra.mrb[0].mxu0 %v2880
        %v2924 = vpop.f32.mrb[0].mxu0
        %v2925 = vadd.f32 0.0, %v2924
        %v2926 = vpop.f32.mrb[0].mxu0
        %v2927 = vpop.f32.mrb[0].mxu0
        %v2928 = vadd.f32 0.0, %v2927
        %v2929 = vpop.f32.mrb[0].mxu0
        %2930 = vdwg.mxu0
        %v2932 = vsel %vm1730, %v2650, 0
        %v2935 = vsel %vm1730, %v2651, 0
        %2937 = vmatprep.subr.bf16.mxu0 0
        %2938 = vmatpush1.bf16.msra.mxu0 %v1724
        %2939 = vmatprep.subr.bf16.mxu0 0
        %2940 = vmatpush1.bf16.msra.mxu0 %v1725
        %2941 = vmatprep.subr.bf16.mxu0 0
        %2942 = vmatpush1.bf16.msra.mxu0 0
        %2943 = vmatprep.subr.bf16.mxu0 0
        %2944 = vmatpush1.bf16.msra.mxu0 0
        %2945 = vmatprep.subr.bf16.mxu0 0
        %2946 = vmatpush1.bf16.msra.mxu0 0
        %2947 = vmatprep.subr.bf16.mxu0 0
        %2948 = vmatpush1.bf16.msra.mxu0 0
        %2949 = vmatprep.subr.bf16.mxu0 0
        %2950 = vmatpush1.bf16.msra.mxu0 0
        %2951 = vmatprep.subr.bf16.mxu0 0
        %2952 = vmatpush1.bf16.msra.mxu0 0
        %2953 = vmatprep.subr.bf16.mxu0 0
        %2954 = vmatpush1.bf16.msra.mxu0 0
        %2955 = vmatprep.subr.bf16.mxu0 0
        %2956 = vmatpush1.bf16.msra.mxu0 0
        %2957 = vmatprep.subr.bf16.mxu0 0
        %2958 = vmatpush1.bf16.msra.mxu0 0
        %2959 = vmatprep.subr.bf16.mxu0 0
        %2960 = vmatpush1.bf16.msra.mxu0 0
        %2961 = vmatprep.subr.bf16.mxu0 0
        %2962 = vmatpush1.bf16.msra.mxu0 0
        %2963 = vmatprep.subr.bf16.mxu0 0
        %2964 = vmatpush1.bf16.msra.mxu0 0
        %2965 = vmatprep.subr.bf16.mxu0 0
        %2966 = vmatpush1.bf16.msra.mxu0 0
        %2967 = vmatprep.subr.bf16.mxu0 0
        %2968 = vmatpush1.bf16.msra.mxu0 0
        %2969 = vmatprep.mubr.bf16.mxu0 0
        %2970 = vmatmul.mubr.bf16.gmra.mrb[0].mxu0 %v2932
        %v2971 = vpop.f32.mrb[0].mxu0
        %v2972 = vadd.f32 0.0, %v2971
        %v2973 = vpop.f32.mrb[0].mxu0
        %v2974 = vpop.f32.mrb[0].mxu0
        %v2975 = vadd.f32 0.0, %v2974
        %v2976 = vpop.f32.mrb[0].mxu0
        %2977 = vmatprep.mubr.bf16.mxu0 0
        %2978 = vmatmul.mubr.bf16.gmra.mrb[0].mxu0 %v2935
        %v2979 = vpop.f32.mrb[0].mxu0
        %v2980 = vadd.f32 0.0, %v2979
        %v2981 = vpop.f32.mrb[0].mxu0
        %v2982 = vpop.f32.mrb[0].mxu0
        %v2983 = vadd.f32 0.0, %v2982
        %v2984 = vpop.f32.mrb[0].mxu0
        %2985 = vdwg.mxu0
        %v2987 = vsel %vm1730, %v2652, 0
        %v2990 = vsel %vm1730, %v2653, 0
        %2992 = vmatprep.subr.bf16.mxu0 0
        %2993 = vmatpush1.bf16.msra.mxu0 %v1726
        %2994 = vmatprep.subr.bf16.mxu0 0
        %2995 = vmatpush1.bf16.msra.mxu0 %v1727
        %2996 = vmatprep.subr.bf16.mxu0 0
        %2997 = vmatpush1.bf16.msra.mxu0 0
        %2998 = vmatprep.subr.bf16.mxu0 0
        %2999 = vmatpush1.bf16.msra.mxu0 0
        %3000 = vmatprep.subr.bf16.mxu0 0
        %3001 = vmatpush1.bf16.msra.mxu0 0
        %3002 = vmatprep.subr.bf16.mxu0 0
        %3003 = vmatpush1.bf16.msra.mxu0 0
        %3004 = vmatprep.subr.bf16.mxu0 0
        %3005 = vmatpush1.bf16.msra.mxu0 0
        %3006 = vmatprep.subr.bf16.mxu0 0
        %3007 = vmatpush1.bf16.msra.mxu0 0
        %3008 = vmatprep.subr.bf16.mxu0 0
        %3009 = vmatpush1.bf16.msra.mxu0 0
        %3010 = vmatprep.subr.bf16.mxu0 0
        %3011 = vmatpush1.bf16.msra.mxu0 0
        %3012 = vmatprep.subr.bf16.mxu0 0
        %3013 = vmatpush1.bf16.msra.mxu0 0
        %3014 = vmatprep.subr.bf16.mxu0 0
        %3015 = vmatpush1.bf16.msra.mxu0 0
        %3016 = vmatprep.subr.bf16.mxu0 0
        %3017 = vmatpush1.bf16.msra.mxu0 0
        %3018 = vmatprep.subr.bf16.mxu0 0
        %3019 = vmatpush1.bf16.msra.mxu0 0
        %3020 = vmatprep.subr.bf16.mxu0 0
        %3021 = vmatpush1.bf16.msra.mxu0 0
        %3022 = vmatprep.subr.bf16.mxu0 0
        %3023 = vmatpush1.bf16.msra.mxu0 0
        %3024 = vmatprep.mubr.bf16.mxu0 0
        %3025 = vmatmul.mubr.bf16.gmra.mrb[0].mxu0 %v2987
        %v3026 = vpop.f32.mrb[0].mxu0
        %v3027 = vadd.f32 0.0, %v3026
        %v3028 = vpop.f32.mrb[0].mxu0
        %v3029 = vpop.f32.mrb[0].mxu0
        %v3030 = vadd.f32 0.0, %v3029
        %v3031 = vpop.f32.mrb[0].mxu0
        %3032 = vmatprep.mubr.bf16.mxu0 0
        %3033 = vmatmul.mubr.bf16.gmra.mrb[0].mxu0 %v2990
        %v3034 = vpop.f32.mrb[0].mxu0
        %v3035 = vadd.f32 0.0, %v3034
        %v3036 = vpop.f32.mrb[0].mxu0
        %v3037 = vpop.f32.mrb[0].mxu0
        %v3038 = vadd.f32 0.0, %v3037
        %v3039 = vpop.f32.mrb[0].mxu0
        %3040 = vdwg.mxu0
        %v3042 = vsel %vm1730, %v2654, 0
        %v3045 = vsel %vm1730, %v2655, 0
        %3047 = vmatprep.subr.bf16.mxu0 0
        %3048 = vmatpush1.bf16.msra.mxu0 %v1728
        %3049 = vmatprep.subr.bf16.mxu0 0
        %3050 = vmatpush1.bf16.msra.mxu0 %v1729
        %3051 = vmatprep.subr.bf16.mxu0 0
        %3052 = vmatpush1.bf16.msra.mxu0 0
        %3053 = vmatprep.subr.bf16.mxu0 0
        %3054 = vmatpush1.bf16.msra.mxu0 0
        %3055 = vmatprep.subr.bf16.mxu0 0
        %3056 = vmatpush1.bf16.msra.mxu0 0
        %3057 = vmatprep.subr.bf16.mxu0 0
        %3058 = vmatpush1.bf16.msra.mxu0 0
        %3059 = vmatprep.subr.bf16.mxu0 0
        %3060 = vmatpush1.bf16.msra.mxu0 0
        %3061 = vmatprep.subr.bf16.mxu0 0
        %3062 = vmatpush1.bf16.msra.mxu0 0
        %3063 = vmatprep.subr.bf16.mxu0 0
        %3064 = vmatpush1.bf16.msra.mxu0 0
        %3065 = vmatprep.subr.bf16.mxu0 0
        %3066 = vmatpush1.bf16.msra.mxu0 0
        %3067 = vmatprep.subr.bf16.mxu0 0
        %3068 = vmatpush1.bf16.msra.mxu0 0
        %3069 = vmatprep.subr.bf16.mxu0 0
        %3070 = vmatpush1.bf16.msra.mxu0 0
        %3071 = vmatprep.subr.bf16.mxu0 0
        %3072 = vmatpush1.bf16.msra.mxu0 0
        %3073 = vmatprep.subr.bf16.mxu0 0
        %3074 = vmatpush1.bf16.msra.mxu0 0
        %3075 = vmatprep.subr.bf16.mxu0 0
        %3076 = vmatpush1.bf16.msra.mxu0 0
        %3077 = vmatprep.subr.bf16.mxu0 0
        %3078 = vmatpush1.bf16.msra.mxu0 0
        %3079 = vmatprep.mubr.bf16.mxu0 0
        %3080 = vmatmul.mubr.bf16.gmra.mrb[0].mxu0 %v3042
        %v3081 = vpop.f32.mrb[0].mxu0
        %v3082 = vadd.f32 0.0, %v3081
        %v3083 = vpop.f32.mrb[0].mxu0
        %v3084 = vpop.f32.mrb[0].mxu0
        %v3085 = vadd.f32 0.0, %v3084
        %v3086 = vpop.f32.mrb[0].mxu0
        %3087 = vmatprep.mubr.bf16.mxu0 0
        %3088 = vmatmul.mubr.bf16.gmra.mrb[0].mxu0 %v3045
        %v3089 = vpop.f32.mrb[0].mxu0
        %v3090 = vadd.f32 0.0, %v3089
        %v3091 = vpop.f32.mrb[0].mxu0
        %v3092 = vpop.f32.mrb[0].mxu0
        %v3093 = vadd.f32 0.0, %v3092
        %v3094 = vpop.f32.mrb[0].mxu0
        %3095 = vdwg.mxu0
        %3104 = vrot.lane.b32.xlu0 %v2807, 32
        %v3105 = vpop.permute.xlu0 %3104
        %3106 = vrot.lane.b32.xlu0 %v2810, 32
        %v3107 = vpop.permute.xlu0 %3106
        %3108 = vrot.lane.b32.xlu0 %v2815, 32
        %v3109 = vpop.permute.xlu0 %3108
        %3110 = vrot.lane.b32.xlu0 %v2818, 32
        %v3111 = vpop.permute.xlu0 %3110
        %3112 = vrot.lane.b32.xlu0 %v2862, 32
        %v3113 = vpop.permute.xlu0 %3112
        %3114 = vrot.lane.b32.xlu0 %v2865, 32
        %v3115 = vpop.permute.xlu0 %3114
        %3116 = vrot.lane.b32.xlu0 %v2870, 32
        %v3117 = vpop.permute.xlu0 %3116
        %3118 = vrot.lane.b32.xlu0 %v2873, 32
        %v3119 = vpop.permute.xlu0 %3118
        %3136 = vrot.lane.b32.xlu0 %v2917, 64
        %v3137 = vpop.permute.xlu0 %3136
        %3138 = vrot.lane.b32.xlu0 %v2920, 64
        %v3139 = vpop.permute.xlu0 %3138
        %3140 = vrot.lane.b32.xlu0 %v2925, 64
        %v3141 = vpop.permute.xlu0 %3140
        %3142 = vrot.lane.b32.xlu0 %v2928, 64
        %v3143 = vpop.permute.xlu0 %3142
        %3144 = vrot.lane.b32.xlu0 %v2972, 64
        %v3145 = vpop.permute.xlu0 %3144
        %3146 = vrot.lane.b32.xlu0 %v2975, 64
        %v3147 = vpop.permute.xlu0 %3146
        %3148 = vrot.lane.b32.xlu0 %v2980, 64
        %v3149 = vpop.permute.xlu0 %3148
        %3150 = vrot.lane.b32.xlu0 %v2983, 64
        %v3151 = vpop.permute.xlu0 %3150
        %3168 = vrot.lane.b32.xlu0 %v3027, 96
        %v3169 = vpop.permute.xlu0 %3168
        %3170 = vrot.lane.b32.xlu0 %v3030, 96
        %v3171 = vpop.permute.xlu0 %3170
        %3172 = vrot.lane.b32.xlu0 %v3035, 96
        %v3173 = vpop.permute.xlu0 %3172
        %3174 = vrot.lane.b32.xlu0 %v3038, 96
        %v3175 = vpop.permute.xlu0 %3174
        %3176 = vrot.lane.b32.xlu0 %v3082, 96
        %v3177 = vpop.permute.xlu0 %3176
        %3178 = vrot.lane.b32.xlu0 %v3085, 96
        %v3179 = vpop.permute.xlu0 %3178
        %3180 = vrot.lane.b32.xlu0 %v3090, 96
        %v3181 = vpop.permute.xlu0 %3180
        %3182 = vrot.lane.b32.xlu0 %v3093, 96
        %v3183 = vpop.permute.xlu0 %3182
        %v3192 = vsel %vm1730, %v2697, %v3105
        %v3193 = vsel %vm1730, %v2700, %v3107
        %v3194 = vsel %vm1730, %v2705, %v3109
        %v3195 = vsel %vm1730, %v2708, %v3111
        %v3196 = vsel %vm1730, %v2752, %v3113
        %v3197 = vsel %vm1730, %v2755, %v3115
        %v3198 = vsel %vm1730, %v2760, %v3117
        %v3199 = vsel %vm1730, %v2763, %v3119
        %vm3200 = vcmask 523264
        %v3201 = vsel %vm3200, %v3192, %v3137
        %v3202 = vsel %vm3200, %v3193, %v3139
        %v3203 = vsel %vm3200, %v3194, %v3141
        %v3204 = vsel %vm3200, %v3195, %v3143
        %v3205 = vsel %vm3200, %v3196, %v3145
        %v3206 = vsel %vm3200, %v3197, %v3147
        %v3207 = vsel %vm3200, %v3198, %v3149
        %v3208 = vsel %vm3200, %v3199, %v3151
        %vm3209 = vcmask 785408
        %v3210 = vsel %vm3209, %v3201, %v3169
        %v3211 = vsel %vm3209, %v3202, %v3171
        %v3212 = vsel %vm3209, %v3203, %v3173
        %v3213 = vsel %vm3209, %v3204, %v3175
        %v3214 = vsel %vm3209, %v3205, %v3177
        %v3215 = vsel %vm3209, %v3206, %v3179
        %v3216 = vsel %vm3209, %v3207, %v3181
        %v3217 = vsel %vm3209, %v3208, %v3183
        %v3218 = vpack.c.bf16 %v3211, %v3210
        %v3219 = vpack.c.bf16 %v3213, %v3212
        %v3220 = vpack.c.bf16 %v3215, %v3214
        %v3221 = vpack.c.bf16 %v3217, %v3216
        %v3222 = vld [vmem:[%s823] sm:$0xf]
        %v3223 = vld [vmem:[%s823 + $0x4] sm:$0xf]
        %v3224 = vld [vmem:[%s823 + $0x8] sm:$0xf]
        %v3225 = vld [vmem:[%s823 + $0xc] sm:$0xf]
        %v3226 = vld [vmem:[%s823 + $0x10] sm:$0xf]
        %v3227 = vld [vmem:[%s823 + $0x14] sm:$0xf]
        %v3228 = vld [vmem:[%s823 + $0x18] sm:$0xf]
        %v3229 = vld [vmem:[%s823 + $0x1c] sm:$0xf]
        %v3230 = vld [vmem:[%s823 + $0x20] sm:$0xf]
        %v3231 = vld [vmem:[%s823 + $0x24] sm:$0xf]
        %v3232 = vld [vmem:[%s823 + $0x28] sm:$0xf]
        %v3233 = vld [vmem:[%s823 + $0x2c] sm:$0xf]
        %v3234 = vld [vmem:[%s823 + $0x30] sm:$0xf]
        %v3235 = vld [vmem:[%s823 + $0x34] sm:$0xf]
        %v3236 = vld [vmem:[%s823 + $0x38] sm:$0xf]
        %v3237 = vld [vmem:[%s823 + $0x3c] sm:$0xf]
        %v3238 = vld [vmem:[%s826] sm:$0x1]
        %v3240 = vlaneseq
        %v3241 = vshrl.u32 %v3240, 7
        %v3242 = vsub.s32 0, %v3241
        %v3243 = vrot.slane %v3238, %v3242
        %v3261 = vunpack.c.l.b16 %v3222
        %v3262 = vunpack.c.l.b16 %v3223
        %v3263 = vunpack.c.l.b16 %v3224
        %v3264 = vunpack.c.l.b16 %v3225
        %v3265 = vunpack.c.l.b16 %v3226
        %v3266 = vunpack.c.l.b16 %v3227
        %v3267 = vunpack.c.l.b16 %v3228
        %v3268 = vunpack.c.l.b16 %v3229
        %v3269 = vunpack.c.l.b16 %v3230
        %v3270 = vunpack.c.l.b16 %v3231
        %v3271 = vunpack.c.l.b16 %v3232
        %v3272 = vunpack.c.l.b16 %v3233
        %v3273 = vunpack.c.l.b16 %v3234
        %v3274 = vunpack.c.l.b16 %v3235
        %v3275 = vunpack.c.l.b16 %v3236
        %v3276 = vunpack.c.l.b16 %v3237
        %v3277 = vpack.c.b16 %v3262, %v3261
        %v3278 = vpack.c.b16 %v3264, %v3263
        %v3279 = vpack.c.b16 %v3266, %v3265
        %v3280 = vpack.c.b16 %v3268, %v3267
        %v3281 = vpack.c.b16 %v3270, %v3269
        %v3282 = vpack.c.b16 %v3272, %v3271
        %v3283 = vpack.c.b16 %v3274, %v3273
        %v3284 = vpack.c.b16 %v3276, %v3275
        %3293 = vmatprep.subr.bf16.mxu0 0
        %3294 = vmatpush1.bf16.msra.mxu0 %v3277
        %3295 = vmatprep.subr.bf16.mxu0 0
        %3296 = vmatpush1.bf16.msra.mxu0 %v3278
        %3297 = vmatprep.subr.bf16.mxu0 0
        %3298 = vmatpush1.bf16.msra.mxu0 %v3279
        %3299 = vmatprep.subr.bf16.mxu0 0
        %3300 = vmatpush1.bf16.msra.mxu0 %v3280
        %3301 = vmatprep.subr.bf16.mxu0 0
        %3302 = vmatpush1.bf16.msra.mxu0 %v3281
        %3303 = vmatprep.subr.bf16.mxu0 0
        %3304 = vmatpush1.bf16.msra.mxu0 %v3282
        %3305 = vmatprep.subr.bf16.mxu0 0
        %3306 = vmatpush1.bf16.msra.mxu0 %v3283
        %3307 = vmatprep.subr.bf16.mxu0 0
        %3308 = vmatpush1.bf16.msra.mxu0 %v3284
        %3309 = vmatprep.subr.bf16.mxu0 0
        %3310 = vmatpush1.bf16.msra.mxu0 0
        %3311 = vmatprep.subr.bf16.mxu0 0
        %3312 = vmatpush1.bf16.msra.mxu0 0
        %3313 = vmatprep.subr.bf16.mxu0 0
        %3314 = vmatpush1.bf16.msra.mxu0 0
        %3315 = vmatprep.subr.bf16.mxu0 0
        %3316 = vmatpush1.bf16.msra.mxu0 0
        %3317 = vmatprep.subr.bf16.mxu0 0
        %3318 = vmatpush1.bf16.msra.mxu0 0
        %3319 = vmatprep.subr.bf16.mxu0 0
        %3320 = vmatpush1.bf16.msra.mxu0 0
        %3321 = vmatprep.subr.bf16.mxu0 0
        %3322 = vmatpush1.bf16.msra.mxu0 0
        %3323 = vmatprep.subr.bf16.mxu0 0
        %3324 = vmatpush1.bf16.msra.mxu0 0
        %3325 = vmatprep.mubr.bf16.mxu0 0
        %3326 = vmatmul.mubr.bf16.gmra.mrb[0].mxu0 %v3218
        %v3327 = vpop.f32.mrb[0].mxu0
        %v3328 = vadd.f32 %v3243, %v3327
        %v3329 = vpop.f32.mrb[0].mxu0
        %v3330 = vpop.f32.mrb[0].mxu0
        %v3331 = vadd.f32 %v3243, %v3330
        %v3332 = vpop.f32.mrb[0].mxu0
        %3333 = vmatprep.mubr.bf16.mxu0 0
        %3334 = vmatmul.mubr.bf16.gmra.mrb[0].mxu0 %v3219
        %v3335 = vpop.f32.mrb[0].mxu0
        %v3336 = vadd.f32 %v3243, %v3335
        %v3337 = vpop.f32.mrb[0].mxu0
        %v3338 = vpop.f32.mrb[0].mxu0
        %v3339 = vadd.f32 %v3243, %v3338
        %v3340 = vpop.f32.mrb[0].mxu0
        %3341 = vmatprep.mubr.bf16.mxu0 0
        %3342 = vmatmul.mubr.bf16.gmra.mrb[0].mxu0 %v3220
        %v3343 = vpop.f32.mrb[0].mxu0
        %v3344 = vadd.f32 %v3243, %v3343
        %v3345 = vpop.f32.mrb[0].mxu0
        %v3346 = vpop.f32.mrb[0].mxu0
        %v3347 = vadd.f32 %v3243, %v3346
        %v3348 = vpop.f32.mrb[0].mxu0
        %3349 = vmatprep.mubr.bf16.mxu0 0
        %3350 = vmatmul.mubr.bf16.gmra.mrb[0].mxu0 %v3221
        %v3351 = vpop.f32.mrb[0].mxu0
        %v3352 = vadd.f32 %v3243, %v3351
        %v3353 = vpop.f32.mrb[0].mxu0
        %v3354 = vpop.f32.mrb[0].mxu0
        %v3355 = vadd.f32 %v3243, %v3354
        %v3356 = vpop.f32.mrb[0].mxu0
        %3357 = vdwg.mxu0
        %v3358 = vadd.f32 %v3328, %v1132
        %v3359 = vadd.f32 %v3331, %v1133
        %v3360 = vadd.f32 %v3336, %v1134
        %v3361 = vadd.f32 %v3339, %v1135
        %v3362 = vadd.f32 %v3344, %v1136
        %v3363 = vadd.f32 %v3347, %v1137
        %v3364 = vadd.f32 %v3352, %v1138
        %v3365 = vadd.f32 %v3355, %v1139
        %v3366 = vld [vmem:[%s829] sm:$0x1]
        %v3367 = vld [vmem:[%s832] sm:$0x1]
        %3368 = vadd.xlane.f32.xlu0 %v3358
        %v3369 = vpop.xlane.xlu0 %3368
        %3370 = vadd.xlane.f32.xlu0 %v3359
        %v3371 = vpop.xlane.xlu0 %3370
        %3372 = vadd.xlane.f32.xlu0 %v3360
        %v3373 = vpop.xlane.xlu0 %3372
        %3374 = vadd.xlane.f32.xlu0 %v3361
        %v3375 = vpop.xlane.xlu0 %3374
        %3376 = vadd.xlane.f32.xlu0 %v3362
        %v3377 = vpop.xlane.xlu0 %3376
        %3378 = vadd.xlane.f32.xlu0 %v3363
        %v3379 = vpop.xlane.xlu0 %3378
        %3380 = vadd.xlane.f32.xlu0 %v3364
        %v3381 = vpop.xlane.xlu0 %3380
        %3382 = vadd.xlane.f32.xlu0 %v3365
        %v3383 = vpop.xlane.xlu0 %3382
        %v3384 = vmul.f32 %v3369, %v1039
        %v3385 = vmul.f32 %v3371, %v1039
        %v3386 = vmul.f32 %v3373, %v1039
        %v3387 = vmul.f32 %v3375, %v1039
        %v3388 = vmul.f32 %v3377, %v1039
        %v3389 = vmul.f32 %v3379, %v1039
        %v3390 = vmul.f32 %v3381, %v1039
        %v3391 = vmul.f32 %v3383, %v1039
        %v3392 = vsub.f32 %v3358, %v3384
        %v3393 = vsub.f32 %v3359, %v3385
        %v3394 = vsub.f32 %v3360, %v3386
        %v3395 = vsub.f32 %v3361, %v3387
        %v3396 = vsub.f32 %v3362, %v3388
        %v3397 = vsub.f32 %v3363, %v3389
        %v3398 = vsub.f32 %v3364, %v3390
        %v3399 = vsub.f32 %v3365, %v3391
        %v3400 = vmul.f32 %v3392, %v3392
        %v3401 = vmul.f32 %v3393, %v3393
        %v3402 = vmul.f32 %v3394, %v3394
        %v3403 = vmul.f32 %v3395, %v3395
        %v3404 = vmul.f32 %v3396, %v3396
        %v3405 = vmul.f32 %v3397, %v3397
        %v3406 = vmul.f32 %v3398, %v3398
        %v3407 = vmul.f32 %v3399, %v3399
        %3408 = vadd.xlane.f32.xlu0 %v3400
        %v3409 = vpop.xlane.xlu0 %3408
        %3410 = vadd.xlane.f32.xlu0 %v3401
        %v3411 = vpop.xlane.xlu0 %3410
        %3412 = vadd.xlane.f32.xlu0 %v3402
        %v3413 = vpop.xlane.xlu0 %3412
        %3414 = vadd.xlane.f32.xlu0 %v3403
        %v3415 = vpop.xlane.xlu0 %3414
        %3416 = vadd.xlane.f32.xlu0 %v3404
        %v3417 = vpop.xlane.xlu0 %3416
        %3418 = vadd.xlane.f32.xlu0 %v3405
        %v3419 = vpop.xlane.xlu0 %3418
        %3420 = vadd.xlane.f32.xlu0 %v3406
        %v3421 = vpop.xlane.xlu0 %3420
        %3422 = vadd.xlane.f32.xlu0 %v3407
        %v3423 = vpop.xlane.xlu0 %3422
        %v3424 = vmul.f32 %v3409, %v1039
        %v3425 = vmul.f32 %v3411, %v1039
        %v3426 = vmul.f32 %v3413, %v1039
        %v3427 = vmul.f32 %v3415, %v1039
        %v3428 = vmul.f32 %v3417, %v1039
        %v3429 = vmul.f32 %v3419, %v1039
        %v3430 = vmul.f32 %v3421, %v1039
        %v3431 = vmul.f32 %v3423, %v1039
        %v3432 = vadd.f32 %v3424, 1e-05
        %v3433 = vadd.f32 %v3425, 1e-05
        %v3434 = vadd.f32 %v3426, 1e-05
        %v3435 = vadd.f32 %v3427, 1e-05
        %v3436 = vadd.f32 %v3428, 1e-05
        %v3437 = vadd.f32 %v3429, 1e-05
        %v3438 = vadd.f32 %v3430, 1e-05
        %v3439 = vadd.f32 %v3431, 1e-05
        %v3440 = vrsqrt.pop %v3432
        %v3441 = vrsqrt.pop %v3433
        %v3442 = vrsqrt.pop %v3434
        %v3443 = vrsqrt.pop %v3435
        %v3444 = vrsqrt.pop %v3436
        %v3445 = vrsqrt.pop %v3437
        %v3446 = vrsqrt.pop %v3438
        %v3447 = vrsqrt.pop %v3439
        %v3448 = vmul.f32 %v3392, %v3440
        %v3449 = vmul.f32 %v3393, %v3441
        %v3450 = vmul.f32 %v3394, %v3442
        %v3451 = vmul.f32 %v3395, %v3443
        %v3452 = vmul.f32 %v3396, %v3444
        %v3453 = vmul.f32 %v3397, %v3445
        %v3454 = vmul.f32 %v3398, %v3446
        %v3455 = vmul.f32 %v3399, %v3447
        %v3457 = vlaneseq
        %v3458 = vshrl.u32 %v3457, 7
        %v3459 = vsub.s32 0, %v3458
        %v3460 = vrot.slane %v3366, %v3459
        %v3462 = vmul.f32 %v3448, %v3460
        %v3463 = vmul.f32 %v3449, %v3460
        %v3464 = vmul.f32 %v3450, %v3460
        %v3465 = vmul.f32 %v3451, %v3460
        %v3466 = vmul.f32 %v3452, %v3460
        %v3467 = vmul.f32 %v3453, %v3460
        %v3468 = vmul.f32 %v3454, %v3460
        %v3469 = vmul.f32 %v3455, %v3460
        %v3471 = vlaneseq
        %v3472 = vshrl.u32 %v3471, 7
        %v3473 = vsub.s32 0, %v3472
        %v3474 = vrot.slane %v3367, %v3473
        %v3476 = vadd.f32 %v3462, %v3474
        %v3477 = vadd.f32 %v3463, %v3474
        %v3478 = vadd.f32 %v3464, %v3474
        %v3479 = vadd.f32 %v3465, %v3474
        %v3480 = vadd.f32 %v3466, %v3474
        %v3481 = vadd.f32 %v3467, %v3474
        %v3482 = vadd.f32 %v3468, %v3474
        %v3483 = vadd.f32 %v3469, %v3474
        %v3484 = vpack.c.bf16 %v3477, %v3476
        %v3485 = vpack.c.bf16 %v3479, %v3478
        %v3486 = vpack.c.bf16 %v3481, %v3480
        %v3487 = vpack.c.bf16 %v3483, %v3482
        %v3488 = vld [vmem:[%s837] sm:$0xff]
        %v3489 = vld [vmem:[%s837 + $0x8] sm:$0xff]
        %v3490 = vld [vmem:[%s837 + $0x10] sm:$0xff]
        %v3491 = vld [vmem:[%s837 + $0x18] sm:$0xff]
        %v3492 = vld [vmem:[%s837 + $0x20] sm:$0xff]
        %v3493 = vld [vmem:[%s837 + $0x28] sm:$0xff]
        %v3494 = vld [vmem:[%s837 + $0x30] sm:$0xff]
        %v3495 = vld [vmem:[%s837 + $0x38] sm:$0xff]
        %v3496 = vld [vmem:[%s837 + $0x40] sm:$0xff]
        %v3497 = vld [vmem:[%s837 + $0x48] sm:$0xff]
        %v3498 = vld [vmem:[%s837 + $0x50] sm:$0xff]
        %v3499 = vld [vmem:[%s837 + $0x58] sm:$0xff]
        %v3500 = vld [vmem:[%s837 + $0x60] sm:$0xff]
        %v3501 = vld [vmem:[%s837 + $0x68] sm:$0xff]
        %v3502 = vld [vmem:[%s837 + $0x70] sm:$0xff]
        %v3503 = vld [vmem:[%s837 + $0x78] sm:$0xff]
        %v3504 = vld [vmem:[%s841] sm:$0x3]
        %v3506 = vlaneseq
        %v3507 = vshrl.u32 %v3506, 7
        %v3508 = vsub.s32 0, %v3507
        %v3509 = vrot.slane %v3504, %v3508
        %v3510 = vlaneseq
        %v3511 = vshrl.u32 %v3510, 7
        %v3512 = vsub.s32 1, %v3511
        %v3513 = vrot.slane %v3504, %v3512
        %v3532 = vunpack.c.l.b16 %v3488
        %v3533 = vunpack.c.h.b16 %v3488
        %v3534 = vunpack.c.l.b16 %v3489
        %v3535 = vunpack.c.h.b16 %v3489
        %v3536 = vunpack.c.l.b16 %v3490
        %v3537 = vunpack.c.h.b16 %v3490
        %v3538 = vunpack.c.l.b16 %v3491
        %v3539 = vunpack.c.h.b16 %v3491
        %v3540 = vunpack.c.l.b16 %v3492
        %v3541 = vunpack.c.h.b16 %v3492
        %v3542 = vunpack.c.l.b16 %v3493
        %v3543 = vunpack.c.h.b16 %v3493
        %v3544 = vunpack.c.l.b16 %v3494
        %v3545 = vunpack.c.h.b16 %v3494
        %v3546 = vunpack.c.l.b16 %v3495
        %v3547 = vunpack.c.h.b16 %v3495
        %v3548 = vunpack.c.l.b16 %v3496
        %v3549 = vunpack.c.h.b16 %v3496
        %v3550 = vunpack.c.l.b16 %v3497
        %v3551 = vunpack.c.h.b16 %v3497
        %v3552 = vunpack.c.l.b16 %v3498
        %v3553 = vunpack.c.h.b16 %v3498
        %v3554 = vunpack.c.l.b16 %v3499
        %v3555 = vunpack.c.h.b16 %v3499
        %v3556 = vunpack.c.l.b16 %v3500
        %v3557 = vunpack.c.h.b16 %v3500
        %v3558 = vunpack.c.l.b16 %v3501
        %v3559 = vunpack.c.h.b16 %v3501
        %v3560 = vunpack.c.l.b16 %v3502
        %v3561 = vunpack.c.h.b16 %v3502
        %v3562 = vunpack.c.l.b16 %v3503
        %v3563 = vunpack.c.h.b16 %v3503
        %v3564 = vpack.c.b16 %v3534, %v3532
        %v3565 = vpack.c.b16 %v3535, %v3533
        %v3566 = vpack.c.b16 %v3538, %v3536
        %v3567 = vpack.c.b16 %v3539, %v3537
        %v3568 = vpack.c.b16 %v3542, %v3540
        %v3569 = vpack.c.b16 %v3543, %v3541
        %v3570 = vpack.c.b16 %v3546, %v3544
        %v3571 = vpack.c.b16 %v3547, %v3545
        %v3572 = vpack.c.b16 %v3550, %v3548
        %v3573 = vpack.c.b16 %v3551, %v3549
        %v3574 = vpack.c.b16 %v3554, %v3552
        %v3575 = vpack.c.b16 %v3555, %v3553
        %v3576 = vpack.c.b16 %v3558, %v3556
        %v3577 = vpack.c.b16 %v3559, %v3557
        %v3578 = vpack.c.b16 %v3562, %v3560
        %v3579 = vpack.c.b16 %v3563, %v3561
        %3596 = vmatprep.subr.bf16.mxu0 %v3565
        %3597 = vmatpush1.bf16.msra.mxu0 %v3564
        %3598 = vmatprep.subr.bf16.mxu0 %v3567
        %3599 = vmatpush1.bf16.msra.mxu0 %v3566
        %3600 = vmatprep.subr.bf16.mxu0 %v3569
        %3601 = vmatpush1.bf16.msra.mxu0 %v3568
        %3602 = vmatprep.subr.bf16.mxu0 %v3571
        %3603 = vmatpush1.bf16.msra.mxu0 %v3570
        %3604 = vmatprep.subr.bf16.mxu0 %v3573
        %3605 = vmatpush1.bf16.msra.mxu0 %v3572
        %3606 = vmatprep.subr.bf16.mxu0 %v3575
        %3607 = vmatpush1.bf16.msra.mxu0 %v3574
        %3608 = vmatprep.subr.bf16.mxu0 %v3577
        %3609 = vmatpush1.bf16.msra.mxu0 %v3576
        %3610 = vmatprep.subr.bf16.mxu0 %v3579
        %3611 = vmatpush1.bf16.msra.mxu0 %v3578
        %3612 = vmatprep.subr.bf16.mxu0 0
        %3613 = vmatpush1.bf16.msra.mxu0 0
        %3614 = vmatprep.subr.bf16.mxu0 0
        %3615 = vmatpush1.bf16.msra.mxu0 0
        %3616 = vmatprep.subr.bf16.mxu0 0
        %3617 = vmatpush1.bf16.msra.mxu0 0
        %3618 = vmatprep.subr.bf16.mxu0 0
        %3619 = vmatpush1.bf16.msra.mxu0 0
        %3620 = vmatprep.subr.bf16.mxu0 0
        %3621 = vmatpush1.bf16.msra.mxu0 0
        %3622 = vmatprep.subr.bf16.mxu0 0
        %3623 = vmatpush1.bf16.msra.mxu0 0
        %3624 = vmatprep.subr.bf16.mxu0 0
        %3625 = vmatpush1.bf16.msra.mxu0 0
        %3626 = vmatprep.subr.bf16.mxu0 0
        %3627 = vmatpush1.bf16.msra.mxu0 0
        %3628 = vmatprep.mubr.bf16.mxu0 0
        %3629 = vmatmul.mubr.bf16.gmra.mrb[0].mxu0 %v3484
        %v3630 = vpop.f32.mrb[0].mxu0
        %v3631 = vadd.f32 %v3509, %v3630
        %v3632 = vpop.f32.mrb[0].mxu0
        %v3633 = vadd.f32 %v3513, %v3632
        %v3634 = vpop.f32.mrb[0].mxu0
        %v3635 = vadd.f32 %v3509, %v3634
        %v3636 = vpop.f32.mrb[0].mxu0
        %v3637 = vadd.f32 %v3513, %v3636
        %3638 = vmatprep.mubr.bf16.mxu0 0
        %3639 = vmatmul.mubr.bf16.gmra.mrb[0].mxu0 %v3485
        %v3640 = vpop.f32.mrb[0].mxu0
        %v3641 = vadd.f32 %v3509, %v3640
        %v3642 = vpop.f32.mrb[0].mxu0
        %v3643 = vadd.f32 %v3513, %v3642
        %v3644 = vpop.f32.mrb[0].mxu0
        %v3645 = vadd.f32 %v3509, %v3644
        %v3646 = vpop.f32.mrb[0].mxu0
        %v3647 = vadd.f32 %v3513, %v3646
        %3648 = vmatprep.mubr.bf16.mxu0 0
        %3649 = vmatmul.mubr.bf16.gmra.mrb[0].mxu0 %v3486
        %v3650 = vpop.f32.mrb[0].mxu0
        %v3651 = vadd.f32 %v3509, %v3650
        %v3652 = vpop.f32.mrb[0].mxu0
        %v3653 = vadd.f32 %v3513, %v3652
        %v3654 = vpop.f32.mrb[0].mxu0
        %v3655 = vadd.f32 %v3509, %v3654
        %v3656 = vpop.f32.mrb[0].mxu0
        %v3657 = vadd.f32 %v3513, %v3656
        %3658 = vmatprep.mubr.bf16.mxu0 0
        %3659 = vmatmul.mubr.bf16.gmra.mrb[0].mxu0 %v3487
        %v3660 = vpop.f32.mrb[0].mxu0
        %v3661 = vadd.f32 %v3509, %v3660
        %v3662 = vpop.f32.mrb[0].mxu0
        %v3663 = vadd.f32 %v3513, %v3662
        %v3664 = vpop.f32.mrb[0].mxu0
        %v3665 = vadd.f32 %v3509, %v3664
        %v3666 = vpop.f32.mrb[0].mxu0
        %v3667 = vadd.f32 %v3513, %v3666
        %3668 = vdwg.mxu0
        %v3669 = vmul.f32 %v3631, 0.5
        %v3670 = vmul.f32 %v3633, 0.5
        %v3671 = vmul.f32 %v3635, 0.5
        %v3672 = vmul.f32 %v3637, 0.5
        %v3673 = vmul.f32 %v3641, 0.5
        %v3674 = vmul.f32 %v3643, 0.5
        %v3675 = vmul.f32 %v3645, 0.5
        %v3676 = vmul.f32 %v3647, 0.5
        %v3677 = vmul.f32 %v3651, 0.5
        %v3678 = vmul.f32 %v3653, 0.5
        %v3679 = vmul.f32 %v3655, 0.5
        %v3680 = vmul.f32 %v3657, 0.5
        %v3681 = vmul.f32 %v3661, 0.5
        %v3682 = vmul.f32 %v3663, 0.5
        %v3683 = vmul.f32 %v3665, 0.5
        %v3684 = vmul.f32 %v3667, 0.5
        %v3685 = vmul.f32 %v3631, 0.70710677
        %v3686 = vmul.f32 %v3633, 0.70710677
        %v3687 = vmul.f32 %v3635, 0.70710677
        %v3688 = vmul.f32 %v3637, 0.70710677
        %v3689 = vmul.f32 %v3641, 0.70710677
        %v3690 = vmul.f32 %v3643, 0.70710677
        %v3691 = vmul.f32 %v3645, 0.70710677
        %v3692 = vmul.f32 %v3647, 0.70710677
        %v3693 = vmul.f32 %v3651, 0.70710677
        %v3694 = vmul.f32 %v3653, 0.70710677
        %v3695 = vmul.f32 %v3655, 0.70710677
        %v3696 = vmul.f32 %v3657, 0.70710677
        %v3697 = vmul.f32 %v3661, 0.70710677
        %v3698 = vmul.f32 %v3663, 0.70710677
        %v3699 = vmul.f32 %v3665, 0.70710677
        %v3700 = vmul.f32 %v3667, 0.70710677
        %v3701 = vand.u32 2147483647, %v3685
        %v3702 = vand.u32 2147483647, %v3686
        %v3703 = vand.u32 2147483647, %v3687
        %v3704 = vand.u32 2147483647, %v3688
        %v3705 = vand.u32 2147483647, %v3689
        %v3706 = vand.u32 2147483647, %v3690
        %v3707 = vand.u32 2147483647, %v3691
        %v3708 = vand.u32 2147483647, %v3692
        %v3709 = vand.u32 2147483647, %v3693
        %v3710 = vand.u32 2147483647, %v3694
        %v3711 = vand.u32 2147483647, %v3695
        %v3712 = vand.u32 2147483647, %v3696
        %v3713 = vand.u32 2147483647, %v3697
        %v3714 = vand.u32 2147483647, %v3698
        %v3715 = vand.u32 2147483647, %v3699
        %v3716 = vand.u32 2147483647, %v3700
        %v3717 = vmul.f32 %v3701, 0.3275911
        %v3718 = vmul.f32 %v3702, 0.3275911
        %v3719 = vmul.f32 %v3703, 0.3275911
        %v3720 = vmul.f32 %v3704, 0.3275911
        %v3721 = vmul.f32 %v3705, 0.3275911
        %v3722 = vmul.f32 %v3706, 0.3275911
        %v3723 = vmul.f32 %v3707, 0.3275911
        %v3724 = vmul.f32 %v3708, 0.3275911
        %v3725 = vmul.f32 %v3709, 0.3275911
        %v3726 = vmul.f32 %v3710, 0.3275911
        %v3727 = vmul.f32 %v3711, 0.3275911
        %v3728 = vmul.f32 %v3712, 0.3275911
        %v3729 = vmul.f32 %v3713, 0.3275911
        %v3730 = vmul.f32 %v3714, 0.3275911
        %v3731 = vmul.f32 %v3715, 0.3275911
        %v3732 = vmul.f32 %v3716, 0.3275911
        %v3733 = vadd.f32 %v3717, 1.0
        %v3734 = vadd.f32 %v3718, 1.0
        %v3735 = vadd.f32 %v3719, 1.0
        %v3736 = vadd.f32 %v3720, 1.0
        %v3737 = vadd.f32 %v3721, 1.0
        %v3738 = vadd.f32 %v3722, 1.0
        %v3739 = vadd.f32 %v3723, 1.0
        %v3740 = vadd.f32 %v3724, 1.0
        %v3741 = vadd.f32 %v3725, 1.0
        %v3742 = vadd.f32 %v3726, 1.0
        %v3743 = vadd.f32 %v3727, 1.0
        %v3744 = vadd.f32 %v3728, 1.0
        %v3745 = vadd.f32 %v3729, 1.0
        %v3746 = vadd.f32 %v3730, 1.0
        %v3747 = vadd.f32 %v3731, 1.0
        %v3748 = vadd.f32 %v3732, 1.0
        %v3749 = vrcp.pop %v3733
        %v3750 = vmul.f32 1.0, %v3749
        %v3751 = vrcp.pop %v3734
        %v3752 = vmul.f32 1.0, %v3751
        %v3753 = vrcp.pop %v3735
        %v3754 = vmul.f32 1.0, %v3753
        %v3755 = vrcp.pop %v3736
        %v3756 = vmul.f32 1.0, %v3755
        %v3757 = vrcp.pop %v3737
        %v3758 = vmul.f32 1.0, %v3757
        %v3759 = vrcp.pop %v3738
        %v3760 = vmul.f32 1.0, %v3759
        %v3761 = vrcp.pop %v3739
        %v3762 = vmul.f32 1.0, %v3761
        %v3763 = vrcp.pop %v3740
        %v3764 = vmul.f32 1.0, %v3763
        %v3765 = vrcp.pop %v3741
        %v3766 = vmul.f32 1.0, %v3765
        %v3767 = vrcp.pop %v3742
        %v3768 = vmul.f32 1.0, %v3767
        %v3769 = vrcp.pop %v3743
        %v3770 = vmul.f32 1.0, %v3769
        %v3771 = vrcp.pop %v3744
        %v3772 = vmul.f32 1.0, %v3771
        %v3773 = vrcp.pop %v3745
        %v3774 = vmul.f32 1.0, %v3773
        %v3775 = vrcp.pop %v3746
        %v3776 = vmul.f32 1.0, %v3775
        %v3777 = vrcp.pop %v3747
        %v3778 = vmul.f32 1.0, %v3777
        %v3779 = vrcp.pop %v3748
        %v3780 = vmul.f32 1.0, %v3779
        %v3781 = vmul.f32 %v3750, 1.0614054
        %v3782 = vmul.f32 %v3752, 1.0614054
        %v3783 = vmul.f32 %v3754, 1.0614054
        %v3784 = vmul.f32 %v3756, 1.0614054
        %v3785 = vmul.f32 %v3758, 1.0614054
        %v3786 = vmul.f32 %v3760, 1.0614054
        %v3787 = vmul.f32 %v3762, 1.0614054
        %v3788 = vmul.f32 %v3764, 1.0614054
        %v3789 = vmul.f32 %v3766, 1.0614054
        %v3790 = vmul.f32 %v3768, 1.0614054
        %v3791 = vmul.f32 %v3770, 1.0614054
        %v3792 = vmul.f32 %v3772, 1.0614054
        %v3793 = vmul.f32 %v3774, 1.0614054
        %v3794 = vmul.f32 %v3776, 1.0614054
        %v3795 = vmul.f32 %v3778, 1.0614054
        %v3796 = vmul.f32 %v3780, 1.0614054
        %v3797 = vadd.f32 %v3781, -1.4531521
        %v3798 = vadd.f32 %v3782, -1.4531521
        %v3799 = vadd.f32 %v3783, -1.4531521
        %v3800 = vadd.f32 %v3784, -1.4531521
        %v3801 = vadd.f32 %v3785, -1.4531521
        %v3802 = vadd.f32 %v3786, -1.4531521
        %v3803 = vadd.f32 %v3787, -1.4531521
        %v3804 = vadd.f32 %v3788, -1.4531521
        %v3805 = vadd.f32 %v3789, -1.4531521
        %v3806 = vadd.f32 %v3790, -1.4531521
        %v3807 = vadd.f32 %v3791, -1.4531521
        %v3808 = vadd.f32 %v3792, -1.4531521
        %v3809 = vadd.f32 %v3793, -1.4531521
        %v3810 = vadd.f32 %v3794, -1.4531521
        %v3811 = vadd.f32 %v3795, -1.4531521
        %v3812 = vadd.f32 %v3796, -1.4531521
        %v3813 = vmul.f32 %v3797, %v3750
        %v3814 = vmul.f32 %v3798, %v3752
        %v3815 = vmul.f32 %v3799, %v3754
        %v3816 = vmul.f32 %v3800, %v3756
        %v3817 = vmul.f32 %v3801, %v3758
        %v3818 = vmul.f32 %v3802, %v3760
        %v3819 = vmul.f32 %v3803, %v3762
        %v3820 = vmul.f32 %v3804, %v3764
        %v3821 = vmul.f32 %v3805, %v3766
        %v3822 = vmul.f32 %v3806, %v3768
        %v3823 = vmul.f32 %v3807, %v3770
        %v3824 = vmul.f32 %v3808, %v3772
        %v3825 = vmul.f32 %v3809, %v3774
        %v3826 = vmul.f32 %v3810, %v3776
        %v3827 = vmul.f32 %v3811, %v3778
        %v3828 = vmul.f32 %v3812, %v3780
        %v3829 = vadd.f32 %v3813, 1.4214138
        %v3830 = vadd.f32 %v3814, 1.4214138
        %v3831 = vadd.f32 %v3815, 1.4214138
        %v3832 = vadd.f32 %v3816, 1.4214138
        %v3833 = vadd.f32 %v3817, 1.4214138
        %v3834 = vadd.f32 %v3818, 1.4214138
        %v3835 = vadd.f32 %v3819, 1.4214138
        %v3836 = vadd.f32 %v3820, 1.4214138
        %v3837 = vadd.f32 %v3821, 1.4214138
        %v3838 = vadd.f32 %v3822, 1.4214138
        %v3839 = vadd.f32 %v3823, 1.4214138
        %v3840 = vadd.f32 %v3824, 1.4214138
        %v3841 = vadd.f32 %v3825, 1.4214138
        %v3842 = vadd.f32 %v3826, 1.4214138
        %v3843 = vadd.f32 %v3827, 1.4214138
        %v3844 = vadd.f32 %v3828, 1.4214138
        %v3845 = vmul.f32 %v3829, %v3750
        %v3846 = vmul.f32 %v3830, %v3752
        %v3847 = vmul.f32 %v3831, %v3754
        %v3848 = vmul.f32 %v3832, %v3756
        %v3849 = vmul.f32 %v3833, %v3758
        %v3850 = vmul.f32 %v3834, %v3760
        %v3851 = vmul.f32 %v3835, %v3762
        %v3852 = vmul.f32 %v3836, %v3764
        %v3853 = vmul.f32 %v3837, %v3766
        %v3854 = vmul.f32 %v3838, %v3768
        %v3855 = vmul.f32 %v3839, %v3770
        %v3856 = vmul.f32 %v3840, %v3772
        %v3857 = vmul.f32 %v3841, %v3774
        %v3858 = vmul.f32 %v3842, %v3776
        %v3859 = vmul.f32 %v3843, %v3778
        %v3860 = vmul.f32 %v3844, %v3780
        %v3861 = vadd.f32 %v3845, -0.28449672
        %v3862 = vadd.f32 %v3846, -0.28449672
        %v3863 = vadd.f32 %v3847, -0.28449672
        %v3864 = vadd.f32 %v3848, -0.28449672
        %v3865 = vadd.f32 %v3849, -0.28449672
        %v3866 = vadd.f32 %v3850, -0.28449672
        %v3867 = vadd.f32 %v3851, -0.28449672
        %v3868 = vadd.f32 %v3852, -0.28449672
        %v3869 = vadd.f32 %v3853, -0.28449672
        %v3870 = vadd.f32 %v3854, -0.28449672
        %v3871 = vadd.f32 %v3855, -0.28449672
        %v3872 = vadd.f32 %v3856, -0.28449672
        %v3873 = vadd.f32 %v3857, -0.28449672
        %v3874 = vadd.f32 %v3858, -0.28449672
        %v3875 = vadd.f32 %v3859, -0.28449672
        %v3876 = vadd.f32 %v3860, -0.28449672
        %v3877 = vmul.f32 %v3861, %v3750
        %v3878 = vmul.f32 %v3862, %v3752
        %v3879 = vmul.f32 %v3863, %v3754
        %v3880 = vmul.f32 %v3864, %v3756
        %v3881 = vmul.f32 %v3865, %v3758
        %v3882 = vmul.f32 %v3866, %v3760
        %v3883 = vmul.f32 %v3867, %v3762
        %v3884 = vmul.f32 %v3868, %v3764
        %v3885 = vmul.f32 %v3869, %v3766
        %v3886 = vmul.f32 %v3870, %v3768
        %v3887 = vmul.f32 %v3871, %v3770
        %v3888 = vmul.f32 %v3872, %v3772
        %v3889 = vmul.f32 %v3873, %v3774
        %v3890 = vmul.f32 %v3874, %v3776
        %v3891 = vmul.f32 %v3875, %v3778
        %v3892 = vmul.f32 %v3876, %v3780
        %v3893 = vadd.f32 %v3877, 0.2548296
        %v3894 = vadd.f32 %v3878, 0.2548296
        %v3895 = vadd.f32 %v3879, 0.2548296
        %v3896 = vadd.f32 %v3880, 0.2548296
        %v3897 = vadd.f32 %v3881, 0.2548296
        %v3898 = vadd.f32 %v3882, 0.2548296
        %v3899 = vadd.f32 %v3883, 0.2548296
        %v3900 = vadd.f32 %v3884, 0.2548296
        %v3901 = vadd.f32 %v3885, 0.2548296
        %v3902 = vadd.f32 %v3886, 0.2548296
        %v3903 = vadd.f32 %v3887, 0.2548296
        %v3904 = vadd.f32 %v3888, 0.2548296
        %v3905 = vadd.f32 %v3889, 0.2548296
        %v3906 = vadd.f32 %v3890, 0.2548296
        %v3907 = vadd.f32 %v3891, 0.2548296
        %v3908 = vadd.f32 %v3892, 0.2548296
        %v3909 = vmul.f32 %v3893, %v3750
        %v3910 = vmul.f32 %v3894, %v3752
        %v3911 = vmul.f32 %v3895, %v3754
        %v3912 = vmul.f32 %v3896, %v3756
        %v3913 = vmul.f32 %v3897, %v3758
        %v3914 = vmul.f32 %v3898, %v3760
        %v3915 = vmul.f32 %v3899, %v3762
        %v3916 = vmul.f32 %v3900, %v3764
        %v3917 = vmul.f32 %v3901, %v3766
        %v3918 = vmul.f32 %v3902, %v3768
        %v3919 = vmul.f32 %v3903, %v3770
        %v3920 = vmul.f32 %v3904, %v3772
        %v3921 = vmul.f32 %v3905, %v3774
        %v3922 = vmul.f32 %v3906, %v3776
        %v3923 = vmul.f32 %v3907, %v3778
        %v3924 = vmul.f32 %v3908, %v3780
        %v3925 = vsub.f32 0.0, %v3701
        %v3926 = vsub.f32 0.0, %v3702
        %v3927 = vsub.f32 0.0, %v3703
        %v3928 = vsub.f32 0.0, %v3704
        %v3929 = vsub.f32 0.0, %v3705
        %v3930 = vsub.f32 0.0, %v3706
        %v3931 = vsub.f32 0.0, %v3707
        %v3932 = vsub.f32 0.0, %v3708
        %v3933 = vsub.f32 0.0, %v3709
        %v3934 = vsub.f32 0.0, %v3710
        %v3935 = vsub.f32 0.0, %v3711
        %v3936 = vsub.f32 0.0, %v3712
        %v3937 = vsub.f32 0.0, %v3713
        %v3938 = vsub.f32 0.0, %v3714
        %v3939 = vsub.f32 0.0, %v3715
        %v3940 = vsub.f32 0.0, %v3716
        %v3941 = vmul.f32 %v3925, %v3701
        %v3942 = vmul.f32 %v3926, %v3702
        %v3943 = vmul.f32 %v3927, %v3703
        %v3944 = vmul.f32 %v3928, %v3704
        %v3945 = vmul.f32 %v3929, %v3705
        %v3946 = vmul.f32 %v3930, %v3706
        %v3947 = vmul.f32 %v3931, %v3707
        %v3948 = vmul.f32 %v3932, %v3708
        %v3949 = vmul.f32 %v3933, %v3709
        %v3950 = vmul.f32 %v3934, %v3710
        %v3951 = vmul.f32 %v3935, %v3711
        %v3952 = vmul.f32 %v3936, %v3712
        %v3953 = vmul.f32 %v3937, %v3713
        %v3954 = vmul.f32 %v3938, %v3714
        %v3955 = vmul.f32 %v3939, %v3715
        %v3956 = vmul.f32 %v3940, %v3716
        %v3957 = vmul.f32 %v3941, 1.442695
        %v3958 = vpow.pop %v3957
        %v3959 = vmul.f32 %v3942, 1.442695
        %v3960 = vpow.pop %v3959
        %v3961 = vmul.f32 %v3943, 1.442695
        %v3962 = vpow.pop %v3961
        %v3963 = vmul.f32 %v3944, 1.442695
        %v3964 = vpow.pop %v3963
        %v3965 = vmul.f32 %v3945, 1.442695
        %v3966 = vpow.pop %v3965
        %v3967 = vmul.f32 %v3946, 1.442695
        %v3968 = vpow.pop %v3967
        %v3969 = vmul.f32 %v3947, 1.442695
        %v3970 = vpow.pop %v3969
        %v3971 = vmul.f32 %v3948, 1.442695
        %v3972 = vpow.pop %v3971
        %v3973 = vmul.f32 %v3949, 1.442695
        %v3974 = vpow.pop %v3973
        %v3975 = vmul.f32 %v3950, 1.442695
        %v3976 = vpow.pop %v3975
        %v3977 = vmul.f32 %v3951, 1.442695
        %v3978 = vpow.pop %v3977
        %v3979 = vmul.f32 %v3952, 1.442695
        %v3980 = vpow.pop %v3979
        %v3981 = vmul.f32 %v3953, 1.442695
        %v3982 = vpow.pop %v3981
        %v3983 = vmul.f32 %v3954, 1.442695
        %v3984 = vpow.pop %v3983
        %v3985 = vmul.f32 %v3955, 1.442695
        %v3986 = vpow.pop %v3985
        %v3987 = vmul.f32 %v3956, 1.442695
        %v3988 = vpow.pop %v3987
        %v3989 = vmul.f32 %v3909, %v3958
        %v3990 = vmul.f32 %v3910, %v3960
        %v3991 = vmul.f32 %v3911, %v3962
        %v3992 = vmul.f32 %v3912, %v3964
        %v3993 = vmul.f32 %v3913, %v3966
        %v3994 = vmul.f32 %v3914, %v3968
        %v3995 = vmul.f32 %v3915, %v3970
        %v3996 = vmul.f32 %v3916, %v3972
        %v3997 = vmul.f32 %v3917, %v3974
        %v3998 = vmul.f32 %v3918, %v3976
        %v3999 = vmul.f32 %v3919, %v3978
        %v4000 = vmul.f32 %v3920, %v3980
        %v4001 = vmul.f32 %v3921, %v3982
        %v4002 = vmul.f32 %v3922, %v3984
        %v4003 = vmul.f32 %v3923, %v3986
        %v4004 = vmul.f32 %v3924, %v3988
        %v4005 = vsub.f32 1.0, %v3989
        %v4006 = vsub.f32 1.0, %v3990
        %v4007 = vsub.f32 1.0, %v3991
        %v4008 = vsub.f32 1.0, %v3992
        %v4009 = vsub.f32 1.0, %v3993
        %v4010 = vsub.f32 1.0, %v3994
        %v4011 = vsub.f32 1.0, %v3995
        %v4012 = vsub.f32 1.0, %v3996
        %v4013 = vsub.f32 1.0, %v3997
        %v4014 = vsub.f32 1.0, %v3998
        %v4015 = vsub.f32 1.0, %v3999
        %v4016 = vsub.f32 1.0, %v4000
        %v4017 = vsub.f32 1.0, %v4001
        %v4018 = vsub.f32 1.0, %v4002
        %v4019 = vsub.f32 1.0, %v4003
        %v4020 = vsub.f32 1.0, %v4004
        %vm4021 = vcmp.ge.f32.partialorder %v3685, 0.0
        %vm4022 = vcmp.ge.f32.partialorder %v3686, 0.0
        %vm4023 = vcmp.ge.f32.partialorder %v3687, 0.0
        %vm4024 = vcmp.ge.f32.partialorder %v3688, 0.0
        %vm4025 = vcmp.ge.f32.partialorder %v3689, 0.0
        %vm4026 = vcmp.ge.f32.partialorder %v3690, 0.0
        %vm4027 = vcmp.ge.f32.partialorder %v3691, 0.0
        %vm4028 = vcmp.ge.f32.partialorder %v3692, 0.0
        %vm4029 = vcmp.ge.f32.partialorder %v3693, 0.0
        %vm4030 = vcmp.ge.f32.partialorder %v3694, 0.0
        %vm4031 = vcmp.ge.f32.partialorder %v3695, 0.0
        %vm4032 = vcmp.ge.f32.partialorder %v3696, 0.0
        %vm4033 = vcmp.ge.f32.partialorder %v3697, 0.0
        %vm4034 = vcmp.ge.f32.partialorder %v3698, 0.0
        %vm4035 = vcmp.ge.f32.partialorder %v3699, 0.0
        %vm4036 = vcmp.ge.f32.partialorder %v3700, 0.0
        %v4037 = vsub.f32 0.0, %v4005
        %v4038 = vsub.f32 0.0, %v4006
        %v4039 = vsub.f32 0.0, %v4007
        %v4040 = vsub.f32 0.0, %v4008
        %v4041 = vsub.f32 0.0, %v4009
        %v4042 = vsub.f32 0.0, %v4010
        %v4043 = vsub.f32 0.0, %v4011
        %v4044 = vsub.f32 0.0, %v4012
        %v4045 = vsub.f32 0.0, %v4013
        %v4046 = vsub.f32 0.0, %v4014
        %v4047 = vsub.f32 0.0, %v4015
        %v4048 = vsub.f32 0.0, %v4016
        %v4049 = vsub.f32 0.0, %v4017
        %v4050 = vsub.f32 0.0, %v4018
        %v4051 = vsub.f32 0.0, %v4019
        %v4052 = vsub.f32 0.0, %v4020
        %v4053 = vsel %vm4021, %v4005, %v4037
        %v4054 = vsel %vm4022, %v4006, %v4038
        %v4055 = vsel %vm4023, %v4007, %v4039
        %v4056 = vsel %vm4024, %v4008, %v4040
        %v4057 = vsel %vm4025, %v4009, %v4041
        %v4058 = vsel %vm4026, %v4010, %v4042
        %v4059 = vsel %vm4027, %v4011, %v4043
        %v4060 = vsel %vm4028, %v4012, %v4044
        %v4061 = vsel %vm4029, %v4013, %v4045
        %v4062 = vsel %vm4030, %v4014, %v4046
        %v4063 = vsel %vm4031, %v4015, %v4047
        %v4064 = vsel %vm4032, %v4016, %v4048
        %v4065 = vsel %vm4033, %v4017, %v4049
        %v4066 = vsel %vm4034, %v4018, %v4050
        %v4067 = vsel %vm4035, %v4019, %v4051
        %v4068 = vsel %vm4036, %v4020, %v4052
        %v4069 = vadd.f32 %v4053, 1.0
        %v4070 = vadd.f32 %v4054, 1.0
        %v4071 = vadd.f32 %v4055, 1.0
        %v4072 = vadd.f32 %v4056, 1.0
        %v4073 = vadd.f32 %v4057, 1.0
        %v4074 = vadd.f32 %v4058, 1.0
        %v4075 = vadd.f32 %v4059, 1.0
        %v4076 = vadd.f32 %v4060, 1.0
        %v4077 = vadd.f32 %v4061, 1.0
        %v4078 = vadd.f32 %v4062, 1.0
        %v4079 = vadd.f32 %v4063, 1.0
        %v4080 = vadd.f32 %v4064, 1.0
        %v4081 = vadd.f32 %v4065, 1.0
        %v4082 = vadd.f32 %v4066, 1.0
        %v4083 = vadd.f32 %v4067, 1.0
        %v4084 = vadd.f32 %v4068, 1.0
        %v4085 = vmul.f32 %v3669, %v4069
        %v4086 = vmul.f32 %v3670, %v4070
        %v4087 = vmul.f32 %v3671, %v4071
        %v4088 = vmul.f32 %v3672, %v4072
        %v4089 = vmul.f32 %v3673, %v4073
        %v4090 = vmul.f32 %v3674, %v4074
        %v4091 = vmul.f32 %v3675, %v4075
        %v4092 = vmul.f32 %v3676, %v4076
        %v4093 = vmul.f32 %v3677, %v4077
        %v4094 = vmul.f32 %v3678, %v4078
        %v4095 = vmul.f32 %v3679, %v4079
        %v4096 = vmul.f32 %v3680, %v4080
        %v4097 = vmul.f32 %v3681, %v4081
        %v4098 = vmul.f32 %v3682, %v4082
        %v4099 = vmul.f32 %v3683, %v4083
        %v4100 = vmul.f32 %v3684, %v4084
        %v4101 = vpack.c.bf16 %v4087, %v4085
        %v4102 = vpack.c.bf16 %v4088, %v4086
        %v4103 = vpack.c.bf16 %v4091, %v4089
        %v4104 = vpack.c.bf16 %v4092, %v4090
        %v4105 = vpack.c.bf16 %v4095, %v4093
        %v4106 = vpack.c.bf16 %v4096, %v4094
        %v4107 = vpack.c.bf16 %v4099, %v4097
        %v4108 = vpack.c.bf16 %v4100, %v4098
        %v4109 = vld [vmem:[%s846] sm:$0xf]
        %v4110 = vld [vmem:[%s846 + $0x4] sm:$0xf]
        %v4111 = vld [vmem:[%s846 + $0x8] sm:$0xf]
        %v4112 = vld [vmem:[%s846 + $0xc] sm:$0xf]
        %v4113 = vld [vmem:[%s846 + $0x10] sm:$0xf]
        %v4114 = vld [vmem:[%s846 + $0x14] sm:$0xf]
        %v4115 = vld [vmem:[%s846 + $0x18] sm:$0xf]
        %v4116 = vld [vmem:[%s846 + $0x1c] sm:$0xf]
        %v4117 = vld [vmem:[%s846 + $0x20] sm:$0xf]
        %v4118 = vld [vmem:[%s846 + $0x24] sm:$0xf]
        %v4119 = vld [vmem:[%s846 + $0x28] sm:$0xf]
        %v4120 = vld [vmem:[%s846 + $0x2c] sm:$0xf]
        %v4121 = vld [vmem:[%s846 + $0x30] sm:$0xf]
        %v4122 = vld [vmem:[%s846 + $0x34] sm:$0xf]
        %v4123 = vld [vmem:[%s846 + $0x38] sm:$0xf]
        %v4124 = vld [vmem:[%s846 + $0x3c] sm:$0xf]
        %v4125 = vld [vmem:[%s846 + $0x40] sm:$0xf]
        %v4126 = vld [vmem:[%s846 + $0x44] sm:$0xf]
        %v4127 = vld [vmem:[%s846 + $0x48] sm:$0xf]
        %v4128 = vld [vmem:[%s846 + $0x4c] sm:$0xf]
        %v4129 = vld [vmem:[%s846 + $0x50] sm:$0xf]
        %v4130 = vld [vmem:[%s846 + $0x54] sm:$0xf]
        %v4131 = vld [vmem:[%s846 + $0x58] sm:$0xf]
        %v4132 = vld [vmem:[%s846 + $0x5c] sm:$0xf]
        %v4133 = vld [vmem:[%s846 + $0x60] sm:$0xf]
        %v4134 = vld [vmem:[%s846 + $0x64] sm:$0xf]
        %v4135 = vld [vmem:[%s846 + $0x68] sm:$0xf]
        %v4136 = vld [vmem:[%s846 + $0x6c] sm:$0xf]
        %v4137 = vld [vmem:[%s846 + $0x70] sm:$0xf]
        %v4138 = vld [vmem:[%s846 + $0x74] sm:$0xf]
        %v4139 = vld [vmem:[%s846 + $0x78] sm:$0xf]
        %v4140 = vld [vmem:[%s846 + $0x7c] sm:$0xf]
        %v4141 = vld [vmem:[%s849] sm:$0x1]
        %v4143 = vlaneseq
        %v4144 = vshrl.u32 %v4143, 7
        %v4145 = vsub.s32 0, %v4144
        %v4146 = vrot.slane %v4141, %v4145
        %v4180 = vunpack.c.l.b16 %v4109
        %v4181 = vunpack.c.l.b16 %v4110
        %v4182 = vunpack.c.l.b16 %v4111
        %v4183 = vunpack.c.l.b16 %v4112
        %v4184 = vunpack.c.l.b16 %v4113
        %v4185 = vunpack.c.l.b16 %v4114
        %v4186 = vunpack.c.l.b16 %v4115
        %v4187 = vunpack.c.l.b16 %v4116
        %v4188 = vunpack.c.l.b16 %v4117
        %v4189 = vunpack.c.l.b16 %v4118
        %v4190 = vunpack.c.l.b16 %v4119
        %v4191 = vunpack.c.l.b16 %v4120
        %v4192 = vunpack.c.l.b16 %v4121
        %v4193 = vunpack.c.l.b16 %v4122
        %v4194 = vunpack.c.l.b16 %v4123
        %v4195 = vunpack.c.l.b16 %v4124
        %v4196 = vunpack.c.l.b16 %v4125
        %v4197 = vunpack.c.l.b16 %v4126
        %v4198 = vunpack.c.l.b16 %v4127
        %v4199 = vunpack.c.l.b16 %v4128
        %v4200 = vunpack.c.l.b16 %v4129
        %v4201 = vunpack.c.l.b16 %v4130
        %v4202 = vunpack.c.l.b16 %v4131
        %v4203 = vunpack.c.l.b16 %v4132
        %v4204 = vunpack.c.l.b16 %v4133
        %v4205 = vunpack.c.l.b16 %v4134
        %v4206 = vunpack.c.l.b16 %v4135
        %v4207 = vunpack.c.l.b16 %v4136
        %v4208 = vunpack.c.l.b16 %v4137
        %v4209 = vunpack.c.l.b16 %v4138
        %v4210 = vunpack.c.l.b16 %v4139
        %v4211 = vunpack.c.l.b16 %v4140
        %v4212 = vpack.c.b16 %v4181, %v4180
        %v4213 = vpack.c.b16 %v4183, %v4182
        %v4214 = vpack.c.b16 %v4185, %v4184
        %v4215 = vpack.c.b16 %v4187, %v4186
        %v4216 = vpack.c.b16 %v4189, %v4188
        %v4217 = vpack.c.b16 %v4191, %v4190
        %v4218 = vpack.c.b16 %v4193, %v4192
        %v4219 = vpack.c.b16 %v4195, %v4194
        %v4220 = vpack.c.b16 %v4197, %v4196
        %v4221 = vpack.c.b16 %v4199, %v4198
        %v4222 = vpack.c.b16 %v4201, %v4200
        %v4223 = vpack.c.b16 %v4203, %v4202
        %v4224 = vpack.c.b16 %v4205, %v4204
        %v4225 = vpack.c.b16 %v4207, %v4206
        %v4226 = vpack.c.b16 %v4209, %v4208
        %v4227 = vpack.c.b16 %v4211, %v4210
        %4244 = vmatprep.subr.bf16.mxu0 0
        %4245 = vmatpush1.bf16.msra.mxu0 %v4212
        %4246 = vmatprep.subr.bf16.mxu0 0
        %4247 = vmatpush1.bf16.msra.mxu0 %v4213
        %4248 = vmatprep.subr.bf16.mxu0 0
        %4249 = vmatpush1.bf16.msra.mxu0 %v4214
        %4250 = vmatprep.subr.bf16.mxu0 0
        %4251 = vmatpush1.bf16.msra.mxu0 %v4215
        %4252 = vmatprep.subr.bf16.mxu0 0
        %4253 = vmatpush1.bf16.msra.mxu0 %v4216
        %4254 = vmatprep.subr.bf16.mxu0 0
        %4255 = vmatpush1.bf16.msra.mxu0 %v4217
        %4256 = vmatprep.subr.bf16.mxu0 0
        %4257 = vmatpush1.bf16.msra.mxu0 %v4218
        %4258 = vmatprep.subr.bf16.mxu0 0
        %4259 = vmatpush1.bf16.msra.mxu0 %v4219
        %4260 = vmatprep.subr.bf16.mxu0 0
        %4261 = vmatpush1.bf16.msra.mxu0 %v4220
        %4262 = vmatprep.subr.bf16.mxu0 0
        %4263 = vmatpush1.bf16.msra.mxu0 %v4221
        %4264 = vmatprep.subr.bf16.mxu0 0
        %4265 = vmatpush1.bf16.msra.mxu0 %v4222
        %4266 = vmatprep.subr.bf16.mxu0 0
        %4267 = vmatpush1.bf16.msra.mxu0 %v4223
        %4268 = vmatprep.subr.bf16.mxu0 0
        %4269 = vmatpush1.bf16.msra.mxu0 %v4224
        %4270 = vmatprep.subr.bf16.mxu0 0
        %4271 = vmatpush1.bf16.msra.mxu0 %v4225
        %4272 = vmatprep.subr.bf16.mxu0 0
        %4273 = vmatpush1.bf16.msra.mxu0 %v4226
        %4274 = vmatprep.subr.bf16.mxu0 0
        %4275 = vmatpush1.bf16.msra.mxu0 %v4227
        %4276 = vmatprep.mubr.bf16.mxu0 %v4102
        %4277 = vmatmul.mubr.bf16.gmra.mrb[0].mxu0 %v4101
        %v4278 = vpop.f32.mrb[0].mxu0
        %v4279 = vadd.f32 %v4146, %v4278
        %v4280 = vpop.f32.mrb[0].mxu0
        %v4281 = vpop.f32.mrb[0].mxu0
        %v4282 = vadd.f32 %v4146, %v4281
        %v4283 = vpop.f32.mrb[0].mxu0
        %4284 = vmatprep.mubr.bf16.mxu0 %v4104
        %4285 = vmatmul.mubr.bf16.gmra.mrb[0].mxu0 %v4103
        %v4286 = vpop.f32.mrb[0].mxu0
        %v4287 = vadd.f32 %v4146, %v4286
        %v4288 = vpop.f32.mrb[0].mxu0
        %v4289 = vpop.f32.mrb[0].mxu0
        %v4290 = vadd.f32 %v4146, %v4289
        %v4291 = vpop.f32.mrb[0].mxu0
        %4292 = vmatprep.mubr.bf16.mxu0 %v4106
        %4293 = vmatmul.mubr.bf16.gmra.mrb[0].mxu0 %v4105
        %v4294 = vpop.f32.mrb[0].mxu0
        %v4295 = vadd.f32 %v4146, %v4294
        %v4296 = vpop.f32.mrb[0].mxu0
        %v4297 = vpop.f32.mrb[0].mxu0
        %v4298 = vadd.f32 %v4146, %v4297
        %v4299 = vpop.f32.mrb[0].mxu0
        %4300 = vmatprep.mubr.bf16.mxu0 %v4108
        %4301 = vmatmul.mubr.bf16.gmra.mrb[0].mxu0 %v4107
        %v4302 = vpop.f32.mrb[0].mxu0
        %v4303 = vadd.f32 %v4146, %v4302
        %v4304 = vpop.f32.mrb[0].mxu0
        %v4305 = vpop.f32.mrb[0].mxu0
        %v4306 = vadd.f32 %v4146, %v4305
        %v4307 = vpop.f32.mrb[0].mxu0
        %4308 = vdwg.mxu0
        %v4309 = vadd.f32 %v4279, %v3476
        %v4310 = vadd.f32 %v4282, %v3477
        %v4311 = vadd.f32 %v4287, %v3478
        %v4312 = vadd.f32 %v4290, %v3479
        %v4313 = vadd.f32 %v4295, %v3480
        %v4314 = vadd.f32 %v4298, %v3481
        %v4315 = vadd.f32 %v4303, %v3482
        %v4316 = vadd.f32 %v4306, %v3483
        %4317 = vst [vmem:[#allocation2] sm:$0xff] %v4309
        %4318 = vst [vmem:[#allocation2 + $0x8] sm:$0xff] %v4310
        %4319 = vst [vmem:[#allocation2 + $0x10] sm:$0xff] %v4311
        %4320 = vst [vmem:[#allocation2 + $0x18] sm:$0xff] %v4312
        %4321 = vst [vmem:[#allocation2 + $0x20] sm:$0xff] %v4313
        %4322 = vst [vmem:[#allocation2 + $0x28] sm:$0xff] %v4314
        %4323 = vst [vmem:[#allocation2 + $0x30] sm:$0xff] %v4315
        %4324 = vst [vmem:[#allocation2 + $0x38] sm:$0xff] %v4316
        %p4325 = scmp.eq.s32.totalorder %s40, 1
        // Predicated region
        $region105: #{vit_forward.1} parent=99 // pred_check
          %p4326 = pneg %p4325
        $region106: #{vit_forward.1} parent=99 // pred_check_branch
          %4328 = sbr.rel (%p4326) target = $region108
        $region107: #{vit_forward.1} parent=99 // pred_region
          %v4329 = vld [vmem:[%s16] sm:$0x1]
          %v4330 = vld [vmem:[%s17] sm:$0x1]
          %v4333 = vrot.slane %v4313, 7
          %vm4334 = vcmask 1041409
          %v4335 = vsel %vm4334, %v4333, %v4309
          %vm4337 = vcmask 1041408
          %v4338 = vsel %vm4337, %v4335, 0.0
          %4339 = vadd.xlane.f32.xlu0 %v4338
          %v4340 = vpop.xlane.xlu0 %4339
          %v4341 = vmul.f32 %v4340, %v1039
          %v4343 = vrot.slane %v4341, 1
          %v4346 = vsub.f32 %v4309, %v4341
          %v4347 = vsub.f32 %v4313, %v4343
          %v4348 = vmul.f32 %v4346, %v4346
          %v4349 = vmul.f32 %v4347, %v4347
          %v4352 = vrot.slane %v4349, 7
          %v4353 = vsel %vm4334, %v4352, %v4348
          %v4355 = vsel %vm4337, %v4353, 0.0
          %4356 = vadd.xlane.f32.xlu0 %v4355
          %v4357 = vpop.xlane.xlu0 %4356
          %v4358 = vmul.f32 %v4357, %v1039
          %v4359 = vadd.f32 %v4358, 1e-05
          %v4360 = vrsqrt.pop %v4359
          %v4362 = vrot.slane %v4360, 1
          %v4365 = vmul.f32 %v4346, %v4360
          %v4366 = vmul.f32 %v4347, %v4362
          %v4368 = vlaneseq
          %v4369 = vshrl.u32 %v4368, 7
          %v4370 = vsub.s32 0, %v4369
          %v4371 = vrot.slane %v4329, %v4370
          %v4373 = vmul.f32 %v4365, %v4371
          %v4374 = vmul.f32 %v4366, %v4371
          %v4376 = vlaneseq
          %v4377 = vshrl.u32 %v4376, 7
          %v4378 = vsub.s32 0, %v4377
          %v4379 = vrot.slane %v4330, %v4378
          %v4381 = vadd.f32 %v4373, %v4379
          %v4382 = vadd.f32 %v4374, %v4379
          %4383 = vst [vmem:[#allocation3] sm:$0x1] %v4381
          %4384 = vst [vmem:[#allocation3 + $0x1] sm:$0x1] %v4382
          %v4385 = vpack.c.bf16 %v4381, %v4381
          %v4386 = vpack.c.bf16 %v4382, %v4382
          %v4387 = vld [vmem:[%s18] sm:$0xf]
          %v4388 = vld [vmem:[%s18 + $0x4] sm:$0xf]
          %v4389 = vld [vmem:[%s18 + $0x8] sm:$0xf]
          %v4390 = vld [vmem:[%s18 + $0xc] sm:$0xf]
          %v4391 = vld [vmem:[%s18 + $0x10] sm:$0xf]
          %v4392 = vld [vmem:[%s18 + $0x14] sm:$0xf]
          %v4393 = vld [vmem:[%s18 + $0x18] sm:$0xf]
          %v4394 = vld [vmem:[%s18 + $0x1c] sm:$0xf]
          %v4395 = vld [vmem:[%s18 + $0x20] sm:$0xf]
          %v4396 = vld [vmem:[%s18 + $0x24] sm:$0xf]
          %v4397 = vld [vmem:[%s18 + $0x28] sm:$0xf]
          %v4398 = vld [vmem:[%s18 + $0x2c] sm:$0xf]
          %v4399 = vld [vmem:[%s18 + $0x30] sm:$0xf]
          %v4400 = vld [vmem:[%s18 + $0x34] sm:$0xf]
          %v4401 = vld [vmem:[%s18 + $0x38] sm:$0xf]
          %v4402 = vld [vmem:[%s18 + $0x3c] sm:$0xf]
          %v4403 = vld [vmem:[%s19] sm:$0x1]
          %v4405 = vlaneseq
          %v4406 = vshrl.u32 %v4405, 7
          %v4407 = vsub.s32 0, %v4406
          %v4408 = vrot.slane %v4403, %v4407
          %v4412 = vunpack.c.l.b16 %v4385
          %v4413 = vunpack.c.l.b16 %v4386
          %v4414 = vrot.slane %v4413, 7
          %v4415 = vsel %vm4334, %v4414, %v4412
          %v4416 = vpack.c.b16 %v4415, %v4415
          %v4434 = vunpack.c.l.b16 %v4387
          %v4435 = vunpack.c.l.b16 %v4388
          %v4436 = vunpack.c.l.b16 %v4389
          %v4437 = vunpack.c.l.b16 %v4390
          %v4438 = vunpack.c.l.b16 %v4391
          %v4439 = vunpack.c.l.b16 %v4392
          %v4440 = vunpack.c.l.b16 %v4393
          %v4441 = vunpack.c.l.b16 %v4394
          %v4442 = vunpack.c.l.b16 %v4395
          %v4443 = vunpack.c.l.b16 %v4396
          %v4444 = vunpack.c.l.b16 %v4397
          %v4445 = vunpack.c.l.b16 %v4398
          %v4446 = vunpack.c.l.b16 %v4399
          %v4447 = vunpack.c.l.b16 %v4400
          %v4448 = vunpack.c.l.b16 %v4401
          %v4449 = vunpack.c.l.b16 %v4402
          %v4450 = vpack.c.b16 %v4435, %v4434
          %v4451 = vpack.c.b16 %v4437, %v4436
          %v4452 = vpack.c.b16 %v4439, %v4438
          %v4453 = vpack.c.b16 %v4441, %v4440
          %v4454 = vpack.c.b16 %v4443, %v4442
          %v4455 = vpack.c.b16 %v4445, %v4444
          %v4456 = vpack.c.b16 %v4447, %v4446
          %v4457 = vpack.c.b16 %v4449, %v4448
          %4466 = vmatprep.subr.bf16.mxu0 0
          %4467 = vmatpush1.bf16.msra.mxu0 %v4450
          %4468 = vmatprep.subr.bf16.mxu0 0
          %4469 = vmatpush1.bf16.msra.mxu0 %v4451
          %4470 = vmatprep.subr.bf16.mxu0 0
          %4471 = vmatpush1.bf16.msra.mxu0 %v4452
          %4472 = vmatprep.subr.bf16.mxu0 0
          %4473 = vmatpush1.bf16.msra.mxu0 %v4453
          %4474 = vmatprep.subr.bf16.mxu0 0
          %4475 = vmatpush1.bf16.msra.mxu0 %v4454
          %4476 = vmatprep.subr.bf16.mxu0 0
          %4477 = vmatpush1.bf16.msra.mxu0 %v4455
          %4478 = vmatprep.subr.bf16.mxu0 0
          %4479 = vmatpush1.bf16.msra.mxu0 %v4456
          %4480 = vmatprep.subr.bf16.mxu0 0
          %4481 = vmatpush1.bf16.msra.mxu0 %v4457
          %4482 = vmatprep.subr.bf16.mxu0 0
          %4483 = vmatpush1.bf16.msra.mxu0 0
          %4484 = vmatprep.subr.bf16.mxu0 0
          %4485 = vmatpush1.bf16.msra.mxu0 0
          %4486 = vmatprep.subr.bf16.mxu0 0
          %4487 = vmatpush1.bf16.msra.mxu0 0
          %4488 = vmatprep.subr.bf16.mxu0 0
          %4489 = vmatpush1.bf16.msra.mxu0 0
          %4490 = vmatprep.subr.bf16.mxu0 0
          %4491 = vmatpush1.bf16.msra.mxu0 0
          %4492 = vmatprep.subr.bf16.mxu0 0
          %4493 = vmatpush1.bf16.msra.mxu0 0
          %4494 = vmatprep.subr.bf16.mxu0 0
          %4495 = vmatpush1.bf16.msra.mxu0 0
          %4496 = vmatprep.subr.bf16.mxu0 0
          %4497 = vmatpush1.bf16.msra.mxu0 0
          %4498 = vmatprep.mubr.bf16.mxu0 0
          %4499 = vmatmul.mubr.bf16.gmra.mrb[0].mxu0 %v4416
          %v4500 = vpop.f32.mrb[0].mxu0
          %v4501 = vadd.f32 %v4408, %v4500
          %v4502 = vpop.f32.mrb[0].mxu0
          %v4503 = vpop.f32.mrb[0].mxu0
          %v4504 = vpop.f32.mrb[0].mxu0
          %4505 = vdwg.mxu0
          %v4508 = vunpack.c.l.s4 1966171168
          %v4509 = vunpack.c.0.s8 %v4508
          %v4510 = vlaneseq
          %v4511 = vshrl.u32 %v4510, 7
          %v4512 = vsub.s32 %v4509, %v4511
          %v4513 = vrot.slane %v4501, %v4512
          %v4514 = vcombine.high %v4513, %v4513
          %v4516 = vunpack.c.l.s4 1966171168
          %v4517 = vunpack.c.0.s8 %v4516
          %v4518 = vlaneseq
          %v4519 = vshrl.u32 %v4518, 7
          %v4520 = vsub.s32 %v4517, %v4519
          %v4521 = vrot.slane %v4513, %v4520
          %v4523 = vunpack.c.l.s4 1966171168
          %v4524 = vunpack.c.0.s8 %v4523
          %v4525 = vlaneseq
          %v4526 = vshrl.u32 %v4525, 7
          %v4527 = vsub.s32 %v4524, %v4526
          %v4528 = vrot.slane %v4514, %v4527
          %4531 = vst [vmem:[#allocation5] sm:$0x1] %v4521
          %4532 = vst [vmem:[#allocation5 + $0x1] sm:$0x1] %v4528
        $region108: #{vit_forward.1} parent=99 // pred_fallthru
          _
        // Predicated region
        $region109: #{vit_forward.1} parent=99 // pred_check
          %p4533 = pneg %p545
        $region110: #{vit_forward.1} parent=99 // pred_check_branch
          %4535 = sbr.rel (%p4533) target = $region112
        $region111: #{vit_forward.1} parent=99 // pred_region
          %s4536 = smul.u32 2, %s39
          %s4538 = ssub.s32 32, 32
          %4539 = vsyncadd [#allocation4], %s4538
          %s4540 = smul.addr %s4536, 16
          %s4541 = scalar_lea.hbm %s20, %s4540
          %s4542 = sshll.u32 [#allocation3], 4
          %s4543 = int_to_ptr.vmem [resolvable:$true] %s4542
          %4548 = dma.vmem_to_hbm [thread:$0]  %s4543, 32, %s4541, [#allocation4], 16, 16, 1
        $region112: #{vit_forward.1} parent=99 // pred_fallthru
          _
        // Predicated region
        $region113: #{vit_forward.1} parent=99 // pred_check
          %p4549 = pneg %p571
        $region114: #{vit_forward.1} parent=99 // pred_check_branch
          %4551 = sbr.rel (%p4549) target = $region116
        $region115: #{vit_forward.1} parent=99 // pred_region
          %s4552 = smul.u32 2, %s39
          %s4554 = ssub.s32 32, 32
          %4555 = vsyncadd [#allocation6], %s4554
          %s4556 = smul.addr %s4552, 16
          %s4557 = scalar_lea.hbm %s21, %s4556
          %s4558 = sshll.u32 [#allocation5], 4
          %s4559 = int_to_ptr.vmem [resolvable:$true] %s4558
          %4564 = dma.vmem_to_hbm [thread:$0]  %s4559, 32, %s4557, [#allocation6], 16, 16, 1
        $region116: #{vit_forward.1} parent=99 // pred_fallthru
          _
        // Predicated region
        $region117: #{vit_forward.1} parent=99 // pred_check
          %p4565 = pneg %p545
        $region118: #{vit_forward.1} parent=99 // pred_check_branch
          %4567 = sbr.rel (%p4565) target = $region120
        $region119: #{vit_forward.1} parent=99 // pred_region
          %4568 = dma.done [#allocation4], 32
        $region120: #{vit_forward.1} parent=99 // pred_fallthru
          _
        // Predicated region
        $region121: #{vit_forward.1} parent=99 // pred_check
          %p4569 = pneg %p571
        $region122: #{vit_forward.1} parent=99 // pred_check_branch
          %4571 = sbr.rel (%p4569) target = $region124
        $region123: #{vit_forward.1} parent=99 // pred_region
          %4572 = dma.done [#allocation6], 32
        $region124: #{vit_forward.1} parent=99 // pred_fallthru
          _
      $region100: #{vit_forward.1} parent=5 // pred_fallthru
        _
      %p4573 = scmp.le.s32.totalorder 2, %s30
      // Predicated region
      $region125: #{vit_forward.1} parent=5 // pred_check
        %p4574 = pneg %p4573
      $region126: #{vit_forward.1} parent=5 // pred_check_branch
        %4576 = sbr.rel (%p4574) target = $region128
      $region127: #{vit_forward.1} parent=5 // pred_region
        %s4577 = ssub.s32 %s30, 2
      $region128: #{vit_forward.1} parent=5 // pred_fallthru
        _
    $region6: #{vit_forward.1} parent=1 // loop_footer
      %s34 = sadd.s32 1, %s30
    $region7: #{vit_forward.1} parent=1 // loop_footer_branch
      %29 = sbr.rel target = $region3
    $region8: #{vit_forward.1} parent=1 // loop_exit
      _
    %4578 = vsyncpa [#allocation4], 1
    %s4579 = scalar_lea.sflag [#allocation4], 1
    %4580 = vsyncpa %s4579, 1
    %4581 = vsyncpa [#allocation6], 1

</llo_original>
